<compile_context>
chip_gen: v7x
topology: tpu7x:2x2x1
jax: 0.10.0
libtpu: 0.0.40
codegen_flags: <defaults>
</compile_context>

<pallas_src>
import math
import jax
import jax.numpy as jnp
from jax.experimental import pallas as pl

# ----------------------------- small config ---------------------------------
B = 2            # batch (num_return_sequences analogue)
T = 8            # sequence length
C = 32           # n_embd
N_HEAD = 4
HEAD_DIM = C // N_HEAD
N_LAYER = 2
VOCAB = 128
BLOCK_SIZE = 16  # >= T
LN_EPS = 1e-5

# ----------------------------- kernel helpers --------------------------------


def _layernorm(x, w, b):
    mu = jnp.mean(x, axis=-1, keepdims=True)
    var = jnp.mean((x - mu) ** 2, axis=-1, keepdims=True)
    return (x - mu) * jax.lax.rsqrt(var + LN_EPS) * w + b


def _split_heads(z):
    # (B*T, C) -> (N_HEAD*B, T, HEAD_DIM); heads stacked on the leading axis.
    # Only lane slices + tile-aligned reshapes + a major-axis concat.
    parts = [z[:, h * HEAD_DIM:(h + 1) * HEAD_DIM].reshape(B, T, HEAD_DIM)
             for h in range(N_HEAD)]
    return jnp.concatenate(parts, axis=0)


def _merge_heads(y):
    # (N_HEAD*B, T, HEAD_DIM) -> (B*T, C)   (inverse of _split_heads)
    parts = [y[h * B:(h + 1) * B].reshape(B * T, HEAD_DIM)
             for h in range(N_HEAD)]
    return jnp.concatenate(parts, axis=-1)


# ----------------------------- fused forward kernel --------------------------


def gpt_kernel(tok_ref, pos_ref,
               ln1w_ref, ln1b_ref, wqkv_ref, bqkv_ref,
               wproj_ref, bproj_ref, ln2w_ref, ln2b_ref,
               lnfw_ref, lnfb_ref, wlm_ref, o_ref):
    # Embedding add (fused).  tok: (B,T,C), pos: (T,C) -> x: (B*T, C)
    x = (tok_ref[...] + pos_ref[...][None, :, :]).reshape(B * T, C)

    # Causal mask: computed once, reused across layers and all (batch, head).
    row = jax.lax.broadcasted_iota(jnp.int32, (T, T), 0)
    col = jax.lax.broadcasted_iota(jnp.int32, (T, T), 1)
    causal = (col <= row)[None, :, :]                       # (1, T, T)

    for l in range(N_LAYER):   # static unroll; weights indexed per layer
        # --- ln_1 + fused QKV: one (B*T, C) @ (C, 3C) matmul ---------------
        h = _layernorm(x, ln1w_ref[l], ln1b_ref[l])
        qkv = (jnp.dot(h, wqkv_ref[l], preferred_element_type=jnp.float32)
               + bqkv_ref[l])                                # (B*T, 3C)

        # 1/sqrt(head_dim) is already folded into the Q weights/bias.
        q = _split_heads(qkv[:, 0 * C:1 * C])                # (N_HEAD*B, T, D)
        k = _split_heads(qkv[:, 1 * C:2 * C])
        v = _split_heads(qkv[:, 2 * C:3 * C])

        # --- batched causal attention over all (head, batch) at once -------
        s = jnp.einsum('ntd,nsd->nts', q, k,
                       preferred_element_type=jnp.float32)   # (N*B, T, T)
        s = jnp.where(causal, s, -jnp.inf)
        s = s - jnp.max(s, axis=-1, keepdims=True)
        p = jnp.exp(s)
        p = p * pl.reciprocal(jnp.sum(p, axis=-1, keepdims=True), approx=True)
        y = jnp.einsum('nts,nsd->ntd', p, v,
                       preferred_element_type=jnp.float32)   # (N*B, T, D)

        y = _merge_heads(y)                                  # (B*T, C)
        y = (jnp.dot(y, wproj_ref[l], preferred_element_type=jnp.float32)
             + bproj_ref[l])
        x = x + y                                            # residual 1

        # --- ln_2 + identity MLP (MLP.forward returns x in the reference) --
        x = x + _layernorm(x, ln2w_ref[l], ln2b_ref[l])      # residual 2

    # --- final layernorm + lm_head; logits are lane-dense (V = 128) --------
    h = _layernorm(x, lnfw_ref[...], lnfb_ref[...])
    o_ref[...] = jnp.dot(h, wlm_ref[...],
                         preferred_element_type=jnp.float32).astype(o_ref.dtype)


# ----------------------------- wrapper ---------------------------------------


@jax.jit
def _gpt_logits(idx, kp, wte, wpe):
    tok = wte[idx]           # (B, T, C) token-embedding gather: plain-JAX glue
    pos = wpe[:T]            # (T, C)
    logits = pl.pallas_call(
        gpt_kernel,
        out_shape=jax.ShapeDtypeStruct((B * T, VOCAB), jnp.float32),
    )(tok, pos,
      kp["ln1_w"], kp["ln1_b"], kp["w_qkv"], kp["b_qkv"],
      kp["w_proj"], kp["b_proj"], kp["ln2_w"], kp["ln2_b"],
      kp["lnf_w"], kp["lnf_b"], kp["w_lm_t"])
    return logits.reshape(B, T, VOCAB)


def gpt_forward(idx, kparams, wte, wpe):
    # targets=None in the reference forward => loss is None
    return _gpt_logits(idx, kparams, wte, wpe), None


# ----------------------------- params ----------------------------------------


def init_params(key):
    keys = jax.random.split(key, 4 + 4 * N_LAYER)
    p = {
        "wte": 0.02 * jax.random.normal(keys[0], (VOCAB, C), jnp.float32),
        "wpe": 0.02 * jax.random.normal(keys[1], (BLOCK_SIZE, C), jnp.float32),
        "lnf_w": jnp.ones((1, C), jnp.float32),
        "lnf_b": jnp.zeros((1, C), jnp.float32),
        # lm_head weight is (V, C) in torch; store transposed (C, V)
        "w_lm_t": 0.02 * jax.random.normal(keys[2], (C, VOCAB), jnp.float32),
        "blocks": [],
    }
    for L in range(N_LAYER):
        k0, k1, k2, k3 = jax.random.split(keys[4 + L], 4)
        p["blocks"].append({
            "ln1_w": jnp.ones((1, C), jnp.float32),
            "ln1_b": jnp.zeros((1, C), jnp.float32),
            # torch Linear weight is (out, in); store transposed (in, out)
            "w_qkv": 0.02 * jax.random.normal(k0, (C, 3 * C), jnp.float32),
            "b_qkv": 0.01 * jax.random.normal(k1, (1, 3 * C), jnp.float32),
            "w_proj": 0.02 * jax.random.normal(k2, (C, C), jnp.float32),
            "b_proj": 0.01 * jax.random.normal(k3, (1, C), jnp.float32),
            "ln2_w": jnp.ones((1, C), jnp.float32),
            "ln2_b": jnp.zeros((1, C), jnp.float32),
        })
    return p


def prepare_params(p):
    """One-time prep: stack per-layer weights and fold the attention scale
    (1/sqrt(head_dim)) into the Q projection (exact)."""
    scale = 1.0 / math.sqrt(HEAD_DIM)

    def stack(name):
        return jnp.stack([blk[name] for blk in p["blocks"]], axis=0)

    w_qkv = stack("w_qkv")                       # (L, C, 3C)
    b_qkv = stack("b_qkv")                       # (L, 1, 3C)
    w_qkv = w_qkv.at[:, :, :C].multiply(scale)   # scale Q weights
    b_qkv = b_qkv.at[:, :, :C].multiply(scale)   # scale Q bias
    return {
        "ln1_w": stack("ln1_w"), "ln1_b": stack("ln1_b"),    # (L, 1, C)
        "w_qkv": w_qkv, "b_qkv": b_qkv,
        "w_proj": stack("w_proj"), "b_proj": stack("b_proj"),
        "ln2_w": stack("ln2_w"), "ln2_b": stack("ln2_b"),
        "lnf_w": p["lnf_w"], "lnf_b": p["lnf_b"],
        "w_lm_t": p["w_lm_t"],
    }


# ----------------------------- reference (plain JAX) -------------------------


def ref_forward(idx, params):
    x = params["wte"][idx] + params["wpe"][:T][None, :, :]
    mask = jnp.tril(jnp.ones((T, T), bool))
    for lp in params["blocks"]:
        h = _layernorm(x, lp["ln1_w"], lp["ln1_b"])
        qkv = h @ lp["w_qkv"] + lp["b_qkv"]
        q, k, v = jnp.split(qkv, 3, axis=-1)
        q = q.reshape(B, T, N_HEAD, HEAD_DIM).transpose(0, 2, 1, 3)
        k = k.reshape(B, T, N_HEAD, HEAD_DIM).transpose(0, 2, 1, 3)
        v = v.reshape(B, T, N_HEAD, HEAD_DIM).transpose(0, 2, 1, 3)
        att = jnp.einsum("bhtd,bhsd->bhts", q, k) / math.sqrt(HEAD_DIM)
        att = jnp.where(mask, att, -jnp.inf)
        att = jax.nn.softmax(att, axis=-1)
        y = jnp.einsum("bhts,bhsd->bhtd", att, v)
        y = y.transpose(0, 2, 1, 3).reshape(B, T, C)
        y = y @ lp["w_proj"] + lp["b_proj"]
        x = x + y
        x = x + _layernorm(x, lp["ln2_w"], lp["ln2_b"])   # MLP is identity
    x = _layernorm(x, params["lnf_w"], params["lnf_b"])
    return x @ params["w_lm_t"]


# ----------------------------- main ------------------------------------------

if __name__ == "__main__":
    key = jax.random.PRNGKey(0)
    k_idx, k_par = jax.random.split(key)
    idx = jax.random.randint(k_idx, (B, T), 0, VOCAB, dtype=jnp.int32)
    params = init_params(k_par)
    kparams = prepare_params(params)

    logits, loss = gpt_forward(idx, kparams, params["wte"], params["wpe"])
    logits = jax.block_until_ready(logits)

    ref = ref_forward(idx, params)
    assert logits.shape == (B, T, VOCAB)
    assert loss is None
    # Tolerance 1e-3 accommodates the approximate EUP reciprocal used in the
    # softmax normalization (per perf review); any structural error (head
    # permutation, mask bug, missing residual) is orders of magnitude larger.
    err = float(jnp.max(jnp.abs(logits - ref)))
    assert jnp.allclose(logits, ref, atol=1e-3, rtol=1e-3), err

    print("KERNEL_OK")
</pallas_src>

<mosaic_0001>
module attributes {stable_mosaic.version = 11 : i64} {
  func.func @gpt_kernel(%arg0: memref<2x8x32xf32, #tpu.memory_space<vmem>>, %arg1: memref<8x32xf32, #tpu.memory_space<vmem>>, %arg2: memref<2x1x32xf32, #tpu.memory_space<vmem>>, %arg3: memref<2x1x32xf32, #tpu.memory_space<vmem>>, %arg4: memref<2x32x96xf32, #tpu.memory_space<vmem>>, %arg5: memref<2x1x96xf32, #tpu.memory_space<vmem>>, %arg6: memref<2x32x32xf32, #tpu.memory_space<vmem>>, %arg7: memref<2x1x32xf32, #tpu.memory_space<vmem>>, %arg8: memref<2x1x32xf32, #tpu.memory_space<vmem>>, %arg9: memref<2x1x32xf32, #tpu.memory_space<vmem>>, %arg10: memref<1x32xf32, #tpu.memory_space<vmem>>, %arg11: memref<1x32xf32, #tpu.memory_space<vmem>>, %arg12: memref<32x128xf32, #tpu.memory_space<vmem>>, %arg13: memref<16x128xf32, #tpu.memory_space<vmem>>) attributes {dimension_semantics = [], scalar_prefetch = 0 : i64, scratch_operands = 0 : i64, tpu.core_type = #tpu.core_type<tc>} {
    %c0 = arith.constant 0 : index
    %c0_0 = arith.constant 0 : index
    %c0_1 = arith.constant 0 : index
    %0 = vector.load %arg0[%c0, %c0_0, %c0_1] : memref<2x8x32xf32, #tpu.memory_space<vmem>>, vector<2x8x32xf32>
    %c0_2 = arith.constant 0 : index
    %c0_3 = arith.constant 0 : index
    %1 = vector.load %arg1[%c0_2, %c0_3] : memref<8x32xf32, #tpu.memory_space<vmem>>, vector<8x32xf32>
    %2 = vector.shape_cast %1 : vector<8x32xf32> to vector<1x8x32xf32>
    %3 = vector.broadcast %2 : vector<1x8x32xf32> to vector<2x8x32xf32>
    %4 = arith.addf %0, %3 : vector<2x8x32xf32>
    %5 = vector.shape_cast %4 : vector<2x8x32xf32> to vector<16x32xf32>
    %6 = tpu.iota {dimensions = array<i32: 0>} : vector<8x8xi32>
    %7 = tpu.iota {dimensions = array<i32: 1>} : vector<8x8xi32>
    %8 = arith.cmpi sle, %7, %6 : vector<8x8xi32>
    %9 = vector.shape_cast %8 : vector<8x8xi1> to vector<1x8x8xi1>
    %c0_4 = arith.constant 0 : index
    %c0_5 = arith.constant 0 : index
    %c0_6 = arith.constant 0 : index
    %10 = vector.load %arg2[%c0_4, %c0_5, %c0_6] : memref<2x1x32xf32, #tpu.memory_space<vmem>>, vector<1x1x32xf32>
    %11 = vector.shape_cast %10 : vector<1x1x32xf32> to vector<1x32xf32>
    %c0_7 = arith.constant 0 : index
    %c0_8 = arith.constant 0 : index
    %c0_9 = arith.constant 0 : index
    %12 = vector.load %arg3[%c0_7, %c0_8, %c0_9] : memref<2x1x32xf32, #tpu.memory_space<vmem>>, vector<1x1x32xf32>
    %13 = vector.shape_cast %12 : vector<1x1x32xf32> to vector<1x32xf32>
    %cst = arith.constant dense<0.000000e+00> : vector<16xf32>
    %14 = vector.multi_reduction <add>, %5, %cst [1] : vector<16x32xf32> to vector<16xf32>
    %15 = vector.shape_cast %14 : vector<16xf32> to vector<16x1xf32>
    %cst_10 = arith.constant 3.200000e+01 : f32
    %16 = vector.broadcast %cst_10 : f32 to vector<16x1xf32>
    %17 = arith.divf %15, %16 : vector<16x1xf32>
    %18 = vector.broadcast %17 : vector<16x1xf32> to vector<16x32xf32>
    %19 = arith.subf %5, %18 : vector<16x32xf32>
    %20 = arith.mulf %19, %19 : vector<16x32xf32>
    %cst_11 = arith.constant dense<0.000000e+00> : vector<16xf32>
    %21 = vector.multi_reduction <add>, %20, %cst_11 [1] : vector<16x32xf32> to vector<16xf32>
    %22 = vector.shape_cast %21 : vector<16xf32> to vector<16x1xf32>
    %cst_12 = arith.constant 3.200000e+01 : f32
    %23 = vector.broadcast %cst_12 : f32 to vector<16x1xf32>
    %24 = arith.divf %22, %23 : vector<16x1xf32>
    %25 = vector.broadcast %17 : vector<16x1xf32> to vector<16x32xf32>
    %26 = arith.subf %5, %25 : vector<16x32xf32>
    %cst_13 = arith.constant 9.99999974E-6 : f32
    %27 = vector.broadcast %cst_13 : f32 to vector<16x1xf32>
    %28 = arith.addf %24, %27 : vector<16x1xf32>
    %29 = math.rsqrt %28 : vector<16x1xf32>
    %30 = vector.broadcast %29 : vector<16x1xf32> to vector<16x32xf32>
    %31 = arith.mulf %26, %30 : vector<16x32xf32>
    %32 = vector.broadcast %11 : vector<1x32xf32> to vector<16x32xf32>
    %33 = arith.mulf %31, %32 : vector<16x32xf32>
    %34 = vector.broadcast %13 : vector<1x32xf32> to vector<16x32xf32>
    %35 = arith.addf %33, %34 : vector<16x32xf32>
    %c0_14 = arith.constant 0 : index
    %c0_15 = arith.constant 0 : index
    %c0_16 = arith.constant 0 : index
    %36 = vector.load %arg4[%c0_14, %c0_15, %c0_16] : memref<2x32x96xf32, #tpu.memory_space<vmem>>, vector<1x32x96xf32>
    %37 = vector.shape_cast %36 : vector<1x32x96xf32> to vector<32x96xf32>
    %cst_17 = arith.constant dense<0.000000e+00> : vector<16x96xf32>
    %38 = tpu.matmul %35, %37, %cst_17 {dimension_numbers = #tpu.dot_dimension_numbers<[1], [0], [0], [1], [0, 0, 1, 1], [], []>} : vector<16x32xf32>, vector<32x96xf32>, vector<16x96xf32> -> vector<16x96xf32>
    %c0_18 = arith.constant 0 : index
    %c0_19 = arith.constant 0 : index
    %c0_20 = arith.constant 0 : index
    %39 = vector.load %arg5[%c0_18, %c0_19, %c0_20] : memref<2x1x96xf32, #tpu.memory_space<vmem>>, vector<1x1x96xf32>
    %40 = vector.shape_cast %39 : vector<1x1x96xf32> to vector<1x96xf32>
    %41 = vector.broadcast %40 : vector<1x96xf32> to vector<16x96xf32>
    %42 = arith.addf %38, %41 : vector<16x96xf32>
    %43 = vector.extract_strided_slice %42 {offsets = [0, 0], sizes = [16, 32], strides = [1, 1]} : vector<16x96xf32> to vector<16x32xf32>
    %44 = vector.extract_strided_slice %43 {offsets = [0, 0], sizes = [16, 8], strides = [1, 1]} : vector<16x32xf32> to vector<16x8xf32>
    %45 = vector.shape_cast %44 : vector<16x8xf32> to vector<2x8x8xf32>
    %46 = vector.extract_strided_slice %43 {offsets = [0, 8], sizes = [16, 8], strides = [1, 1]} : vector<16x32xf32> to vector<16x8xf32>
    %47 = vector.shape_cast %46 : vector<16x8xf32> to vector<2x8x8xf32>
    %48 = vector.extract_strided_slice %43 {offsets = [0, 16], sizes = [16, 8], strides = [1, 1]} : vector<16x32xf32> to vector<16x8xf32>
    %49 = vector.shape_cast %48 : vector<16x8xf32> to vector<2x8x8xf32>
    %50 = vector.extract_strided_slice %43 {offsets = [0, 24], sizes = [16, 8], strides = [1, 1]} : vector<16x32xf32> to vector<16x8xf32>
    %51 = vector.shape_cast %50 : vector<16x8xf32> to vector<2x8x8xf32>
    %52 = tpu.concatenate %45, %47, %49, %51 in 0 : vector<2x8x8xf32>, vector<2x8x8xf32>, vector<2x8x8xf32>, vector<2x8x8xf32> -> vector<8x8x8xf32>
    %53 = vector.extract_strided_slice %42 {offsets = [0, 32], sizes = [16, 32], strides = [1, 1]} : vector<16x96xf32> to vector<16x32xf32>
    %54 = vector.extract_strided_slice %53 {offsets = [0, 0], sizes = [16, 8], strides = [1, 1]} : vector<16x32xf32> to vector<16x8xf32>
    %55 = vector.shape_cast %54 : vector<16x8xf32> to vector<2x8x8xf32>
    %56 = vector.extract_strided_slice %53 {offsets = [0, 8], sizes = [16, 8], strides = [1, 1]} : vector<16x32xf32> to vector<16x8xf32>
    %57 = vector.shape_cast %56 : vector<16x8xf32> to vector<2x8x8xf32>
    %58 = vector.extract_strided_slice %53 {offsets = [0, 16], sizes = [16, 8], strides = [1, 1]} : vector<16x32xf32> to vector<16x8xf32>
    %59 = vector.shape_cast %58 : vector<16x8xf32> to vector<2x8x8xf32>
    %60 = vector.extract_strided_slice %53 {offsets = [0, 24], sizes = [16, 8], strides = [1, 1]} : vector<16x32xf32> to vector<16x8xf32>
    %61 = vector.shape_cast %60 : vector<16x8xf32> to vector<2x8x8xf32>
    %62 = tpu.concatenate %55, %57, %59, %61 in 0 : vector<2x8x8xf32>, vector<2x8x8xf32>, vector<2x8x8xf32>, vector<2x8x8xf32> -> vector<8x8x8xf32>
    %63 = vector.extract_strided_slice %42 {offsets = [0, 64], sizes = [16, 32], strides = [1, 1]} : vector<16x96xf32> to vector<16x32xf32>
    %64 = vector.extract_strided_slice %63 {offsets = [0, 0], sizes = [16, 8], strides = [1, 1]} : vector<16x32xf32> to vector<16x8xf32>
    %65 = vector.shape_cast %64 : vector<16x8xf32> to vector<2x8x8xf32>
    %66 = vector.extract_strided_slice %63 {offsets = [0, 8], sizes = [16, 8], strides = [1, 1]} : vector<16x32xf32> to vector<16x8xf32>
    %67 = vector.shape_cast %66 : vector<16x8xf32> to vector<2x8x8xf32>
    %68 = vector.extract_strided_slice %63 {offsets = [0, 16], sizes = [16, 8], strides = [1, 1]} : vector<16x32xf32> to vector<16x8xf32>
    %69 = vector.shape_cast %68 : vector<16x8xf32> to vector<2x8x8xf32>
    %70 = vector.extract_strided_slice %63 {offsets = [0, 24], sizes = [16, 8], strides = [1, 1]} : vector<16x32xf32> to vector<16x8xf32>
    %71 = vector.shape_cast %70 : vector<16x8xf32> to vector<2x8x8xf32>
    %72 = tpu.concatenate %65, %67, %69, %71 in 0 : vector<2x8x8xf32>, vector<2x8x8xf32>, vector<2x8x8xf32>, vector<2x8x8xf32> -> vector<8x8x8xf32>
    "tpu.trace_start"() <{level = 10 : i32, message = "ntd,nsd->nts"}> : () -> ()
    %cst_21 = arith.constant dense<0.000000e+00> : vector<8x8x8xf32>
    %73 = tpu.matmul %52, %62, %cst_21 {dimension_numbers = #tpu.dot_dimension_numbers<[2], [2], [1], [1], [0, 0, 0, 1, 1, 1], [0], [0]>} : vector<8x8x8xf32>, vector<8x8x8xf32>, vector<8x8x8xf32> -> vector<8x8x8xf32>
    %cst_22 = arith.constant 0xFF800000 : f32
    "tpu.trace_stop"() : () -> ()
    %74 = vector.shape_cast %9 : vector<1x8x8xi1> to vector<1x8x8xi1>
    %75 = vector.broadcast %74 : vector<1x8x8xi1> to vector<8x8x8xi1>
    %76 = vector.broadcast %cst_22 : f32 to vector<8x8x8xf32>
    %77 = arith.select %75, %73, %76 : vector<8x8x8xi1>, vector<8x8x8xf32>
    %cst_23 = arith.constant dense<0xFF800000> : vector<8x8xf32>
    %78 = vector.multi_reduction <maximumf>, %77, %cst_23 [2] : vector<8x8x8xf32> to vector<8x8xf32>
    %79 = vector.shape_cast %78 : vector<8x8xf32> to vector<8x8x1xf32>
    %80 = vector.broadcast %79 : vector<8x8x1xf32> to vector<8x8x8xf32>
    %81 = arith.subf %77, %80 : vector<8x8x8xf32>
    %82 = math.exp %81 : vector<8x8x8xf32>
    %cst_24 = arith.constant dense<0.000000e+00> : vector<8x8xf32>
    %83 = vector.multi_reduction <add>, %82, %cst_24 [2] : vector<8x8x8xf32> to vector<8x8xf32>
    %84 = vector.shape_cast %83 : vector<8x8xf32> to vector<8x8x1xf32>
    %85 = tpu.reciprocal %84 {approx = true} : vector<8x8x1xf32> -> vector<8x8x1xf32>
    %86 = vector.broadcast %85 : vector<8x8x1xf32> to vector<8x8x8xf32>
    %87 = arith.mulf %82, %86 : vector<8x8x8xf32>
    "tpu.trace_start"() <{level = 10 : i32, message = "nts,nsd->ntd"}> : () -> ()
    %cst_25 = arith.constant dense<0.000000e+00> : vector<8x8x8xf32>
    %88 = tpu.matmul %87, %72, %cst_25 {dimension_numbers = #tpu.dot_dimension_numbers<[2], [1], [1], [2], [0, 0, 0, 1, 1, 2], [0], [0]>} : vector<8x8x8xf32>, vector<8x8x8xf32>, vector<8x8x8xf32> -> vector<8x8x8xf32>
    "tpu.trace_stop"() : () -> ()
    %89 = vector.extract_strided_slice %88 {offsets = [0, 0, 0], sizes = [2, 8, 8], strides = [1, 1, 1]} : vector<8x8x8xf32> to vector<2x8x8xf32>
    %90 = vector.shape_cast %89 : vector<2x8x8xf32> to vector<16x8xf32>
    %91 = vector.extract_strided_slice %88 {offsets = [2, 0, 0], sizes = [2, 8, 8], strides = [1, 1, 1]} : vector<8x8x8xf32> to vector<2x8x8xf32>
    %92 = vector.shape_cast %91 : vector<2x8x8xf32> to vector<16x8xf32>
    %93 = vector.extract_strided_slice %88 {offsets = [4, 0, 0], sizes = [2, 8, 8], strides = [1, 1, 1]} : vector<8x8x8xf32> to vector<2x8x8xf32>
    %94 = vector.shape_cast %93 : vector<2x8x8xf32> to vector<16x8xf32>
    %95 = vector.extract_strided_slice %88 {offsets = [6, 0, 0], sizes = [2, 8, 8], strides = [1, 1, 1]} : vector<8x8x8xf32> to vector<2x8x8xf32>
    %96 = vector.shape_cast %95 : vector<2x8x8xf32> to vector<16x8xf32>
    %97 = tpu.concatenate %90, %92, %94, %96 in 1 : vector<16x8xf32>, vector<16x8xf32>, vector<16x8xf32>, vector<16x8xf32> -> vector<16x32xf32>
    %c0_26 = arith.constant 0 : index
    %c0_27 = arith.constant 0 : index
    %c0_28 = arith.constant 0 : index
    %98 = vector.load %arg6[%c0_26, %c0_27, %c0_28] : memref<2x32x32xf32, #tpu.memory_space<vmem>>, vector<1x32x32xf32>
    %99 = vector.shape_cast %98 : vector<1x32x32xf32> to vector<32x32xf32>
    %cst_29 = arith.constant dense<0.000000e+00> : vector<16x32xf32>
    %100 = tpu.matmul %97, %99, %cst_29 {dimension_numbers = #tpu.dot_dimension_numbers<[1], [0], [0], [1], [0, 0, 1, 1], [], []>} : vector<16x32xf32>, vector<32x32xf32>, vector<16x32xf32> -> vector<16x32xf32>
    %c0_30 = arith.constant 0 : index
    %c0_31 = arith.constant 0 : index
    %c0_32 = arith.constant 0 : index
    %101 = vector.load %arg7[%c0_30, %c0_31, %c0_32] : memref<2x1x32xf32, #tpu.memory_space<vmem>>, vector<1x1x32xf32>
    %102 = vector.shape_cast %101 : vector<1x1x32xf32> to vector<1x32xf32>
    %103 = vector.broadcast %102 : vector<1x32xf32> to vector<16x32xf32>
    %104 = arith.addf %100, %103 : vector<16x32xf32>
    %105 = arith.addf %5, %104 : vector<16x32xf32>
    %c0_33 = arith.constant 0 : index
    %c0_34 = arith.constant 0 : index
    %c0_35 = arith.constant 0 : index
    %106 = vector.load %arg8[%c0_33, %c0_34, %c0_35] : memref<2x1x32xf32, #tpu.memory_space<vmem>>, vector<1x1x32xf32>
    %107 = vector.shape_cast %106 : vector<1x1x32xf32> to vector<1x32xf32>
    %c0_36 = arith.constant 0 : index
    %c0_37 = arith.constant 0 : index
    %c0_38 = arith.constant 0 : index
    %108 = vector.load %arg9[%c0_36, %c0_37, %c0_38] : memref<2x1x32xf32, #tpu.memory_space<vmem>>, vector<1x1x32xf32>
    %109 = vector.shape_cast %108 : vector<1x1x32xf32> to vector<1x32xf32>
    %cst_39 = arith.constant dense<0.000000e+00> : vector<16xf32>
    %110 = vector.multi_reduction <add>, %105, %cst_39 [1] : vector<16x32xf32> to vector<16xf32>
    %111 = vector.shape_cast %110 : vector<16xf32> to vector<16x1xf32>
    %cst_40 = arith.constant 3.200000e+01 : f32
    %112 = vector.broadcast %cst_40 : f32 to vector<16x1xf32>
    %113 = arith.divf %111, %112 : vector<16x1xf32>
    %114 = vector.broadcast %113 : vector<16x1xf32> to vector<16x32xf32>
    %115 = arith.subf %105, %114 : vector<16x32xf32>
    %116 = arith.mulf %115, %115 : vector<16x32xf32>
    %cst_41 = arith.constant dense<0.000000e+00> : vector<16xf32>
    %117 = vector.multi_reduction <add>, %116, %cst_41 [1] : vector<16x32xf32> to vector<16xf32>
    %118 = vector.shape_cast %117 : vector<16xf32> to vector<16x1xf32>
    %cst_42 = arith.constant 3.200000e+01 : f32
    %119 = vector.broadcast %cst_42 : f32 to vector<16x1xf32>
    %120 = arith.divf %118, %119 : vector<16x1xf32>
    %121 = vector.broadcast %113 : vector<16x1xf32> to vector<16x32xf32>
    %122 = arith.subf %105, %121 : vector<16x32xf32>
    %cst_43 = arith.constant 9.99999974E-6 : f32
    %123 = vector.broadcast %cst_43 : f32 to vector<16x1xf32>
    %124 = arith.addf %120, %123 : vector<16x1xf32>
    %125 = math.rsqrt %124 : vector<16x1xf32>
    %126 = vector.broadcast %125 : vector<16x1xf32> to vector<16x32xf32>
    %127 = arith.mulf %122, %126 : vector<16x32xf32>
    %128 = vector.broadcast %107 : vector<1x32xf32> to vector<16x32xf32>
    %129 = arith.mulf %127, %128 : vector<16x32xf32>
    %130 = vector.broadcast %109 : vector<1x32xf32> to vector<16x32xf32>
    %131 = arith.addf %129, %130 : vector<16x32xf32>
    %132 = arith.addf %105, %131 : vector<16x32xf32>
    %c1 = arith.constant 1 : index
    %c0_44 = arith.constant 0 : index
    %c0_45 = arith.constant 0 : index
    %133 = vector.load %arg2[%c1, %c0_44, %c0_45] : memref<2x1x32xf32, #tpu.memory_space<vmem>>, vector<1x1x32xf32>
    %134 = vector.shape_cast %133 : vector<1x1x32xf32> to vector<1x32xf32>
    %c1_46 = arith.constant 1 : index
    %c0_47 = arith.constant 0 : index
    %c0_48 = arith.constant 0 : index
    %135 = vector.load %arg3[%c1_46, %c0_47, %c0_48] : memref<2x1x32xf32, #tpu.memory_space<vmem>>, vector<1x1x32xf32>
    %136 = vector.shape_cast %135 : vector<1x1x32xf32> to vector<1x32xf32>
    %cst_49 = arith.constant dense<0.000000e+00> : vector<16xf32>
    %137 = vector.multi_reduction <add>, %132, %cst_49 [1] : vector<16x32xf32> to vector<16xf32>
    %138 = vector.shape_cast %137 : vector<16xf32> to vector<16x1xf32>
    %cst_50 = arith.constant 3.200000e+01 : f32
    %139 = vector.broadcast %cst_50 : f32 to vector<16x1xf32>
    %140 = arith.divf %138, %139 : vector<16x1xf32>
    %141 = vector.broadcast %140 : vector<16x1xf32> to vector<16x32xf32>
    %142 = arith.subf %132, %141 : vector<16x32xf32>
    %143 = arith.mulf %142, %142 : vector<16x32xf32>
    %cst_51 = arith.constant dense<0.000000e+00> : vector<16xf32>
    %144 = vector.multi_reduction <add>, %143, %cst_51 [1] : vector<16x32xf32> to vector<16xf32>
    %145 = vector.shape_cast %144 : vector<16xf32> to vector<16x1xf32>
    %cst_52 = arith.constant 3.200000e+01 : f32
    %146 = vector.broadcast %cst_52 : f32 to vector<16x1xf32>
    %147 = arith.divf %145, %146 : vector<16x1xf32>
    %148 = vector.broadcast %140 : vector<16x1xf32> to vector<16x32xf32>
    %149 = arith.subf %132, %148 : vector<16x32xf32>
    %cst_53 = arith.constant 9.99999974E-6 : f32
    %150 = vector.broadcast %cst_53 : f32 to vector<16x1xf32>
    %151 = arith.addf %147, %150 : vector<16x1xf32>
    %152 = math.rsqrt %151 : vector<16x1xf32>
    %153 = vector.broadcast %152 : vector<16x1xf32> to vector<16x32xf32>
    %154 = arith.mulf %149, %153 : vector<16x32xf32>
    %155 = vector.broadcast %134 : vector<1x32xf32> to vector<16x32xf32>
    %156 = arith.mulf %154, %155 : vector<16x32xf32>
    %157 = vector.broadcast %136 : vector<1x32xf32> to vector<16x32xf32>
    %158 = arith.addf %156, %157 : vector<16x32xf32>
    %c1_54 = arith.constant 1 : index
    %c0_55 = arith.constant 0 : index
    %c0_56 = arith.constant 0 : index
    %159 = vector.load %arg4[%c1_54, %c0_55, %c0_56] : memref<2x32x96xf32, #tpu.memory_space<vmem>>, vector<1x32x96xf32>
    %160 = vector.shape_cast %159 : vector<1x32x96xf32> to vector<32x96xf32>
    %cst_57 = arith.constant dense<0.000000e+00> : vector<16x96xf32>
    %161 = tpu.matmul %158, %160, %cst_57 {dimension_numbers = #tpu.dot_dimension_numbers<[1], [0], [0], [1], [0, 0, 1, 1], [], []>} : vector<16x32xf32>, vector<32x96xf32>, vector<16x96xf32> -> vector<16x96xf32>
    %c1_58 = arith.constant 1 : index
    %c0_59 = arith.constant 0 : index
    %c0_60 = arith.constant 0 : index
    %162 = vector.load %arg5[%c1_58, %c0_59, %c0_60] : memref<2x1x96xf32, #tpu.memory_space<vmem>>, vector<1x1x96xf32>
    %163 = vector.shape_cast %162 : vector<1x1x96xf32> to vector<1x96xf32>
    %164 = vector.broadcast %163 : vector<1x96xf32> to vector<16x96xf32>
    %165 = arith.addf %161, %164 : vector<16x96xf32>
    %166 = vector.extract_strided_slice %165 {offsets = [0, 0], sizes = [16, 32], strides = [1, 1]} : vector<16x96xf32> to vector<16x32xf32>
    %167 = vector.extract_strided_slice %166 {offsets = [0, 0], sizes = [16, 8], strides = [1, 1]} : vector<16x32xf32> to vector<16x8xf32>
    %168 = vector.shape_cast %167 : vector<16x8xf32> to vector<2x8x8xf32>
    %169 = vector.extract_strided_slice %166 {offsets = [0, 8], sizes = [16, 8], strides = [1, 1]} : vector<16x32xf32> to vector<16x8xf32>
    %170 = vector.shape_cast %169 : vector<16x8xf32> to vector<2x8x8xf32>
    %171 = vector.extract_strided_slice %166 {offsets = [0, 16], sizes = [16, 8], strides = [1, 1]} : vector<16x32xf32> to vector<16x8xf32>
    %172 = vector.shape_cast %171 : vector<16x8xf32> to vector<2x8x8xf32>
    %173 = vector.extract_strided_slice %166 {offsets = [0, 24], sizes = [16, 8], strides = [1, 1]} : vector<16x32xf32> to vector<16x8xf32>
    %174 = vector.shape_cast %173 : vector<16x8xf32> to vector<2x8x8xf32>
    %175 = tpu.concatenate %168, %170, %172, %174 in 0 : vector<2x8x8xf32>, vector<2x8x8xf32>, vector<2x8x8xf32>, vector<2x8x8xf32> -> vector<8x8x8xf32>
    %176 = vector.extract_strided_slice %165 {offsets = [0, 32], sizes = [16, 32], strides = [1, 1]} : vector<16x96xf32> to vector<16x32xf32>
    %177 = vector.extract_strided_slice %176 {offsets = [0, 0], sizes = [16, 8], strides = [1, 1]} : vector<16x32xf32> to vector<16x8xf32>
    %178 = vector.shape_cast %177 : vector<16x8xf32> to vector<2x8x8xf32>
    %179 = vector.extract_strided_slice %176 {offsets = [0, 8], sizes = [16, 8], strides = [1, 1]} : vector<16x32xf32> to vector<16x8xf32>
    %180 = vector.shape_cast %179 : vector<16x8xf32> to vector<2x8x8xf32>
    %181 = vector.extract_strided_slice %176 {offsets = [0, 16], sizes = [16, 8], strides = [1, 1]} : vector<16x32xf32> to vector<16x8xf32>
    %182 = vector.shape_cast %181 : vector<16x8xf32> to vector<2x8x8xf32>
    %183 = vector.extract_strided_slice %176 {offsets = [0, 24], sizes = [16, 8], strides = [1, 1]} : vector<16x32xf32> to vector<16x8xf32>
    %184 = vector.shape_cast %183 : vector<16x8xf32> to vector<2x8x8xf32>
    %185 = tpu.concatenate %178, %180, %182, %184 in 0 : vector<2x8x8xf32>, vector<2x8x8xf32>, vector<2x8x8xf32>, vector<2x8x8xf32> -> vector<8x8x8xf32>
    %186 = vector.extract_strided_slice %165 {offsets = [0, 64], sizes = [16, 32], strides = [1, 1]} : vector<16x96xf32> to vector<16x32xf32>
    %187 = vector.extract_strided_slice %186 {offsets = [0, 0], sizes = [16, 8], strides = [1, 1]} : vector<16x32xf32> to vector<16x8xf32>
    %188 = vector.shape_cast %187 : vector<16x8xf32> to vector<2x8x8xf32>
    %189 = vector.extract_strided_slice %186 {offsets = [0, 8], sizes = [16, 8], strides = [1, 1]} : vector<16x32xf32> to vector<16x8xf32>
    %190 = vector.shape_cast %189 : vector<16x8xf32> to vector<2x8x8xf32>
    %191 = vector.extract_strided_slice %186 {offsets = [0, 16], sizes = [16, 8], strides = [1, 1]} : vector<16x32xf32> to vector<16x8xf32>
    %192 = vector.shape_cast %191 : vector<16x8xf32> to vector<2x8x8xf32>
    %193 = vector.extract_strided_slice %186 {offsets = [0, 24], sizes = [16, 8], strides = [1, 1]} : vector<16x32xf32> to vector<16x8xf32>
    %194 = vector.shape_cast %193 : vector<16x8xf32> to vector<2x8x8xf32>
    %195 = tpu.concatenate %188, %190, %192, %194 in 0 : vector<2x8x8xf32>, vector<2x8x8xf32>, vector<2x8x8xf32>, vector<2x8x8xf32> -> vector<8x8x8xf32>
    "tpu.trace_start"() <{level = 10 : i32, message = "ntd,nsd->nts"}> : () -> ()
    %cst_61 = arith.constant dense<0.000000e+00> : vector<8x8x8xf32>
    %196 = tpu.matmul %175, %185, %cst_61 {dimension_numbers = #tpu.dot_dimension_numbers<[2], [2], [1], [1], [0, 0, 0, 1, 1, 1], [0], [0]>} : vector<8x8x8xf32>, vector<8x8x8xf32>, vector<8x8x8xf32> -> vector<8x8x8xf32>
    %cst_62 = arith.constant 0xFF800000 : f32
    "tpu.trace_stop"() : () -> ()
    %197 = vector.shape_cast %9 : vector<1x8x8xi1> to vector<1x8x8xi1>
    %198 = vector.broadcast %197 : vector<1x8x8xi1> to vector<8x8x8xi1>
    %199 = vector.broadcast %cst_62 : f32 to vector<8x8x8xf32>
    %200 = arith.select %198, %196, %199 : vector<8x8x8xi1>, vector<8x8x8xf32>
    %cst_63 = arith.constant dense<0xFF800000> : vector<8x8xf32>
    %201 = vector.multi_reduction <maximumf>, %200, %cst_63 [2] : vector<8x8x8xf32> to vector<8x8xf32>
    %202 = vector.shape_cast %201 : vector<8x8xf32> to vector<8x8x1xf32>
    %203 = vector.broadcast %202 : vector<8x8x1xf32> to vector<8x8x8xf32>
    %204 = arith.subf %200, %203 : vector<8x8x8xf32>
    %205 = math.exp %204 : vector<8x8x8xf32>
    %cst_64 = arith.constant dense<0.000000e+00> : vector<8x8xf32>
    %206 = vector.multi_reduction <add>, %205, %cst_64 [2] : vector<8x8x8xf32> to vector<8x8xf32>
    %207 = vector.shape_cast %206 : vector<8x8xf32> to vector<8x8x1xf32>
    %208 = tpu.reciprocal %207 {approx = true} : vector<8x8x1xf32> -> vector<8x8x1xf32>
    %209 = vector.broadcast %208 : vector<8x8x1xf32> to vector<8x8x8xf32>
    %210 = arith.mulf %205, %209 : vector<8x8x8xf32>
    "tpu.trace_start"() <{level = 10 : i32, message = "nts,nsd->ntd"}> : () -> ()
    %cst_65 = arith.constant dense<0.000000e+00> : vector<8x8x8xf32>
    %211 = tpu.matmul %210, %195, %cst_65 {dimension_numbers = #tpu.dot_dimension_numbers<[2], [1], [1], [2], [0, 0, 0, 1, 1, 2], [0], [0]>} : vector<8x8x8xf32>, vector<8x8x8xf32>, vector<8x8x8xf32> -> vector<8x8x8xf32>
    "tpu.trace_stop"() : () -> ()
    %212 = vector.extract_strided_slice %211 {offsets = [0, 0, 0], sizes = [2, 8, 8], strides = [1, 1, 1]} : vector<8x8x8xf32> to vector<2x8x8xf32>
    %213 = vector.shape_cast %212 : vector<2x8x8xf32> to vector<16x8xf32>
    %214 = vector.extract_strided_slice %211 {offsets = [2, 0, 0], sizes = [2, 8, 8], strides = [1, 1, 1]} : vector<8x8x8xf32> to vector<2x8x8xf32>
    %215 = vector.shape_cast %214 : vector<2x8x8xf32> to vector<16x8xf32>
    %216 = vector.extract_strided_slice %211 {offsets = [4, 0, 0], sizes = [2, 8, 8], strides = [1, 1, 1]} : vector<8x8x8xf32> to vector<2x8x8xf32>
    %217 = vector.shape_cast %216 : vector<2x8x8xf32> to vector<16x8xf32>
    %218 = vector.extract_strided_slice %211 {offsets = [6, 0, 0], sizes = [2, 8, 8], strides = [1, 1, 1]} : vector<8x8x8xf32> to vector<2x8x8xf32>
    %219 = vector.shape_cast %218 : vector<2x8x8xf32> to vector<16x8xf32>
    %220 = tpu.concatenate %213, %215, %217, %219 in 1 : vector<16x8xf32>, vector<16x8xf32>, vector<16x8xf32>, vector<16x8xf32> -> vector<16x32xf32>
    %c1_66 = arith.constant 1 : index
    %c0_67 = arith.constant 0 : index
    %c0_68 = arith.constant 0 : index
    %221 = vector.load %arg6[%c1_66, %c0_67, %c0_68] : memref<2x32x32xf32, #tpu.memory_space<vmem>>, vector<1x32x32xf32>
    %222 = vector.shape_cast %221 : vector<1x32x32xf32> to vector<32x32xf32>
    %cst_69 = arith.constant dense<0.000000e+00> : vector<16x32xf32>
    %223 = tpu.matmul %220, %222, %cst_69 {dimension_numbers = #tpu.dot_dimension_numbers<[1], [0], [0], [1], [0, 0, 1, 1], [], []>} : vector<16x32xf32>, vector<32x32xf32>, vector<16x32xf32> -> vector<16x32xf32>
    %c1_70 = arith.constant 1 : index
    %c0_71 = arith.constant 0 : index
    %c0_72 = arith.constant 0 : index
    %224 = vector.load %arg7[%c1_70, %c0_71, %c0_72] : memref<2x1x32xf32, #tpu.memory_space<vmem>>, vector<1x1x32xf32>
    %225 = vector.shape_cast %224 : vector<1x1x32xf32> to vector<1x32xf32>
    %226 = vector.broadcast %225 : vector<1x32xf32> to vector<16x32xf32>
    %227 = arith.addf %223, %226 : vector<16x32xf32>
    %228 = arith.addf %132, %227 : vector<16x32xf32>
    %c1_73 = arith.constant 1 : index
    %c0_74 = arith.constant 0 : index
    %c0_75 = arith.constant 0 : index
    %229 = vector.load %arg8[%c1_73, %c0_74, %c0_75] : memref<2x1x32xf32, #tpu.memory_space<vmem>>, vector<1x1x32xf32>
    %230 = vector.shape_cast %229 : vector<1x1x32xf32> to vector<1x32xf32>
    %c1_76 = arith.constant 1 : index
    %c0_77 = arith.constant 0 : index
    %c0_78 = arith.constant 0 : index
    %231 = vector.load %arg9[%c1_76, %c0_77, %c0_78] : memref<2x1x32xf32, #tpu.memory_space<vmem>>, vector<1x1x32xf32>
    %232 = vector.shape_cast %231 : vector<1x1x32xf32> to vector<1x32xf32>
    %cst_79 = arith.constant dense<0.000000e+00> : vector<16xf32>
    %233 = vector.multi_reduction <add>, %228, %cst_79 [1] : vector<16x32xf32> to vector<16xf32>
    %234 = vector.shape_cast %233 : vector<16xf32> to vector<16x1xf32>
    %cst_80 = arith.constant 3.200000e+01 : f32
    %235 = vector.broadcast %cst_80 : f32 to vector<16x1xf32>
    %236 = arith.divf %234, %235 : vector<16x1xf32>
    %237 = vector.broadcast %236 : vector<16x1xf32> to vector<16x32xf32>
    %238 = arith.subf %228, %237 : vector<16x32xf32>
    %239 = arith.mulf %238, %238 : vector<16x32xf32>
    %cst_81 = arith.constant dense<0.000000e+00> : vector<16xf32>
    %240 = vector.multi_reduction <add>, %239, %cst_81 [1] : vector<16x32xf32> to vector<16xf32>
    %241 = vector.shape_cast %240 : vector<16xf32> to vector<16x1xf32>
    %cst_82 = arith.constant 3.200000e+01 : f32
    %242 = vector.broadcast %cst_82 : f32 to vector<16x1xf32>
    %243 = arith.divf %241, %242 : vector<16x1xf32>
    %244 = vector.broadcast %236 : vector<16x1xf32> to vector<16x32xf32>
    %245 = arith.subf %228, %244 : vector<16x32xf32>
    %cst_83 = arith.constant 9.99999974E-6 : f32
    %246 = vector.broadcast %cst_83 : f32 to vector<16x1xf32>
    %247 = arith.addf %243, %246 : vector<16x1xf32>
    %248 = math.rsqrt %247 : vector<16x1xf32>
    %249 = vector.broadcast %248 : vector<16x1xf32> to vector<16x32xf32>
    %250 = arith.mulf %245, %249 : vector<16x32xf32>
    %251 = vector.broadcast %230 : vector<1x32xf32> to vector<16x32xf32>
    %252 = arith.mulf %250, %251 : vector<16x32xf32>
    %253 = vector.broadcast %232 : vector<1x32xf32> to vector<16x32xf32>
    %254 = arith.addf %252, %253 : vector<16x32xf32>
    %255 = arith.addf %228, %254 : vector<16x32xf32>
    %c0_84 = arith.constant 0 : index
    %c0_85 = arith.constant 0 : index
    %256 = vector.load %arg10[%c0_84, %c0_85] : memref<1x32xf32, #tpu.memory_space<vmem>>, vector<1x32xf32>
    %c0_86 = arith.constant 0 : index
    %c0_87 = arith.constant 0 : index
    %257 = vector.load %arg11[%c0_86, %c0_87] : memref<1x32xf32, #tpu.memory_space<vmem>>, vector<1x32xf32>
    %cst_88 = arith.constant dense<0.000000e+00> : vector<16xf32>
    %258 = vector.multi_reduction <add>, %255, %cst_88 [1] : vector<16x32xf32> to vector<16xf32>
    %259 = vector.shape_cast %258 : vector<16xf32> to vector<16x1xf32>
    %cst_89 = arith.constant 3.200000e+01 : f32
    %260 = vector.broadcast %cst_89 : f32 to vector<16x1xf32>
    %261 = arith.divf %259, %260 : vector<16x1xf32>
    %262 = vector.broadcast %261 : vector<16x1xf32> to vector<16x32xf32>
    %263 = arith.subf %255, %262 : vector<16x32xf32>
    %264 = arith.mulf %263, %263 : vector<16x32xf32>
    %cst_90 = arith.constant dense<0.000000e+00> : vector<16xf32>
    %265 = vector.multi_reduction <add>, %264, %cst_90 [1] : vector<16x32xf32> to vector<16xf32>
    %266 = vector.shape_cast %265 : vector<16xf32> to vector<16x1xf32>
    %cst_91 = arith.constant 3.200000e+01 : f32
    %267 = vector.broadcast %cst_91 : f32 to vector<16x1xf32>
    %268 = arith.divf %266, %267 : vector<16x1xf32>
    %269 = vector.broadcast %261 : vector<16x1xf32> to vector<16x32xf32>
    %270 = arith.subf %255, %269 : vector<16x32xf32>
    %cst_92 = arith.constant 9.99999974E-6 : f32
    %271 = vector.broadcast %cst_92 : f32 to vector<16x1xf32>
    %272 = arith.addf %268, %271 : vector<16x1xf32>
    %273 = math.rsqrt %272 : vector<16x1xf32>
    %274 = vector.broadcast %273 : vector<16x1xf32> to vector<16x32xf32>
    %275 = arith.mulf %270, %274 : vector<16x32xf32>
    %276 = vector.broadcast %256 : vector<1x32xf32> to vector<16x32xf32>
    %277 = arith.mulf %275, %276 : vector<16x32xf32>
    %278 = vector.broadcast %257 : vector<1x32xf32> to vector<16x32xf32>
    %279 = arith.addf %277, %278 : vector<16x32xf32>
    %c0_93 = arith.constant 0 : index
    %c0_94 = arith.constant 0 : index
    %280 = vector.load %arg12[%c0_93, %c0_94] : memref<32x128xf32, #tpu.memory_space<vmem>>, vector<32x128xf32>
    %cst_95 = arith.constant dense<0.000000e+00> : vector<16x128xf32>
    %281 = tpu.matmul %279, %280, %cst_95 {dimension_numbers = #tpu.dot_dimension_numbers<[1], [0], [0], [1], [0, 0, 1, 1], [], []>} : vector<16x32xf32>, vector<32x128xf32>, vector<16x128xf32> -> vector<16x128xf32>
    %c0_96 = arith.constant 0 : index
    %c0_97 = arith.constant 0 : index
    %282 = vector.load %arg13[%c0_96, %c0_97] : memref<16x128xf32, #tpu.memory_space<vmem>>, vector<16x128xf32>
    tpu.vector_store %arg13[%c0_96, %c0_97], %281 {strides = array<i32>} : memref<16x128xf32, #tpu.memory_space<vmem>>, vector<16x128xf32>,
    return
  }
}

</mosaic_0001>

<llo_original>
// kernel: _gpt_logits.1
$region0: #{_gpt_logits.1}
  #allocation0 [shape = 'u32[]', space=smem, size = 0x4, offset = 0x4, fixed_abs, tag = 'smem constant byte address 0x4 - core index']
  #allocation1 [shape = 'u32[144,128]{1,0:T(1,128)}', space=vmem, size = 0x12000, scoped, tag = 'internal scratch']
  %s0 = inlined_call_operand.vmem [shape: f32[2,8,32], index: 0, kind: input, shape index: {}]
  %s1 = inlined_call_operand.vmem [shape: f32[8,32], index: 1, kind: input, shape index: {}]
  %s2 = inlined_call_operand.vmem [shape: f32[2,1,32], index: 2, kind: input, shape index: {}]
  %s3 = inlined_call_operand.vmem [shape: f32[2,1,32], index: 3, kind: input, shape index: {}]
  %s4 = inlined_call_operand.vmem [shape: f32[2,32,96], index: 4, kind: input, shape index: {}]
  %s5 = inlined_call_operand.vmem [shape: f32[2,1,96], index: 5, kind: input, shape index: {}]
  %s6 = inlined_call_operand.vmem [shape: f32[2,32,32], index: 6, kind: input, shape index: {}]
  %s7 = inlined_call_operand.vmem [shape: f32[2,1,32], index: 7, kind: input, shape index: {}]
  %s8 = inlined_call_operand.vmem [shape: f32[2,1,32], index: 8, kind: input, shape index: {}]
  %s9 = inlined_call_operand.vmem [shape: f32[2,1,32], index: 9, kind: input, shape index: {}]
  %s10 = inlined_call_operand.vmem [shape: f32[1,32], index: 10, kind: input, shape index: {}]
  %s11 = inlined_call_operand.vmem [shape: f32[1,32], index: 11, kind: input, shape index: {}]
  %s12 = inlined_call_operand.vmem [shape: f32[32,128], index: 12, kind: input, shape index: {}]
  %s13 = inlined_call_operand.hbm [shape: f32[16,128], index: 13, kind: output, shape index: {}]
  %s14 = sld [smem:[#allocation0]]
  $region62: #{_gpt_logits.1} parent=0
    _
  %s16 = ssub.s32 1, %s14
  %s17 = scalar_select 0, %s16, %s14
  $region1: #{_gpt_logits.1} parent=0
    #allocation2 [shape = 'u8[8192]{0}', space=vmem, size = 0x2000, scoped, tag = 'output window, operand 0, single buffered']
    #allocation3 [shape = 's32[1]{0}', space=sflag, size = 0x4, scoped, tag = 'scoped memory for _gpt_logits.1']
    %18 = vsyncpa [#allocation3], 0
    // Predicated region
    $region2: #{_gpt_logits.1} parent=1 // pred_check
      _
    $region3: #{_gpt_logits.1} parent=1 // pred_check_branch
      %20 = sbr.rel (0) target = $region5
    $region4: #{_gpt_logits.1} parent=1 // pred_region
      _
    $region5: #{_gpt_logits.1} parent=1 // pred_fallthru
      _
    // Predicated region
    $region6: #{_gpt_logits.1} parent=1 // pred_check
      _
    $region7: #{_gpt_logits.1} parent=1 // pred_check_branch
      %22 = sbr.rel (0) target = $region9
    $region8: #{_gpt_logits.1} parent=1 // pred_region
      _
    $region9: #{_gpt_logits.1} parent=1 // pred_fallthru
      _
    // Predicated region
    $region10: #{_gpt_logits.1} parent=1 // pred_check
      _
    $region11: #{_gpt_logits.1} parent=1 // pred_check_branch
      %24 = sbr.rel (0) target = $region13
    $region12: #{_gpt_logits.1} parent=1 // pred_region
      _
    $region13: #{_gpt_logits.1} parent=1 // pred_fallthru
      _
    // Predicated region
    $region14: #{_gpt_logits.1} parent=1 // pred_check
      _
    $region15: #{_gpt_logits.1} parent=1 // pred_check_branch
      %26 = sbr.rel (0) target = $region17
    $region16: #{_gpt_logits.1} parent=1 // pred_region
      _
    $region17: #{_gpt_logits.1} parent=1 // pred_fallthru
      _
    // Predicated region
    $region18: #{_gpt_logits.1} parent=1 // pred_check
      _
    $region19: #{_gpt_logits.1} parent=1 // pred_check_branch
      %28 = sbr.rel (0) target = $region21
    $region20: #{_gpt_logits.1} parent=1 // pred_region
      _
    $region21: #{_gpt_logits.1} parent=1 // pred_fallthru
      _
    // Predicated region
    $region22: #{_gpt_logits.1} parent=1 // pred_check
      _
    $region23: #{_gpt_logits.1} parent=1 // pred_check_branch
      %30 = sbr.rel (0) target = $region25
    $region24: #{_gpt_logits.1} parent=1 // pred_region
      _
    $region25: #{_gpt_logits.1} parent=1 // pred_fallthru
      _
    // Predicated region
    $region26: #{_gpt_logits.1} parent=1 // pred_check
      _
    $region27: #{_gpt_logits.1} parent=1 // pred_check_branch
      %32 = sbr.rel (0) target = $region29
    $region28: #{_gpt_logits.1} parent=1 // pred_region
      _
    $region29: #{_gpt_logits.1} parent=1 // pred_fallthru
      _
    // Predicated region
    $region30: #{_gpt_logits.1} parent=1 // pred_check
      _
    $region31: #{_gpt_logits.1} parent=1 // pred_check_branch
      %34 = sbr.rel (0) target = $region33
    $region32: #{_gpt_logits.1} parent=1 // pred_region
      _
    $region33: #{_gpt_logits.1} parent=1 // pred_fallthru
      _
    // Predicated region
    $region34: #{_gpt_logits.1} parent=1 // pred_check
      _
    $region35: #{_gpt_logits.1} parent=1 // pred_check_branch
      %36 = sbr.rel (0) target = $region37
    $region36: #{_gpt_logits.1} parent=1 // pred_region
      _
    $region37: #{_gpt_logits.1} parent=1 // pred_fallthru
      _
    // Predicated region
    $region38: #{_gpt_logits.1} parent=1 // pred_check
      _
    $region39: #{_gpt_logits.1} parent=1 // pred_check_branch
      %38 = sbr.rel (0) target = $region41
    $region40: #{_gpt_logits.1} parent=1 // pred_region
      _
    $region41: #{_gpt_logits.1} parent=1 // pred_fallthru
      _
    // Predicated region
    $region42: #{_gpt_logits.1} parent=1 // pred_check
      _
    $region43: #{_gpt_logits.1} parent=1 // pred_check_branch
      %40 = sbr.rel (0) target = $region45
    $region44: #{_gpt_logits.1} parent=1 // pred_region
      _
    $region45: #{_gpt_logits.1} parent=1 // pred_fallthru
      _
    // Predicated region
    $region46: #{_gpt_logits.1} parent=1 // pred_check
      _
    $region47: #{_gpt_logits.1} parent=1 // pred_check_branch
      %42 = sbr.rel (0) target = $region49
    $region48: #{_gpt_logits.1} parent=1 // pred_region
      _
    $region49: #{_gpt_logits.1} parent=1 // pred_fallthru
      _
    // Predicated region
    $region50: #{_gpt_logits.1} parent=1 // pred_check
      _
    $region51: #{_gpt_logits.1} parent=1 // pred_check_branch
      %44 = sbr.rel (0) target = $region53
    $region52: #{_gpt_logits.1} parent=1 // pred_region
      _
    $region53: #{_gpt_logits.1} parent=1 // pred_fallthru
      _
    %v45 = vld [vmem:[%s0] sm:$0xff]
    %v46 = vld [vmem:[%s0 + $0x8] sm:$0xff]
    %v47 = vld [vmem:[%s1] sm:$0xff]
    %v48 = vadd.f32 %v45, %v47
    %v49 = vadd.f32 %v46, %v47
    %v50 = vlaneseq
    %v51 = vshrl.u32 %v50, 7
    %v52 = vlaneseq
    %v53 = vand.u32 %v52, 127
    %vm54 = vcmp.le.s32.totalorder %v53, %v51
    %v55 = vld [vmem:[%s2] sm:$0x1]
    %v56 = vld [vmem:[%s3] sm:$0x1]
    %vm57 = vcmask 261120
    %v58 = vsel %vm57, %v48, 0.0
    %59 = vadd.xlane.f32.xlu0 %v58
    %v60 = vpop.xlane.xlu0 %59
    %v61 = vsel %vm57, %v49, 0.0
    %62 = vadd.xlane.f32.xlu0 %v61
    %v63 = vpop.xlane.xlu0 %62
    %v64 = vrcp.pop 32.0
    %v65 = vmul.f32 %v60, %v64
    %v66 = vmul.f32 %v63, %v64
    %v67 = vsub.f32 %v48, %v65
    %v68 = vsub.f32 %v49, %v66
    %v69 = vmul.f32 %v67, %v67
    %v70 = vmul.f32 %v68, %v68
    %v71 = vsel %vm57, %v69, 0.0
    %72 = vadd.xlane.f32.xlu0 %v71
    %v73 = vpop.xlane.xlu0 %72
    %v74 = vsel %vm57, %v70, 0.0
    %75 = vadd.xlane.f32.xlu0 %v74
    %v76 = vpop.xlane.xlu0 %75
    %v77 = vmul.f32 %v73, %v64
    %v78 = vmul.f32 %v76, %v64
    %v79 = vadd.f32 %v77, 1e-05
    %v80 = vadd.f32 %v78, 1e-05
    %v81 = vrsqrt.pop %v79
    %v82 = vrsqrt.pop %v80
    %v83 = vmul.f32 %v67, %v81
    %v84 = vmul.f32 %v68, %v82
    %v86 = vlaneseq
    %v87 = vshrl.u32 %v86, 7
    %v88 = vsub.s32 0, %v87
    %v89 = vrot.slane %v55, %v88
    %v91 = vmul.f32 %v83, %v89
    %v92 = vmul.f32 %v84, %v89
    %v94 = vlaneseq
    %v95 = vshrl.u32 %v94, 7
    %v96 = vsub.s32 0, %v95
    %v97 = vrot.slane %v56, %v96
    %v99 = vadd.f32 %v91, %v97
    %v100 = vadd.f32 %v92, %v97
    %v101 = vld [vmem:[%s4] sm:$0xff]
    %v102 = vld [vmem:[%s4 + $0x8] sm:$0xff]
    %v103 = vld [vmem:[%s4 + $0x10] sm:$0xff]
    %v104 = vld [vmem:[%s4 + $0x18] sm:$0xff]
    %v105 = vld [vmem:[%s5] sm:$0x1]
    %v107 = vlaneseq
    %v108 = vshrl.u32 %v107, 7
    %v109 = vsub.s32 0, %v108
    %v110 = vrot.slane %v105, %v109
    %v113 = vsel %vm57, %v99, 0
    %v116 = vsel %vm57, %v100, 0
    %118 = vmatprep.subr.mxu0 0.0
    %119 = vmatpush1.msra.mxu0 %v101
    %120 = vmatprep.subr.mxu0 0.0
    %121 = vmatpush1.msra.mxu0 %v102
    %122 = vmatprep.subr.mxu0 0.0
    %123 = vmatpush1.msra.mxu0 %v103
    %124 = vmatprep.subr.mxu0 0.0
    %125 = vmatpush1.msra.mxu0 %v104
    %126 = vmatprep.subr.mxu0 0.0
    %127 = vmatpush1.msra.mxu0 0.0
    %128 = vmatprep.subr.mxu0 0.0
    %129 = vmatpush1.msra.mxu0 0.0
    %130 = vmatprep.subr.mxu0 0.0
    %131 = vmatpush1.msra.mxu0 0.0
    %132 = vmatprep.subr.mxu0 0.0
    %133 = vmatpush1.msra.mxu0 0.0
    %134 = vmatprep.subr.mxu0 0.0
    %135 = vmatpush1.msra.mxu0 0.0
    %136 = vmatprep.subr.mxu0 0.0
    %137 = vmatpush1.msra.mxu0 0.0
    %138 = vmatprep.subr.mxu0 0.0
    %139 = vmatpush1.msra.mxu0 0.0
    %140 = vmatprep.subr.mxu0 0.0
    %141 = vmatpush1.msra.mxu0 0.0
    %142 = vmatprep.subr.mxu0 0.0
    %143 = vmatpush1.msra.mxu0 0.0
    %144 = vmatprep.subr.mxu0 0.0
    %145 = vmatpush1.msra.mxu0 0.0
    %146 = vmatprep.subr.mxu0 0.0
    %147 = vmatpush1.msra.mxu0 0.0
    %148 = vmatprep.subr.mxu0 0.0
    %149 = vmatpush1.msra.mxu0 0.0
    %150 = vmatprep.subr.mxu0 0.0
    %151 = vmatpush1.msra.mxu0 0.0
    %152 = vmatprep.subr.mxu0 0.0
    %153 = vmatpush1.msra.mxu0 0.0
    %154 = vmatprep.subr.mxu0 0.0
    %155 = vmatpush1.msra.mxu0 0.0
    %156 = vmatprep.subr.mxu0 0.0
    %157 = vmatpush1.msra.mxu0 0.0
    %158 = vmatprep.subr.mxu0 0.0
    %159 = vmatpush1.msra.mxu0 0.0
    %160 = vmatprep.subr.mxu0 0.0
    %161 = vmatpush1.msra.mxu0 0.0
    %162 = vmatprep.subr.mxu0 0.0
    %163 = vmatpush1.msra.mxu0 0.0
    %164 = vmatprep.subr.mxu0 0.0
    %165 = vmatpush1.msra.mxu0 0.0
    %166 = vmatprep.subr.mxu0 0.0
    %167 = vmatpush1.msra.mxu0 0.0
    %168 = vmatprep.subr.mxu0 0.0
    %169 = vmatpush1.msra.mxu0 0.0
    %170 = vmatprep.subr.mxu0 0.0
    %171 = vmatpush1.msra.mxu0 0.0
    %172 = vmatprep.subr.mxu0 0.0
    %173 = vmatpush1.msra.mxu0 0.0
    %174 = vmatprep.subr.mxu0 0.0
    %175 = vmatpush1.msra.mxu0 0.0
    %176 = vmatprep.subr.mxu0 0.0
    %177 = vmatpush1.msra.mxu0 0.0
    %178 = vmatprep.subr.mxu0 0.0
    %179 = vmatpush1.msra.mxu0 0.0
    %180 = vmatprep.subr.mxu0 0.0
    %181 = vmatpush1.msra.mxu0 0.0
    %182 = vmatprep.mubr.f32.mxu0 0.0
    %183 = vmatmul.mubr.f32.gmra.mrb[0].mxu0 %v113
    %v184 = vpop.f32.mrb[0].mxu0
    %v185 = vadd.f32 %v110, %v184
    %v186 = vpop.f32.mrb[0].mxu0
    %187 = vmatprep.mubr.f32.mxu0 0.0
    %188 = vmatmul.mubr.f32.gmra.mrb[0].mxu0 %v116
    %v189 = vpop.f32.mrb[0].mxu0
    %v190 = vadd.f32 %v110, %v189
    %v191 = vpop.f32.mrb[0].mxu0
    %192 = vdwg.mxu0
    %195 = vrot.lane.b32.xlu0 %v185, 120
    %v196 = vpop.permute.xlu0 %195
    %197 = vrot.lane.b32.xlu0 %v190, 120
    %v198 = vpop.permute.xlu0 %197
    %199 = vrot.lane.b32.xlu0 %v185, 112
    %v200 = vpop.permute.xlu0 %199
    %201 = vrot.lane.b32.xlu0 %v190, 112
    %v202 = vpop.permute.xlu0 %201
    %203 = vrot.lane.b32.xlu0 %v185, 104
    %v204 = vpop.permute.xlu0 %203
    %205 = vrot.lane.b32.xlu0 %v190, 104
    %v206 = vpop.permute.xlu0 %205
    %207 = vrot.lane.b32.xlu0 %v185, 96
    %v208 = vpop.permute.xlu0 %207
    %vm209 = vcmask 64512
    %v210 = vsel %vm209, %v185, 0
    %v212 = vsel %vm209, %v208, 0
    %214 = vmatprep.subr.mxu0 0.0
    %215 = vmatpush1.xpose.msra.mxu0 %v212
    %216 = vmatprep.subr.mxu0 0.0
    %217 = vmatpush1.xpose.msra.mxu0 0.0
    %218 = vmatprep.subr.mxu0 0.0
    %219 = vmatpush1.xpose.msra.mxu0 0.0
    %220 = vmatprep.subr.mxu0 0.0
    %221 = vmatpush1.xpose.msra.mxu0 0.0
    %222 = vmatprep.subr.mxu0 0.0
    %223 = vmatpush1.xpose.msra.mxu0 0.0
    %224 = vmatprep.subr.mxu0 0.0
    %225 = vmatpush1.xpose.msra.mxu0 0.0
    %226 = vmatprep.subr.mxu0 0.0
    %227 = vmatpush1.xpose.msra.mxu0 0.0
    %228 = vmatprep.subr.mxu0 0.0
    %229 = vmatpush1.xpose.msra.mxu0 0.0
    %230 = vmatprep.subr.mxu0 0.0
    %231 = vmatpush1.xpose.msra.mxu0 0.0
    %232 = vmatprep.subr.mxu0 0.0
    %233 = vmatpush1.xpose.msra.mxu0 0.0
    %234 = vmatprep.subr.mxu0 0.0
    %235 = vmatpush1.xpose.msra.mxu0 0.0
    %236 = vmatprep.subr.mxu0 0.0
    %237 = vmatpush1.xpose.msra.mxu0 0.0
    %238 = vmatprep.subr.mxu0 0.0
    %239 = vmatpush1.xpose.msra.mxu0 0.0
    %240 = vmatprep.subr.mxu0 0.0
    %241 = vmatpush1.xpose.msra.mxu0 0.0
    %242 = vmatprep.subr.mxu0 0.0
    %243 = vmatpush1.xpose.msra.mxu0 0.0
    %244 = vmatprep.subr.mxu0 0.0
    %245 = vmatpush1.xpose.msra.mxu0 0.0
    %246 = vmatprep.subr.mxu0 0.0
    %247 = vmatpush1.xpose.msra.mxu0 0.0
    %248 = vmatprep.subr.mxu0 0.0
    %249 = vmatpush1.xpose.msra.mxu0 0.0
    %250 = vmatprep.subr.mxu0 0.0
    %251 = vmatpush1.xpose.msra.mxu0 0.0
    %252 = vmatprep.subr.mxu0 0.0
    %253 = vmatpush1.xpose.msra.mxu0 0.0
    %254 = vmatprep.subr.mxu0 0.0
    %255 = vmatpush1.xpose.msra.mxu0 0.0
    %256 = vmatprep.subr.mxu0 0.0
    %257 = vmatpush1.xpose.msra.mxu0 0.0
    %258 = vmatprep.subr.mxu0 0.0
    %259 = vmatpush1.xpose.msra.mxu0 0.0
    %260 = vmatprep.subr.mxu0 0.0
    %261 = vmatpush1.xpose.msra.mxu0 0.0
    %262 = vmatprep.subr.mxu0 0.0
    %263 = vmatpush1.xpose.msra.mxu0 0.0
    %264 = vmatprep.subr.mxu0 0.0
    %265 = vmatpush1.xpose.msra.mxu0 0.0
    %266 = vmatprep.subr.mxu0 0.0
    %267 = vmatpush1.xpose.msra.mxu0 0.0
    %268 = vmatprep.subr.mxu0 0.0
    %269 = vmatpush1.xpose.msra.mxu0 0.0
    %270 = vmatprep.subr.mxu0 0.0
    %271 = vmatpush1.xpose.msra.mxu0 0.0
    %272 = vmatprep.subr.mxu0 0.0
    %273 = vmatpush1.xpose.msra.mxu0 0.0
    %274 = vmatprep.subr.mxu0 0.0
    %275 = vmatpush1.xpose.msra.mxu0 0.0
    %276 = vmatprep.subr.mxu0 0.0
    %277 = vmatpush1.xpose.msra.mxu0 0.0
    %278 = vmatprep.mubr.f32.mxu0 0.0
    %279 = vmatmul.mubr.f32.gmra.mrb[0].mxu0 %v210
    %v280 = vpop.f32.mrb[0].mxu0
    %v281 = vadd.f32 0.0, %v280
    %v282 = vpop.f32.mrb[0].mxu0
    %283 = vdwg.mxu0
    %284 = vrot.lane.b32.xlu0 %v190, 96
    %v285 = vpop.permute.xlu0 %284
    %v286 = vsel %vm209, %v190, 0
    %v288 = vsel %vm209, %v285, 0
    %290 = vmatprep.subr.mxu0 0.0
    %291 = vmatpush1.xpose.msra.mxu0 %v288
    %292 = vmatprep.subr.mxu0 0.0
    %293 = vmatpush1.xpose.msra.mxu0 0.0
    %294 = vmatprep.subr.mxu0 0.0
    %295 = vmatpush1.xpose.msra.mxu0 0.0
    %296 = vmatprep.subr.mxu0 0.0
    %297 = vmatpush1.xpose.msra.mxu0 0.0
    %298 = vmatprep.subr.mxu0 0.0
    %299 = vmatpush1.xpose.msra.mxu0 0.0
    %300 = vmatprep.subr.mxu0 0.0
    %301 = vmatpush1.xpose.msra.mxu0 0.0
    %302 = vmatprep.subr.mxu0 0.0
    %303 = vmatpush1.xpose.msra.mxu0 0.0
    %304 = vmatprep.subr.mxu0 0.0
    %305 = vmatpush1.xpose.msra.mxu0 0.0
    %306 = vmatprep.subr.mxu0 0.0
    %307 = vmatpush1.xpose.msra.mxu0 0.0
    %308 = vmatprep.subr.mxu0 0.0
    %309 = vmatpush1.xpose.msra.mxu0 0.0
    %310 = vmatprep.subr.mxu0 0.0
    %311 = vmatpush1.xpose.msra.mxu0 0.0
    %312 = vmatprep.subr.mxu0 0.0
    %313 = vmatpush1.xpose.msra.mxu0 0.0
    %314 = vmatprep.subr.mxu0 0.0
    %315 = vmatpush1.xpose.msra.mxu0 0.0
    %316 = vmatprep.subr.mxu0 0.0
    %317 = vmatpush1.xpose.msra.mxu0 0.0
    %318 = vmatprep.subr.mxu0 0.0
    %319 = vmatpush1.xpose.msra.mxu0 0.0
    %320 = vmatprep.subr.mxu0 0.0
    %321 = vmatpush1.xpose.msra.mxu0 0.0
    %322 = vmatprep.subr.mxu0 0.0
    %323 = vmatpush1.xpose.msra.mxu0 0.0
    %324 = vmatprep.subr.mxu0 0.0
    %325 = vmatpush1.xpose.msra.mxu0 0.0
    %326 = vmatprep.subr.mxu0 0.0
    %327 = vmatpush1.xpose.msra.mxu0 0.0
    %328 = vmatprep.subr.mxu0 0.0
    %329 = vmatpush1.xpose.msra.mxu0 0.0
    %330 = vmatprep.subr.mxu0 0.0
    %331 = vmatpush1.xpose.msra.mxu0 0.0
    %332 = vmatprep.subr.mxu0 0.0
    %333 = vmatpush1.xpose.msra.mxu0 0.0
    %334 = vmatprep.subr.mxu0 0.0
    %335 = vmatpush1.xpose.msra.mxu0 0.0
    %336 = vmatprep.subr.mxu0 0.0
    %337 = vmatpush1.xpose.msra.mxu0 0.0
    %338 = vmatprep.subr.mxu0 0.0
    %339 = vmatpush1.xpose.msra.mxu0 0.0
    %340 = vmatprep.subr.mxu0 0.0
    %341 = vmatpush1.xpose.msra.mxu0 0.0
    %342 = vmatprep.subr.mxu0 0.0
    %343 = vmatpush1.xpose.msra.mxu0 0.0
    %344 = vmatprep.subr.mxu0 0.0
    %345 = vmatpush1.xpose.msra.mxu0 0.0
    %346 = vmatprep.subr.mxu0 0.0
    %347 = vmatpush1.xpose.msra.mxu0 0.0
    %348 = vmatprep.subr.mxu0 0.0
    %349 = vmatpush1.xpose.msra.mxu0 0.0
    %350 = vmatprep.subr.mxu0 0.0
    %351 = vmatpush1.xpose.msra.mxu0 0.0
    %352 = vmatprep.subr.mxu0 0.0
    %353 = vmatpush1.xpose.msra.mxu0 0.0
    %354 = vmatprep.mubr.f32.mxu0 0.0
    %355 = vmatmul.mubr.f32.gmra.mrb[0].mxu0 %v286
    %v356 = vpop.f32.mrb[0].mxu0
    %v357 = vadd.f32 0.0, %v356
    %v358 = vpop.f32.mrb[0].mxu0
    %359 = vdwg.mxu0
    %360 = vrot.lane.b32.xlu0 %v196, 96
    %v361 = vpop.permute.xlu0 %360
    %v362 = vsel %vm209, %v196, 0
    %v364 = vsel %vm209, %v361, 0
    %366 = vmatprep.subr.mxu0 0.0
    %367 = vmatpush1.xpose.msra.mxu0 %v364
    %368 = vmatprep.subr.mxu0 0.0
    %369 = vmatpush1.xpose.msra.mxu0 0.0
    %370 = vmatprep.subr.mxu0 0.0
    %371 = vmatpush1.xpose.msra.mxu0 0.0
    %372 = vmatprep.subr.mxu0 0.0
    %373 = vmatpush1.xpose.msra.mxu0 0.0
    %374 = vmatprep.subr.mxu0 0.0
    %375 = vmatpush1.xpose.msra.mxu0 0.0
    %376 = vmatprep.subr.mxu0 0.0
    %377 = vmatpush1.xpose.msra.mxu0 0.0
    %378 = vmatprep.subr.mxu0 0.0
    %379 = vmatpush1.xpose.msra.mxu0 0.0
    %380 = vmatprep.subr.mxu0 0.0
    %381 = vmatpush1.xpose.msra.mxu0 0.0
    %382 = vmatprep.subr.mxu0 0.0
    %383 = vmatpush1.xpose.msra.mxu0 0.0
    %384 = vmatprep.subr.mxu0 0.0
    %385 = vmatpush1.xpose.msra.mxu0 0.0
    %386 = vmatprep.subr.mxu0 0.0
    %387 = vmatpush1.xpose.msra.mxu0 0.0
    %388 = vmatprep.subr.mxu0 0.0
    %389 = vmatpush1.xpose.msra.mxu0 0.0
    %390 = vmatprep.subr.mxu0 0.0
    %391 = vmatpush1.xpose.msra.mxu0 0.0
    %392 = vmatprep.subr.mxu0 0.0
    %393 = vmatpush1.xpose.msra.mxu0 0.0
    %394 = vmatprep.subr.mxu0 0.0
    %395 = vmatpush1.xpose.msra.mxu0 0.0
    %396 = vmatprep.subr.mxu0 0.0
    %397 = vmatpush1.xpose.msra.mxu0 0.0
    %398 = vmatprep.subr.mxu0 0.0
    %399 = vmatpush1.xpose.msra.mxu0 0.0
    %400 = vmatprep.subr.mxu0 0.0
    %401 = vmatpush1.xpose.msra.mxu0 0.0
    %402 = vmatprep.subr.mxu0 0.0
    %403 = vmatpush1.xpose.msra.mxu0 0.0
    %404 = vmatprep.subr.mxu0 0.0
    %405 = vmatpush1.xpose.msra.mxu0 0.0
    %406 = vmatprep.subr.mxu0 0.0
    %407 = vmatpush1.xpose.msra.mxu0 0.0
    %408 = vmatprep.subr.mxu0 0.0
    %409 = vmatpush1.xpose.msra.mxu0 0.0
    %410 = vmatprep.subr.mxu0 0.0
    %411 = vmatpush1.xpose.msra.mxu0 0.0
    %412 = vmatprep.subr.mxu0 0.0
    %413 = vmatpush1.xpose.msra.mxu0 0.0
    %414 = vmatprep.subr.mxu0 0.0
    %415 = vmatpush1.xpose.msra.mxu0 0.0
    %416 = vmatprep.subr.mxu0 0.0
    %417 = vmatpush1.xpose.msra.mxu0 0.0
    %418 = vmatprep.subr.mxu0 0.0
    %419 = vmatpush1.xpose.msra.mxu0 0.0
    %420 = vmatprep.subr.mxu0 0.0
    %421 = vmatpush1.xpose.msra.mxu0 0.0
    %422 = vmatprep.subr.mxu0 0.0
    %423 = vmatpush1.xpose.msra.mxu0 0.0
    %424 = vmatprep.subr.mxu0 0.0
    %425 = vmatpush1.xpose.msra.mxu0 0.0
    %426 = vmatprep.subr.mxu0 0.0
    %427 = vmatpush1.xpose.msra.mxu0 0.0
    %428 = vmatprep.subr.mxu0 0.0
    %429 = vmatpush1.xpose.msra.mxu0 0.0
    %430 = vmatprep.mubr.f32.mxu0 0.0
    %431 = vmatmul.mubr.f32.gmra.mrb[0].mxu0 %v362
    %v432 = vpop.f32.mrb[0].mxu0
    %v433 = vadd.f32 0.0, %v432
    %v434 = vpop.f32.mrb[0].mxu0
    %435 = vdwg.mxu0
    %436 = vrot.lane.b32.xlu0 %v198, 96
    %v437 = vpop.permute.xlu0 %436
    %v438 = vsel %vm209, %v198, 0
    %v440 = vsel %vm209, %v437, 0
    %442 = vmatprep.subr.mxu0 0.0
    %443 = vmatpush1.xpose.msra.mxu0 %v440
    %444 = vmatprep.subr.mxu0 0.0
    %445 = vmatpush1.xpose.msra.mxu0 0.0
    %446 = vmatprep.subr.mxu0 0.0
    %447 = vmatpush1.xpose.msra.mxu0 0.0
    %448 = vmatprep.subr.mxu0 0.0
    %449 = vmatpush1.xpose.msra.mxu0 0.0
    %450 = vmatprep.subr.mxu0 0.0
    %451 = vmatpush1.xpose.msra.mxu0 0.0
    %452 = vmatprep.subr.mxu0 0.0
    %453 = vmatpush1.xpose.msra.mxu0 0.0
    %454 = vmatprep.subr.mxu0 0.0
    %455 = vmatpush1.xpose.msra.mxu0 0.0
    %456 = vmatprep.subr.mxu0 0.0
    %457 = vmatpush1.xpose.msra.mxu0 0.0
    %458 = vmatprep.subr.mxu0 0.0
    %459 = vmatpush1.xpose.msra.mxu0 0.0
    %460 = vmatprep.subr.mxu0 0.0
    %461 = vmatpush1.xpose.msra.mxu0 0.0
    %462 = vmatprep.subr.mxu0 0.0
    %463 = vmatpush1.xpose.msra.mxu0 0.0
    %464 = vmatprep.subr.mxu0 0.0
    %465 = vmatpush1.xpose.msra.mxu0 0.0
    %466 = vmatprep.subr.mxu0 0.0
    %467 = vmatpush1.xpose.msra.mxu0 0.0
    %468 = vmatprep.subr.mxu0 0.0
    %469 = vmatpush1.xpose.msra.mxu0 0.0
    %470 = vmatprep.subr.mxu0 0.0
    %471 = vmatpush1.xpose.msra.mxu0 0.0
    %472 = vmatprep.subr.mxu0 0.0
    %473 = vmatpush1.xpose.msra.mxu0 0.0
    %474 = vmatprep.subr.mxu0 0.0
    %475 = vmatpush1.xpose.msra.mxu0 0.0
    %476 = vmatprep.subr.mxu0 0.0
    %477 = vmatpush1.xpose.msra.mxu0 0.0
    %478 = vmatprep.subr.mxu0 0.0
    %479 = vmatpush1.xpose.msra.mxu0 0.0
    %480 = vmatprep.subr.mxu0 0.0
    %481 = vmatpush1.xpose.msra.mxu0 0.0
    %482 = vmatprep.subr.mxu0 0.0
    %483 = vmatpush1.xpose.msra.mxu0 0.0
    %484 = vmatprep.subr.mxu0 0.0
    %485 = vmatpush1.xpose.msra.mxu0 0.0
    %486 = vmatprep.subr.mxu0 0.0
    %487 = vmatpush1.xpose.msra.mxu0 0.0
    %488 = vmatprep.subr.mxu0 0.0
    %489 = vmatpush1.xpose.msra.mxu0 0.0
    %490 = vmatprep.subr.mxu0 0.0
    %491 = vmatpush1.xpose.msra.mxu0 0.0
    %492 = vmatprep.subr.mxu0 0.0
    %493 = vmatpush1.xpose.msra.mxu0 0.0
    %494 = vmatprep.subr.mxu0 0.0
    %495 = vmatpush1.xpose.msra.mxu0 0.0
    %496 = vmatprep.subr.mxu0 0.0
    %497 = vmatpush1.xpose.msra.mxu0 0.0
    %498 = vmatprep.subr.mxu0 0.0
    %499 = vmatpush1.xpose.msra.mxu0 0.0
    %500 = vmatprep.subr.mxu0 0.0
    %501 = vmatpush1.xpose.msra.mxu0 0.0
    %502 = vmatprep.subr.mxu0 0.0
    %503 = vmatpush1.xpose.msra.mxu0 0.0
    %504 = vmatprep.subr.mxu0 0.0
    %505 = vmatpush1.xpose.msra.mxu0 0.0
    %506 = vmatprep.mubr.f32.mxu0 0.0
    %507 = vmatmul.mubr.f32.gmra.mrb[0].mxu0 %v438
    %v508 = vpop.f32.mrb[0].mxu0
    %v509 = vadd.f32 0.0, %v508
    %v510 = vpop.f32.mrb[0].mxu0
    %511 = vdwg.mxu0
    %512 = vrot.lane.b32.xlu0 %v200, 96
    %v513 = vpop.permute.xlu0 %512
    %v514 = vsel %vm209, %v200, 0
    %v516 = vsel %vm209, %v513, 0
    %518 = vmatprep.subr.mxu0 0.0
    %519 = vmatpush1.xpose.msra.mxu0 %v516
    %520 = vmatprep.subr.mxu0 0.0
    %521 = vmatpush1.xpose.msra.mxu0 0.0
    %522 = vmatprep.subr.mxu0 0.0
    %523 = vmatpush1.xpose.msra.mxu0 0.0
    %524 = vmatprep.subr.mxu0 0.0
    %525 = vmatpush1.xpose.msra.mxu0 0.0
    %526 = vmatprep.subr.mxu0 0.0
    %527 = vmatpush1.xpose.msra.mxu0 0.0
    %528 = vmatprep.subr.mxu0 0.0
    %529 = vmatpush1.xpose.msra.mxu0 0.0
    %530 = vmatprep.subr.mxu0 0.0
    %531 = vmatpush1.xpose.msra.mxu0 0.0
    %532 = vmatprep.subr.mxu0 0.0
    %533 = vmatpush1.xpose.msra.mxu0 0.0
    %534 = vmatprep.subr.mxu0 0.0
    %535 = vmatpush1.xpose.msra.mxu0 0.0
    %536 = vmatprep.subr.mxu0 0.0
    %537 = vmatpush1.xpose.msra.mxu0 0.0
    %538 = vmatprep.subr.mxu0 0.0
    %539 = vmatpush1.xpose.msra.mxu0 0.0
    %540 = vmatprep.subr.mxu0 0.0
    %541 = vmatpush1.xpose.msra.mxu0 0.0
    %542 = vmatprep.subr.mxu0 0.0
    %543 = vmatpush1.xpose.msra.mxu0 0.0
    %544 = vmatprep.subr.mxu0 0.0
    %545 = vmatpush1.xpose.msra.mxu0 0.0
    %546 = vmatprep.subr.mxu0 0.0
    %547 = vmatpush1.xpose.msra.mxu0 0.0
    %548 = vmatprep.subr.mxu0 0.0
    %549 = vmatpush1.xpose.msra.mxu0 0.0
    %550 = vmatprep.subr.mxu0 0.0
    %551 = vmatpush1.xpose.msra.mxu0 0.0
    %552 = vmatprep.subr.mxu0 0.0
    %553 = vmatpush1.xpose.msra.mxu0 0.0
    %554 = vmatprep.subr.mxu0 0.0
    %555 = vmatpush1.xpose.msra.mxu0 0.0
    %556 = vmatprep.subr.mxu0 0.0
    %557 = vmatpush1.xpose.msra.mxu0 0.0
    %558 = vmatprep.subr.mxu0 0.0
    %559 = vmatpush1.xpose.msra.mxu0 0.0
    %560 = vmatprep.subr.mxu0 0.0
    %561 = vmatpush1.xpose.msra.mxu0 0.0
    %562 = vmatprep.subr.mxu0 0.0
    %563 = vmatpush1.xpose.msra.mxu0 0.0
    %564 = vmatprep.subr.mxu0 0.0
    %565 = vmatpush1.xpose.msra.mxu0 0.0
    %566 = vmatprep.subr.mxu0 0.0
    %567 = vmatpush1.xpose.msra.mxu0 0.0
    %568 = vmatprep.subr.mxu0 0.0
    %569 = vmatpush1.xpose.msra.mxu0 0.0
    %570 = vmatprep.subr.mxu0 0.0
    %571 = vmatpush1.xpose.msra.mxu0 0.0
    %572 = vmatprep.subr.mxu0 0.0
    %573 = vmatpush1.xpose.msra.mxu0 0.0
    %574 = vmatprep.subr.mxu0 0.0
    %575 = vmatpush1.xpose.msra.mxu0 0.0
    %576 = vmatprep.subr.mxu0 0.0
    %577 = vmatpush1.xpose.msra.mxu0 0.0
    %578 = vmatprep.subr.mxu0 0.0
    %579 = vmatpush1.xpose.msra.mxu0 0.0
    %580 = vmatprep.subr.mxu0 0.0
    %581 = vmatpush1.xpose.msra.mxu0 0.0
    %582 = vmatprep.mubr.f32.mxu0 0.0
    %583 = vmatmul.mubr.f32.gmra.mrb[0].mxu0 %v514
    %v584 = vpop.f32.mrb[0].mxu0
    %v585 = vadd.f32 0.0, %v584
    %v586 = vpop.f32.mrb[0].mxu0
    %587 = vdwg.mxu0
    %588 = vrot.lane.b32.xlu0 %v202, 96
    %v589 = vpop.permute.xlu0 %588
    %v590 = vsel %vm209, %v202, 0
    %v592 = vsel %vm209, %v589, 0
    %594 = vmatprep.subr.mxu0 0.0
    %595 = vmatpush1.xpose.msra.mxu0 %v592
    %596 = vmatprep.subr.mxu0 0.0
    %597 = vmatpush1.xpose.msra.mxu0 0.0
    %598 = vmatprep.subr.mxu0 0.0
    %599 = vmatpush1.xpose.msra.mxu0 0.0
    %600 = vmatprep.subr.mxu0 0.0
    %601 = vmatpush1.xpose.msra.mxu0 0.0
    %602 = vmatprep.subr.mxu0 0.0
    %603 = vmatpush1.xpose.msra.mxu0 0.0
    %604 = vmatprep.subr.mxu0 0.0
    %605 = vmatpush1.xpose.msra.mxu0 0.0
    %606 = vmatprep.subr.mxu0 0.0
    %607 = vmatpush1.xpose.msra.mxu0 0.0
    %608 = vmatprep.subr.mxu0 0.0
    %609 = vmatpush1.xpose.msra.mxu0 0.0
    %610 = vmatprep.subr.mxu0 0.0
    %611 = vmatpush1.xpose.msra.mxu0 0.0
    %612 = vmatprep.subr.mxu0 0.0
    %613 = vmatpush1.xpose.msra.mxu0 0.0
    %614 = vmatprep.subr.mxu0 0.0
    %615 = vmatpush1.xpose.msra.mxu0 0.0
    %616 = vmatprep.subr.mxu0 0.0
    %617 = vmatpush1.xpose.msra.mxu0 0.0
    %618 = vmatprep.subr.mxu0 0.0
    %619 = vmatpush1.xpose.msra.mxu0 0.0
    %620 = vmatprep.subr.mxu0 0.0
    %621 = vmatpush1.xpose.msra.mxu0 0.0
    %622 = vmatprep.subr.mxu0 0.0
    %623 = vmatpush1.xpose.msra.mxu0 0.0
    %624 = vmatprep.subr.mxu0 0.0
    %625 = vmatpush1.xpose.msra.mxu0 0.0
    %626 = vmatprep.subr.mxu0 0.0
    %627 = vmatpush1.xpose.msra.mxu0 0.0
    %628 = vmatprep.subr.mxu0 0.0
    %629 = vmatpush1.xpose.msra.mxu0 0.0
    %630 = vmatprep.subr.mxu0 0.0
    %631 = vmatpush1.xpose.msra.mxu0 0.0
    %632 = vmatprep.subr.mxu0 0.0
    %633 = vmatpush1.xpose.msra.mxu0 0.0
    %634 = vmatprep.subr.mxu0 0.0
    %635 = vmatpush1.xpose.msra.mxu0 0.0
    %636 = vmatprep.subr.mxu0 0.0
    %637 = vmatpush1.xpose.msra.mxu0 0.0
    %638 = vmatprep.subr.mxu0 0.0
    %639 = vmatpush1.xpose.msra.mxu0 0.0
    %640 = vmatprep.subr.mxu0 0.0
    %641 = vmatpush1.xpose.msra.mxu0 0.0
    %642 = vmatprep.subr.mxu0 0.0
    %643 = vmatpush1.xpose.msra.mxu0 0.0
    %644 = vmatprep.subr.mxu0 0.0
    %645 = vmatpush1.xpose.msra.mxu0 0.0
    %646 = vmatprep.subr.mxu0 0.0
    %647 = vmatpush1.xpose.msra.mxu0 0.0
    %648 = vmatprep.subr.mxu0 0.0
    %649 = vmatpush1.xpose.msra.mxu0 0.0
    %650 = vmatprep.subr.mxu0 0.0
    %651 = vmatpush1.xpose.msra.mxu0 0.0
    %652 = vmatprep.subr.mxu0 0.0
    %653 = vmatpush1.xpose.msra.mxu0 0.0
    %654 = vmatprep.subr.mxu0 0.0
    %655 = vmatpush1.xpose.msra.mxu0 0.0
    %656 = vmatprep.subr.mxu0 0.0
    %657 = vmatpush1.xpose.msra.mxu0 0.0
    %658 = vmatprep.mubr.f32.mxu0 0.0
    %659 = vmatmul.mubr.f32.gmra.mrb[0].mxu0 %v590
    %v660 = vpop.f32.mrb[0].mxu0
    %v661 = vadd.f32 0.0, %v660
    %v662 = vpop.f32.mrb[0].mxu0
    %663 = vdwg.mxu0
    %664 = vrot.lane.b32.xlu0 %v204, 96
    %v665 = vpop.permute.xlu0 %664
    %v666 = vsel %vm209, %v204, 0
    %v668 = vsel %vm209, %v665, 0
    %670 = vmatprep.subr.mxu0 0.0
    %671 = vmatpush1.xpose.msra.mxu0 %v668
    %672 = vmatprep.subr.mxu0 0.0
    %673 = vmatpush1.xpose.msra.mxu0 0.0
    %674 = vmatprep.subr.mxu0 0.0
    %675 = vmatpush1.xpose.msra.mxu0 0.0
    %676 = vmatprep.subr.mxu0 0.0
    %677 = vmatpush1.xpose.msra.mxu0 0.0
    %678 = vmatprep.subr.mxu0 0.0
    %679 = vmatpush1.xpose.msra.mxu0 0.0
    %680 = vmatprep.subr.mxu0 0.0
    %681 = vmatpush1.xpose.msra.mxu0 0.0
    %682 = vmatprep.subr.mxu0 0.0
    %683 = vmatpush1.xpose.msra.mxu0 0.0
    %684 = vmatprep.subr.mxu0 0.0
    %685 = vmatpush1.xpose.msra.mxu0 0.0
    %686 = vmatprep.subr.mxu0 0.0
    %687 = vmatpush1.xpose.msra.mxu0 0.0
    %688 = vmatprep.subr.mxu0 0.0
    %689 = vmatpush1.xpose.msra.mxu0 0.0
    %690 = vmatprep.subr.mxu0 0.0
    %691 = vmatpush1.xpose.msra.mxu0 0.0
    %692 = vmatprep.subr.mxu0 0.0
    %693 = vmatpush1.xpose.msra.mxu0 0.0
    %694 = vmatprep.subr.mxu0 0.0
    %695 = vmatpush1.xpose.msra.mxu0 0.0
    %696 = vmatprep.subr.mxu0 0.0
    %697 = vmatpush1.xpose.msra.mxu0 0.0
    %698 = vmatprep.subr.mxu0 0.0
    %699 = vmatpush1.xpose.msra.mxu0 0.0
    %700 = vmatprep.subr.mxu0 0.0
    %701 = vmatpush1.xpose.msra.mxu0 0.0
    %702 = vmatprep.subr.mxu0 0.0
    %703 = vmatpush1.xpose.msra.mxu0 0.0
    %704 = vmatprep.subr.mxu0 0.0
    %705 = vmatpush1.xpose.msra.mxu0 0.0
    %706 = vmatprep.subr.mxu0 0.0
    %707 = vmatpush1.xpose.msra.mxu0 0.0
    %708 = vmatprep.subr.mxu0 0.0
    %709 = vmatpush1.xpose.msra.mxu0 0.0
    %710 = vmatprep.subr.mxu0 0.0
    %711 = vmatpush1.xpose.msra.mxu0 0.0
    %712 = vmatprep.subr.mxu0 0.0
    %713 = vmatpush1.xpose.msra.mxu0 0.0
    %714 = vmatprep.subr.mxu0 0.0
    %715 = vmatpush1.xpose.msra.mxu0 0.0
    %716 = vmatprep.subr.mxu0 0.0
    %717 = vmatpush1.xpose.msra.mxu0 0.0
    %718 = vmatprep.subr.mxu0 0.0
    %719 = vmatpush1.xpose.msra.mxu0 0.0
    %720 = vmatprep.subr.mxu0 0.0
    %721 = vmatpush1.xpose.msra.mxu0 0.0
    %722 = vmatprep.subr.mxu0 0.0
    %723 = vmatpush1.xpose.msra.mxu0 0.0
    %724 = vmatprep.subr.mxu0 0.0
    %725 = vmatpush1.xpose.msra.mxu0 0.0
    %726 = vmatprep.subr.mxu0 0.0
    %727 = vmatpush1.xpose.msra.mxu0 0.0
    %728 = vmatprep.subr.mxu0 0.0
    %729 = vmatpush1.xpose.msra.mxu0 0.0
    %730 = vmatprep.subr.mxu0 0.0
    %731 = vmatpush1.xpose.msra.mxu0 0.0
    %732 = vmatprep.subr.mxu0 0.0
    %733 = vmatpush1.xpose.msra.mxu0 0.0
    %734 = vmatprep.mubr.f32.mxu0 0.0
    %735 = vmatmul.mubr.f32.gmra.mrb[0].mxu0 %v666
    %v736 = vpop.f32.mrb[0].mxu0
    %v737 = vadd.f32 0.0, %v736
    %v738 = vpop.f32.mrb[0].mxu0
    %739 = vdwg.mxu0
    %740 = vrot.lane.b32.xlu0 %v206, 96
    %v741 = vpop.permute.xlu0 %740
    %v742 = vsel %vm209, %v206, 0
    %v744 = vsel %vm209, %v741, 0
    %746 = vmatprep.subr.mxu0 0.0
    %747 = vmatpush1.xpose.msra.mxu0 %v744
    %748 = vmatprep.subr.mxu0 0.0
    %749 = vmatpush1.xpose.msra.mxu0 0.0
    %750 = vmatprep.subr.mxu0 0.0
    %751 = vmatpush1.xpose.msra.mxu0 0.0
    %752 = vmatprep.subr.mxu0 0.0
    %753 = vmatpush1.xpose.msra.mxu0 0.0
    %754 = vmatprep.subr.mxu0 0.0
    %755 = vmatpush1.xpose.msra.mxu0 0.0
    %756 = vmatprep.subr.mxu0 0.0
    %757 = vmatpush1.xpose.msra.mxu0 0.0
    %758 = vmatprep.subr.mxu0 0.0
    %759 = vmatpush1.xpose.msra.mxu0 0.0
    %760 = vmatprep.subr.mxu0 0.0
    %761 = vmatpush1.xpose.msra.mxu0 0.0
    %762 = vmatprep.subr.mxu0 0.0
    %763 = vmatpush1.xpose.msra.mxu0 0.0
    %764 = vmatprep.subr.mxu0 0.0
    %765 = vmatpush1.xpose.msra.mxu0 0.0
    %766 = vmatprep.subr.mxu0 0.0
    %767 = vmatpush1.xpose.msra.mxu0 0.0
    %768 = vmatprep.subr.mxu0 0.0
    %769 = vmatpush1.xpose.msra.mxu0 0.0
    %770 = vmatprep.subr.mxu0 0.0
    %771 = vmatpush1.xpose.msra.mxu0 0.0
    %772 = vmatprep.subr.mxu0 0.0
    %773 = vmatpush1.xpose.msra.mxu0 0.0
    %774 = vmatprep.subr.mxu0 0.0
    %775 = vmatpush1.xpose.msra.mxu0 0.0
    %776 = vmatprep.subr.mxu0 0.0
    %777 = vmatpush1.xpose.msra.mxu0 0.0
    %778 = vmatprep.subr.mxu0 0.0
    %779 = vmatpush1.xpose.msra.mxu0 0.0
    %780 = vmatprep.subr.mxu0 0.0
    %781 = vmatpush1.xpose.msra.mxu0 0.0
    %782 = vmatprep.subr.mxu0 0.0
    %783 = vmatpush1.xpose.msra.mxu0 0.0
    %784 = vmatprep.subr.mxu0 0.0
    %785 = vmatpush1.xpose.msra.mxu0 0.0
    %786 = vmatprep.subr.mxu0 0.0
    %787 = vmatpush1.xpose.msra.mxu0 0.0
    %788 = vmatprep.subr.mxu0 0.0
    %789 = vmatpush1.xpose.msra.mxu0 0.0
    %790 = vmatprep.subr.mxu0 0.0
    %791 = vmatpush1.xpose.msra.mxu0 0.0
    %792 = vmatprep.subr.mxu0 0.0
    %793 = vmatpush1.xpose.msra.mxu0 0.0
    %794 = vmatprep.subr.mxu0 0.0
    %795 = vmatpush1.xpose.msra.mxu0 0.0
    %796 = vmatprep.subr.mxu0 0.0
    %797 = vmatpush1.xpose.msra.mxu0 0.0
    %798 = vmatprep.subr.mxu0 0.0
    %799 = vmatpush1.xpose.msra.mxu0 0.0
    %800 = vmatprep.subr.mxu0 0.0
    %801 = vmatpush1.xpose.msra.mxu0 0.0
    %802 = vmatprep.subr.mxu0 0.0
    %803 = vmatpush1.xpose.msra.mxu0 0.0
    %804 = vmatprep.subr.mxu0 0.0
    %805 = vmatpush1.xpose.msra.mxu0 0.0
    %806 = vmatprep.subr.mxu0 0.0
    %807 = vmatpush1.xpose.msra.mxu0 0.0
    %808 = vmatprep.subr.mxu0 0.0
    %809 = vmatpush1.xpose.msra.mxu0 0.0
    %810 = vmatprep.mubr.f32.mxu0 0.0
    %811 = vmatmul.mubr.f32.gmra.mrb[0].mxu0 %v742
    %v812 = vpop.f32.mrb[0].mxu0
    %v813 = vadd.f32 0.0, %v812
    %v814 = vpop.f32.mrb[0].mxu0
    %815 = vdwg.mxu0
    %v816 = vsel %vm54, 1, 0
    %vm817 = vcmp.eq.s32.totalorder %v816, 1
    %v818 = vsel %vm817, %v281, -inf
    %v819 = vsel %vm817, %v357, -inf
    %v820 = vsel %vm817, %v433, -inf
    %v821 = vsel %vm817, %v509, -inf
    %v822 = vsel %vm817, %v585, -inf
    %v823 = vsel %vm817, %v661, -inf
    %v824 = vsel %vm817, %v737, -inf
    %v825 = vsel %vm817, %v813, -inf
    %v826 = vsel %vm209, %v818, -inf
    %827 = vmax.xlane.f32.xlu0 %v826
    %v828 = vpop.xlane.xlu0 %827
    %v829 = vsel %vm209, %v819, -inf
    %830 = vmax.xlane.f32.xlu0 %v829
    %v831 = vpop.xlane.xlu0 %830
    %v832 = vsel %vm209, %v820, -inf
    %833 = vmax.xlane.f32.xlu0 %v832
    %v834 = vpop.xlane.xlu0 %833
    %v835 = vsel %vm209, %v821, -inf
    %836 = vmax.xlane.f32.xlu0 %v835
    %v837 = vpop.xlane.xlu0 %836
    %v838 = vsel %vm209, %v822, -inf
    %839 = vmax.xlane.f32.xlu0 %v838
    %v840 = vpop.xlane.xlu0 %839
    %v841 = vsel %vm209, %v823, -inf
    %842 = vmax.xlane.f32.xlu0 %v841
    %v843 = vpop.xlane.xlu0 %842
    %v844 = vsel %vm209, %v824, -inf
    %845 = vmax.xlane.f32.xlu0 %v844
    %v846 = vpop.xlane.xlu0 %845
    %v847 = vsel %vm209, %v825, -inf
    %848 = vmax.xlane.f32.xlu0 %v847
    %v849 = vpop.xlane.xlu0 %848
    %v850 = vsub.f32 %v818, %v828
    %v851 = vsub.f32 %v819, %v831
    %v852 = vsub.f32 %v820, %v834
    %v853 = vsub.f32 %v821, %v837
    %v854 = vsub.f32 %v822, %v840
    %v855 = vsub.f32 %v823, %v843
    %v856 = vsub.f32 %v824, %v846
    %v857 = vsub.f32 %v825, %v849
    %v858 = vmul.f32 %v850, 1.442695
    %v859 = vpow.pop %v858
    %v860 = vmul.f32 %v851, 1.442695
    %v861 = vpow.pop %v860
    %v862 = vmul.f32 %v852, 1.442695
    %v863 = vpow.pop %v862
    %v864 = vmul.f32 %v853, 1.442695
    %v865 = vpow.pop %v864
    %v866 = vmul.f32 %v854, 1.442695
    %v867 = vpow.pop %v866
    %v868 = vmul.f32 %v855, 1.442695
    %v869 = vpow.pop %v868
    %v870 = vmul.f32 %v856, 1.442695
    %v871 = vpow.pop %v870
    %v872 = vmul.f32 %v857, 1.442695
    %v873 = vpow.pop %v872
    %v874 = vsel %vm209, %v859, 0.0
    %875 = vadd.xlane.f32.xlu0 %v874
    %v876 = vpop.xlane.xlu0 %875
    %v877 = vsel %vm209, %v861, 0.0
    %878 = vadd.xlane.f32.xlu0 %v877
    %v879 = vpop.xlane.xlu0 %878
    %v880 = vsel %vm209, %v863, 0.0
    %881 = vadd.xlane.f32.xlu0 %v880
    %v882 = vpop.xlane.xlu0 %881
    %v883 = vsel %vm209, %v865, 0.0
    %884 = vadd.xlane.f32.xlu0 %v883
    %v885 = vpop.xlane.xlu0 %884
    %v886 = vsel %vm209, %v867, 0.0
    %887 = vadd.xlane.f32.xlu0 %v886
    %v888 = vpop.xlane.xlu0 %887
    %v889 = vsel %vm209, %v869, 0.0
    %890 = vadd.xlane.f32.xlu0 %v889
    %v891 = vpop.xlane.xlu0 %890
    %v892 = vsel %vm209, %v871, 0.0
    %893 = vadd.xlane.f32.xlu0 %v892
    %v894 = vpop.xlane.xlu0 %893
    %v895 = vsel %vm209, %v873, 0.0
    %896 = vadd.xlane.f32.xlu0 %v895
    %v897 = vpop.xlane.xlu0 %896
    %v898 = vrcp.pop %v876
    %v899 = vrcp.pop %v879
    %v900 = vrcp.pop %v882
    %v901 = vrcp.pop %v885
    %v902 = vrcp.pop %v888
    %v903 = vrcp.pop %v891
    %v904 = vrcp.pop %v894
    %v905 = vrcp.pop %v897
    %v906 = vmul.f32 %v859, %v898
    %v907 = vmul.f32 %v861, %v899
    %v908 = vmul.f32 %v863, %v900
    %v909 = vmul.f32 %v865, %v901
    %v910 = vmul.f32 %v867, %v902
    %v911 = vmul.f32 %v869, %v903
    %v912 = vmul.f32 %v871, %v904
    %v913 = vmul.f32 %v873, %v905
    %914 = vrot.lane.b32.xlu0 %v185, 64
    %v915 = vpop.permute.xlu0 %914
    %v918 = vsel %vm209, %v906, 0
    %920 = vmatprep.subr.mxu0 0.0
    %921 = vmatpush1.msra.mxu0 %v915
    %922 = vmatprep.subr.mxu0 0.0
    %923 = vmatpush1.msra.mxu0 0.0
    %924 = vmatprep.subr.mxu0 0.0
    %925 = vmatpush1.msra.mxu0 0.0
    %926 = vmatprep.subr.mxu0 0.0
    %927 = vmatpush1.msra.mxu0 0.0
    %928 = vmatprep.subr.mxu0 0.0
    %929 = vmatpush1.msra.mxu0 0.0
    %930 = vmatprep.subr.mxu0 0.0
    %931 = vmatpush1.msra.mxu0 0.0
    %932 = vmatprep.subr.mxu0 0.0
    %933 = vmatpush1.msra.mxu0 0.0
    %934 = vmatprep.subr.mxu0 0.0
    %935 = vmatpush1.msra.mxu0 0.0
    %936 = vmatprep.subr.mxu0 0.0
    %937 = vmatpush1.msra.mxu0 0.0
    %938 = vmatprep.subr.mxu0 0.0
    %939 = vmatpush1.msra.mxu0 0.0
    %940 = vmatprep.subr.mxu0 0.0
    %941 = vmatpush1.msra.mxu0 0.0
    %942 = vmatprep.subr.mxu0 0.0
    %943 = vmatpush1.msra.mxu0 0.0
    %944 = vmatprep.subr.mxu0 0.0
    %945 = vmatpush1.msra.mxu0 0.0
    %946 = vmatprep.subr.mxu0 0.0
    %947 = vmatpush1.msra.mxu0 0.0
    %948 = vmatprep.subr.mxu0 0.0
    %949 = vmatpush1.msra.mxu0 0.0
    %950 = vmatprep.subr.mxu0 0.0
    %951 = vmatpush1.msra.mxu0 0.0
    %952 = vmatprep.subr.mxu0 0.0
    %953 = vmatpush1.msra.mxu0 0.0
    %954 = vmatprep.subr.mxu0 0.0
    %955 = vmatpush1.msra.mxu0 0.0
    %956 = vmatprep.subr.mxu0 0.0
    %957 = vmatpush1.msra.mxu0 0.0
    %958 = vmatprep.subr.mxu0 0.0
    %959 = vmatpush1.msra.mxu0 0.0
    %960 = vmatprep.subr.mxu0 0.0
    %961 = vmatpush1.msra.mxu0 0.0
    %962 = vmatprep.subr.mxu0 0.0
    %963 = vmatpush1.msra.mxu0 0.0
    %964 = vmatprep.subr.mxu0 0.0
    %965 = vmatpush1.msra.mxu0 0.0
    %966 = vmatprep.subr.mxu0 0.0
    %967 = vmatpush1.msra.mxu0 0.0
    %968 = vmatprep.subr.mxu0 0.0
    %969 = vmatpush1.msra.mxu0 0.0
    %970 = vmatprep.subr.mxu0 0.0
    %971 = vmatpush1.msra.mxu0 0.0
    %972 = vmatprep.subr.mxu0 0.0
    %973 = vmatpush1.msra.mxu0 0.0
    %974 = vmatprep.subr.mxu0 0.0
    %975 = vmatpush1.msra.mxu0 0.0
    %976 = vmatprep.subr.mxu0 0.0
    %977 = vmatpush1.msra.mxu0 0.0
    %978 = vmatprep.subr.mxu0 0.0
    %979 = vmatpush1.msra.mxu0 0.0
    %980 = vmatprep.subr.mxu0 0.0
    %981 = vmatpush1.msra.mxu0 0.0
    %982 = vmatprep.subr.mxu0 0.0
    %983 = vmatpush1.msra.mxu0 0.0
    %984 = vmatprep.mubr.f32.mxu0 0.0
    %985 = vmatmul.mubr.f32.gmra.mrb[0].mxu0 %v918
    %v986 = vpop.f32.mrb[0].mxu0
    %v987 = vadd.f32 0.0, %v986
    %v988 = vpop.f32.mrb[0].mxu0
    %989 = vdwg.mxu0
    %990 = vrot.lane.b32.xlu0 %v190, 64
    %v991 = vpop.permute.xlu0 %990
    %v994 = vsel %vm209, %v907, 0
    %996 = vmatprep.subr.mxu0 0.0
    %997 = vmatpush1.msra.mxu0 %v991
    %998 = vmatprep.subr.mxu0 0.0
    %999 = vmatpush1.msra.mxu0 0.0
    %1000 = vmatprep.subr.mxu0 0.0
    %1001 = vmatpush1.msra.mxu0 0.0
    %1002 = vmatprep.subr.mxu0 0.0
    %1003 = vmatpush1.msra.mxu0 0.0
    %1004 = vmatprep.subr.mxu0 0.0
    %1005 = vmatpush1.msra.mxu0 0.0
    %1006 = vmatprep.subr.mxu0 0.0
    %1007 = vmatpush1.msra.mxu0 0.0
    %1008 = vmatprep.subr.mxu0 0.0
    %1009 = vmatpush1.msra.mxu0 0.0
    %1010 = vmatprep.subr.mxu0 0.0
    %1011 = vmatpush1.msra.mxu0 0.0
    %1012 = vmatprep.subr.mxu0 0.0
    %1013 = vmatpush1.msra.mxu0 0.0
    %1014 = vmatprep.subr.mxu0 0.0
    %1015 = vmatpush1.msra.mxu0 0.0
    %1016 = vmatprep.subr.mxu0 0.0
    %1017 = vmatpush1.msra.mxu0 0.0
    %1018 = vmatprep.subr.mxu0 0.0
    %1019 = vmatpush1.msra.mxu0 0.0
    %1020 = vmatprep.subr.mxu0 0.0
    %1021 = vmatpush1.msra.mxu0 0.0
    %1022 = vmatprep.subr.mxu0 0.0
    %1023 = vmatpush1.msra.mxu0 0.0
    %1024 = vmatprep.subr.mxu0 0.0
    %1025 = vmatpush1.msra.mxu0 0.0
    %1026 = vmatprep.subr.mxu0 0.0
    %1027 = vmatpush1.msra.mxu0 0.0
    %1028 = vmatprep.subr.mxu0 0.0
    %1029 = vmatpush1.msra.mxu0 0.0
    %1030 = vmatprep.subr.mxu0 0.0
    %1031 = vmatpush1.msra.mxu0 0.0
    %1032 = vmatprep.subr.mxu0 0.0
    %1033 = vmatpush1.msra.mxu0 0.0
    %1034 = vmatprep.subr.mxu0 0.0
    %1035 = vmatpush1.msra.mxu0 0.0
    %1036 = vmatprep.subr.mxu0 0.0
    %1037 = vmatpush1.msra.mxu0 0.0
    %1038 = vmatprep.subr.mxu0 0.0
    %1039 = vmatpush1.msra.mxu0 0.0
    %1040 = vmatprep.subr.mxu0 0.0
    %1041 = vmatpush1.msra.mxu0 0.0
    %1042 = vmatprep.subr.mxu0 0.0
    %1043 = vmatpush1.msra.mxu0 0.0
    %1044 = vmatprep.subr.mxu0 0.0
    %1045 = vmatpush1.msra.mxu0 0.0
    %1046 = vmatprep.subr.mxu0 0.0
    %1047 = vmatpush1.msra.mxu0 0.0
    %1048 = vmatprep.subr.mxu0 0.0
    %1049 = vmatpush1.msra.mxu0 0.0
    %1050 = vmatprep.subr.mxu0 0.0
    %1051 = vmatpush1.msra.mxu0 0.0
    %1052 = vmatprep.subr.mxu0 0.0
    %1053 = vmatpush1.msra.mxu0 0.0
    %1054 = vmatprep.subr.mxu0 0.0
    %1055 = vmatpush1.msra.mxu0 0.0
    %1056 = vmatprep.subr.mxu0 0.0
    %1057 = vmatpush1.msra.mxu0 0.0
    %1058 = vmatprep.subr.mxu0 0.0
    %1059 = vmatpush1.msra.mxu0 0.0
    %1060 = vmatprep.mubr.f32.mxu0 0.0
    %1061 = vmatmul.mubr.f32.gmra.mrb[0].mxu0 %v994
    %v1062 = vpop.f32.mrb[0].mxu0
    %v1063 = vadd.f32 0.0, %v1062
    %v1064 = vpop.f32.mrb[0].mxu0
    %1065 = vdwg.mxu0
    %1066 = vrot.lane.b32.xlu0 %v196, 64
    %v1067 = vpop.permute.xlu0 %1066
    %v1070 = vsel %vm209, %v908, 0
    %1072 = vmatprep.subr.mxu0 0.0
    %1073 = vmatpush1.msra.mxu0 %v1067
    %1074 = vmatprep.subr.mxu0 0.0
    %1075 = vmatpush1.msra.mxu0 0.0
    %1076 = vmatprep.subr.mxu0 0.0
    %1077 = vmatpush1.msra.mxu0 0.0
    %1078 = vmatprep.subr.mxu0 0.0
    %1079 = vmatpush1.msra.mxu0 0.0
    %1080 = vmatprep.subr.mxu0 0.0
    %1081 = vmatpush1.msra.mxu0 0.0
    %1082 = vmatprep.subr.mxu0 0.0
    %1083 = vmatpush1.msra.mxu0 0.0
    %1084 = vmatprep.subr.mxu0 0.0
    %1085 = vmatpush1.msra.mxu0 0.0
    %1086 = vmatprep.subr.mxu0 0.0
    %1087 = vmatpush1.msra.mxu0 0.0
    %1088 = vmatprep.subr.mxu0 0.0
    %1089 = vmatpush1.msra.mxu0 0.0
    %1090 = vmatprep.subr.mxu0 0.0
    %1091 = vmatpush1.msra.mxu0 0.0
    %1092 = vmatprep.subr.mxu0 0.0
    %1093 = vmatpush1.msra.mxu0 0.0
    %1094 = vmatprep.subr.mxu0 0.0
    %1095 = vmatpush1.msra.mxu0 0.0
    %1096 = vmatprep.subr.mxu0 0.0
    %1097 = vmatpush1.msra.mxu0 0.0
    %1098 = vmatprep.subr.mxu0 0.0
    %1099 = vmatpush1.msra.mxu0 0.0
    %1100 = vmatprep.subr.mxu0 0.0
    %1101 = vmatpush1.msra.mxu0 0.0
    %1102 = vmatprep.subr.mxu0 0.0
    %1103 = vmatpush1.msra.mxu0 0.0
    %1104 = vmatprep.subr.mxu0 0.0
    %1105 = vmatpush1.msra.mxu0 0.0
    %1106 = vmatprep.subr.mxu0 0.0
    %1107 = vmatpush1.msra.mxu0 0.0
    %1108 = vmatprep.subr.mxu0 0.0
    %1109 = vmatpush1.msra.mxu0 0.0
    %1110 = vmatprep.subr.mxu0 0.0
    %1111 = vmatpush1.msra.mxu0 0.0
    %1112 = vmatprep.subr.mxu0 0.0
    %1113 = vmatpush1.msra.mxu0 0.0
    %1114 = vmatprep.subr.mxu0 0.0
    %1115 = vmatpush1.msra.mxu0 0.0
    %1116 = vmatprep.subr.mxu0 0.0
    %1117 = vmatpush1.msra.mxu0 0.0
    %1118 = vmatprep.subr.mxu0 0.0
    %1119 = vmatpush1.msra.mxu0 0.0
    %1120 = vmatprep.subr.mxu0 0.0
    %1121 = vmatpush1.msra.mxu0 0.0
    %1122 = vmatprep.subr.mxu0 0.0
    %1123 = vmatpush1.msra.mxu0 0.0
    %1124 = vmatprep.subr.mxu0 0.0
    %1125 = vmatpush1.msra.mxu0 0.0
    %1126 = vmatprep.subr.mxu0 0.0
    %1127 = vmatpush1.msra.mxu0 0.0
    %1128 = vmatprep.subr.mxu0 0.0
    %1129 = vmatpush1.msra.mxu0 0.0
    %1130 = vmatprep.subr.mxu0 0.0
    %1131 = vmatpush1.msra.mxu0 0.0
    %1132 = vmatprep.subr.mxu0 0.0
    %1133 = vmatpush1.msra.mxu0 0.0
    %1134 = vmatprep.subr.mxu0 0.0
    %1135 = vmatpush1.msra.mxu0 0.0
    %1136 = vmatprep.mubr.f32.mxu0 0.0
    %1137 = vmatmul.mubr.f32.gmra.mrb[0].mxu0 %v1070
    %v1138 = vpop.f32.mrb[0].mxu0
    %v1139 = vadd.f32 0.0, %v1138
    %v1140 = vpop.f32.mrb[0].mxu0
    %1141 = vdwg.mxu0
    %1142 = vrot.lane.b32.xlu0 %v198, 64
    %v1143 = vpop.permute.xlu0 %1142
    %v1146 = vsel %vm209, %v909, 0
    %1148 = vmatprep.subr.mxu0 0.0
    %1149 = vmatpush1.msra.mxu0 %v1143
    %1150 = vmatprep.subr.mxu0 0.0
    %1151 = vmatpush1.msra.mxu0 0.0
    %1152 = vmatprep.subr.mxu0 0.0
    %1153 = vmatpush1.msra.mxu0 0.0
    %1154 = vmatprep.subr.mxu0 0.0
    %1155 = vmatpush1.msra.mxu0 0.0
    %1156 = vmatprep.subr.mxu0 0.0
    %1157 = vmatpush1.msra.mxu0 0.0
    %1158 = vmatprep.subr.mxu0 0.0
    %1159 = vmatpush1.msra.mxu0 0.0
    %1160 = vmatprep.subr.mxu0 0.0
    %1161 = vmatpush1.msra.mxu0 0.0
    %1162 = vmatprep.subr.mxu0 0.0
    %1163 = vmatpush1.msra.mxu0 0.0
    %1164 = vmatprep.subr.mxu0 0.0
    %1165 = vmatpush1.msra.mxu0 0.0
    %1166 = vmatprep.subr.mxu0 0.0
    %1167 = vmatpush1.msra.mxu0 0.0
    %1168 = vmatprep.subr.mxu0 0.0
    %1169 = vmatpush1.msra.mxu0 0.0
    %1170 = vmatprep.subr.mxu0 0.0
    %1171 = vmatpush1.msra.mxu0 0.0
    %1172 = vmatprep.subr.mxu0 0.0
    %1173 = vmatpush1.msra.mxu0 0.0
    %1174 = vmatprep.subr.mxu0 0.0
    %1175 = vmatpush1.msra.mxu0 0.0
    %1176 = vmatprep.subr.mxu0 0.0
    %1177 = vmatpush1.msra.mxu0 0.0
    %1178 = vmatprep.subr.mxu0 0.0
    %1179 = vmatpush1.msra.mxu0 0.0
    %1180 = vmatprep.subr.mxu0 0.0
    %1181 = vmatpush1.msra.mxu0 0.0
    %1182 = vmatprep.subr.mxu0 0.0
    %1183 = vmatpush1.msra.mxu0 0.0
    %1184 = vmatprep.subr.mxu0 0.0
    %1185 = vmatpush1.msra.mxu0 0.0
    %1186 = vmatprep.subr.mxu0 0.0
    %1187 = vmatpush1.msra.mxu0 0.0
    %1188 = vmatprep.subr.mxu0 0.0
    %1189 = vmatpush1.msra.mxu0 0.0
    %1190 = vmatprep.subr.mxu0 0.0
    %1191 = vmatpush1.msra.mxu0 0.0
    %1192 = vmatprep.subr.mxu0 0.0
    %1193 = vmatpush1.msra.mxu0 0.0
    %1194 = vmatprep.subr.mxu0 0.0
    %1195 = vmatpush1.msra.mxu0 0.0
    %1196 = vmatprep.subr.mxu0 0.0
    %1197 = vmatpush1.msra.mxu0 0.0
    %1198 = vmatprep.subr.mxu0 0.0
    %1199 = vmatpush1.msra.mxu0 0.0
    %1200 = vmatprep.subr.mxu0 0.0
    %1201 = vmatpush1.msra.mxu0 0.0
    %1202 = vmatprep.subr.mxu0 0.0
    %1203 = vmatpush1.msra.mxu0 0.0
    %1204 = vmatprep.subr.mxu0 0.0
    %1205 = vmatpush1.msra.mxu0 0.0
    %1206 = vmatprep.subr.mxu0 0.0
    %1207 = vmatpush1.msra.mxu0 0.0
    %1208 = vmatprep.subr.mxu0 0.0
    %1209 = vmatpush1.msra.mxu0 0.0
    %1210 = vmatprep.subr.mxu0 0.0
    %1211 = vmatpush1.msra.mxu0 0.0
    %1212 = vmatprep.mubr.f32.mxu0 0.0
    %1213 = vmatmul.mubr.f32.gmra.mrb[0].mxu0 %v1146
    %v1214 = vpop.f32.mrb[0].mxu0
    %v1215 = vadd.f32 0.0, %v1214
    %v1216 = vpop.f32.mrb[0].mxu0
    %1217 = vdwg.mxu0
    %1218 = vrot.lane.b32.xlu0 %v200, 64
    %v1219 = vpop.permute.xlu0 %1218
    %v1222 = vsel %vm209, %v910, 0
    %1224 = vmatprep.subr.mxu0 0.0
    %1225 = vmatpush1.msra.mxu0 %v1219
    %1226 = vmatprep.subr.mxu0 0.0
    %1227 = vmatpush1.msra.mxu0 0.0
    %1228 = vmatprep.subr.mxu0 0.0
    %1229 = vmatpush1.msra.mxu0 0.0
    %1230 = vmatprep.subr.mxu0 0.0
    %1231 = vmatpush1.msra.mxu0 0.0
    %1232 = vmatprep.subr.mxu0 0.0
    %1233 = vmatpush1.msra.mxu0 0.0
    %1234 = vmatprep.subr.mxu0 0.0
    %1235 = vmatpush1.msra.mxu0 0.0
    %1236 = vmatprep.subr.mxu0 0.0
    %1237 = vmatpush1.msra.mxu0 0.0
    %1238 = vmatprep.subr.mxu0 0.0
    %1239 = vmatpush1.msra.mxu0 0.0
    %1240 = vmatprep.subr.mxu0 0.0
    %1241 = vmatpush1.msra.mxu0 0.0
    %1242 = vmatprep.subr.mxu0 0.0
    %1243 = vmatpush1.msra.mxu0 0.0
    %1244 = vmatprep.subr.mxu0 0.0
    %1245 = vmatpush1.msra.mxu0 0.0
    %1246 = vmatprep.subr.mxu0 0.0
    %1247 = vmatpush1.msra.mxu0 0.0
    %1248 = vmatprep.subr.mxu0 0.0
    %1249 = vmatpush1.msra.mxu0 0.0
    %1250 = vmatprep.subr.mxu0 0.0
    %1251 = vmatpush1.msra.mxu0 0.0
    %1252 = vmatprep.subr.mxu0 0.0
    %1253 = vmatpush1.msra.mxu0 0.0
    %1254 = vmatprep.subr.mxu0 0.0
    %1255 = vmatpush1.msra.mxu0 0.0
    %1256 = vmatprep.subr.mxu0 0.0
    %1257 = vmatpush1.msra.mxu0 0.0
    %1258 = vmatprep.subr.mxu0 0.0
    %1259 = vmatpush1.msra.mxu0 0.0
    %1260 = vmatprep.subr.mxu0 0.0
    %1261 = vmatpush1.msra.mxu0 0.0
    %1262 = vmatprep.subr.mxu0 0.0
    %1263 = vmatpush1.msra.mxu0 0.0
    %1264 = vmatprep.subr.mxu0 0.0
    %1265 = vmatpush1.msra.mxu0 0.0
    %1266 = vmatprep.subr.mxu0 0.0
    %1267 = vmatpush1.msra.mxu0 0.0
    %1268 = vmatprep.subr.mxu0 0.0
    %1269 = vmatpush1.msra.mxu0 0.0
    %1270 = vmatprep.subr.mxu0 0.0
    %1271 = vmatpush1.msra.mxu0 0.0
    %1272 = vmatprep.subr.mxu0 0.0
    %1273 = vmatpush1.msra.mxu0 0.0
    %1274 = vmatprep.subr.mxu0 0.0
    %1275 = vmatpush1.msra.mxu0 0.0
    %1276 = vmatprep.subr.mxu0 0.0
    %1277 = vmatpush1.msra.mxu0 0.0
    %1278 = vmatprep.subr.mxu0 0.0
    %1279 = vmatpush1.msra.mxu0 0.0
    %1280 = vmatprep.subr.mxu0 0.0
    %1281 = vmatpush1.msra.mxu0 0.0
    %1282 = vmatprep.subr.mxu0 0.0
    %1283 = vmatpush1.msra.mxu0 0.0
    %1284 = vmatprep.subr.mxu0 0.0
    %1285 = vmatpush1.msra.mxu0 0.0
    %1286 = vmatprep.subr.mxu0 0.0
    %1287 = vmatpush1.msra.mxu0 0.0
    %1288 = vmatprep.mubr.f32.mxu0 0.0
    %1289 = vmatmul.mubr.f32.gmra.mrb[0].mxu0 %v1222
    %v1290 = vpop.f32.mrb[0].mxu0
    %v1291 = vadd.f32 0.0, %v1290
    %v1292 = vpop.f32.mrb[0].mxu0
    %1293 = vdwg.mxu0
    %1294 = vrot.lane.b32.xlu0 %v202, 64
    %v1295 = vpop.permute.xlu0 %1294
    %v1298 = vsel %vm209, %v911, 0
    %1300 = vmatprep.subr.mxu0 0.0
    %1301 = vmatpush1.msra.mxu0 %v1295
    %1302 = vmatprep.subr.mxu0 0.0
    %1303 = vmatpush1.msra.mxu0 0.0
    %1304 = vmatprep.subr.mxu0 0.0
    %1305 = vmatpush1.msra.mxu0 0.0
    %1306 = vmatprep.subr.mxu0 0.0
    %1307 = vmatpush1.msra.mxu0 0.0
    %1308 = vmatprep.subr.mxu0 0.0
    %1309 = vmatpush1.msra.mxu0 0.0
    %1310 = vmatprep.subr.mxu0 0.0
    %1311 = vmatpush1.msra.mxu0 0.0
    %1312 = vmatprep.subr.mxu0 0.0
    %1313 = vmatpush1.msra.mxu0 0.0
    %1314 = vmatprep.subr.mxu0 0.0
    %1315 = vmatpush1.msra.mxu0 0.0
    %1316 = vmatprep.subr.mxu0 0.0
    %1317 = vmatpush1.msra.mxu0 0.0
    %1318 = vmatprep.subr.mxu0 0.0
    %1319 = vmatpush1.msra.mxu0 0.0
    %1320 = vmatprep.subr.mxu0 0.0
    %1321 = vmatpush1.msra.mxu0 0.0
    %1322 = vmatprep.subr.mxu0 0.0
    %1323 = vmatpush1.msra.mxu0 0.0
    %1324 = vmatprep.subr.mxu0 0.0
    %1325 = vmatpush1.msra.mxu0 0.0
    %1326 = vmatprep.subr.mxu0 0.0
    %1327 = vmatpush1.msra.mxu0 0.0
    %1328 = vmatprep.subr.mxu0 0.0
    %1329 = vmatpush1.msra.mxu0 0.0
    %1330 = vmatprep.subr.mxu0 0.0
    %1331 = vmatpush1.msra.mxu0 0.0
    %1332 = vmatprep.subr.mxu0 0.0
    %1333 = vmatpush1.msra.mxu0 0.0
    %1334 = vmatprep.subr.mxu0 0.0
    %1335 = vmatpush1.msra.mxu0 0.0
    %1336 = vmatprep.subr.mxu0 0.0
    %1337 = vmatpush1.msra.mxu0 0.0
    %1338 = vmatprep.subr.mxu0 0.0
    %1339 = vmatpush1.msra.mxu0 0.0
    %1340 = vmatprep.subr.mxu0 0.0
    %1341 = vmatpush1.msra.mxu0 0.0
    %1342 = vmatprep.subr.mxu0 0.0
    %1343 = vmatpush1.msra.mxu0 0.0
    %1344 = vmatprep.subr.mxu0 0.0
    %1345 = vmatpush1.msra.mxu0 0.0
    %1346 = vmatprep.subr.mxu0 0.0
    %1347 = vmatpush1.msra.mxu0 0.0
    %1348 = vmatprep.subr.mxu0 0.0
    %1349 = vmatpush1.msra.mxu0 0.0
    %1350 = vmatprep.subr.mxu0 0.0
    %1351 = vmatpush1.msra.mxu0 0.0
    %1352 = vmatprep.subr.mxu0 0.0
    %1353 = vmatpush1.msra.mxu0 0.0
    %1354 = vmatprep.subr.mxu0 0.0
    %1355 = vmatpush1.msra.mxu0 0.0
    %1356 = vmatprep.subr.mxu0 0.0
    %1357 = vmatpush1.msra.mxu0 0.0
    %1358 = vmatprep.subr.mxu0 0.0
    %1359 = vmatpush1.msra.mxu0 0.0
    %1360 = vmatprep.subr.mxu0 0.0
    %1361 = vmatpush1.msra.mxu0 0.0
    %1362 = vmatprep.subr.mxu0 0.0
    %1363 = vmatpush1.msra.mxu0 0.0
    %1364 = vmatprep.mubr.f32.mxu0 0.0
    %1365 = vmatmul.mubr.f32.gmra.mrb[0].mxu0 %v1298
    %v1366 = vpop.f32.mrb[0].mxu0
    %v1367 = vadd.f32 0.0, %v1366
    %v1368 = vpop.f32.mrb[0].mxu0
    %1369 = vdwg.mxu0
    %1370 = vrot.lane.b32.xlu0 %v204, 64
    %v1371 = vpop.permute.xlu0 %1370
    %v1374 = vsel %vm209, %v912, 0
    %1376 = vmatprep.subr.mxu0 0.0
    %1377 = vmatpush1.msra.mxu0 %v1371
    %1378 = vmatprep.subr.mxu0 0.0
    %1379 = vmatpush1.msra.mxu0 0.0
    %1380 = vmatprep.subr.mxu0 0.0
    %1381 = vmatpush1.msra.mxu0 0.0
    %1382 = vmatprep.subr.mxu0 0.0
    %1383 = vmatpush1.msra.mxu0 0.0
    %1384 = vmatprep.subr.mxu0 0.0
    %1385 = vmatpush1.msra.mxu0 0.0
    %1386 = vmatprep.subr.mxu0 0.0
    %1387 = vmatpush1.msra.mxu0 0.0
    %1388 = vmatprep.subr.mxu0 0.0
    %1389 = vmatpush1.msra.mxu0 0.0
    %1390 = vmatprep.subr.mxu0 0.0
    %1391 = vmatpush1.msra.mxu0 0.0
    %1392 = vmatprep.subr.mxu0 0.0
    %1393 = vmatpush1.msra.mxu0 0.0
    %1394 = vmatprep.subr.mxu0 0.0
    %1395 = vmatpush1.msra.mxu0 0.0
    %1396 = vmatprep.subr.mxu0 0.0
    %1397 = vmatpush1.msra.mxu0 0.0
    %1398 = vmatprep.subr.mxu0 0.0
    %1399 = vmatpush1.msra.mxu0 0.0
    %1400 = vmatprep.subr.mxu0 0.0
    %1401 = vmatpush1.msra.mxu0 0.0
    %1402 = vmatprep.subr.mxu0 0.0
    %1403 = vmatpush1.msra.mxu0 0.0
    %1404 = vmatprep.subr.mxu0 0.0
    %1405 = vmatpush1.msra.mxu0 0.0
    %1406 = vmatprep.subr.mxu0 0.0
    %1407 = vmatpush1.msra.mxu0 0.0
    %1408 = vmatprep.subr.mxu0 0.0
    %1409 = vmatpush1.msra.mxu0 0.0
    %1410 = vmatprep.subr.mxu0 0.0
    %1411 = vmatpush1.msra.mxu0 0.0
    %1412 = vmatprep.subr.mxu0 0.0
    %1413 = vmatpush1.msra.mxu0 0.0
    %1414 = vmatprep.subr.mxu0 0.0
    %1415 = vmatpush1.msra.mxu0 0.0
    %1416 = vmatprep.subr.mxu0 0.0
    %1417 = vmatpush1.msra.mxu0 0.0
    %1418 = vmatprep.subr.mxu0 0.0
    %1419 = vmatpush1.msra.mxu0 0.0
    %1420 = vmatprep.subr.mxu0 0.0
    %1421 = vmatpush1.msra.mxu0 0.0
    %1422 = vmatprep.subr.mxu0 0.0
    %1423 = vmatpush1.msra.mxu0 0.0
    %1424 = vmatprep.subr.mxu0 0.0
    %1425 = vmatpush1.msra.mxu0 0.0
    %1426 = vmatprep.subr.mxu0 0.0
    %1427 = vmatpush1.msra.mxu0 0.0
    %1428 = vmatprep.subr.mxu0 0.0
    %1429 = vmatpush1.msra.mxu0 0.0
    %1430 = vmatprep.subr.mxu0 0.0
    %1431 = vmatpush1.msra.mxu0 0.0
    %1432 = vmatprep.subr.mxu0 0.0
    %1433 = vmatpush1.msra.mxu0 0.0
    %1434 = vmatprep.subr.mxu0 0.0
    %1435 = vmatpush1.msra.mxu0 0.0
    %1436 = vmatprep.subr.mxu0 0.0
    %1437 = vmatpush1.msra.mxu0 0.0
    %1438 = vmatprep.subr.mxu0 0.0
    %1439 = vmatpush1.msra.mxu0 0.0
    %1440 = vmatprep.mubr.f32.mxu0 0.0
    %1441 = vmatmul.mubr.f32.gmra.mrb[0].mxu0 %v1374
    %v1442 = vpop.f32.mrb[0].mxu0
    %v1443 = vadd.f32 0.0, %v1442
    %v1444 = vpop.f32.mrb[0].mxu0
    %1445 = vdwg.mxu0
    %1446 = vrot.lane.b32.xlu0 %v206, 64
    %v1447 = vpop.permute.xlu0 %1446
    %v1450 = vsel %vm209, %v913, 0
    %1452 = vmatprep.subr.mxu0 0.0
    %1453 = vmatpush1.msra.mxu0 %v1447
    %1454 = vmatprep.subr.mxu0 0.0
    %1455 = vmatpush1.msra.mxu0 0.0
    %1456 = vmatprep.subr.mxu0 0.0
    %1457 = vmatpush1.msra.mxu0 0.0
    %1458 = vmatprep.subr.mxu0 0.0
    %1459 = vmatpush1.msra.mxu0 0.0
    %1460 = vmatprep.subr.mxu0 0.0
    %1461 = vmatpush1.msra.mxu0 0.0
    %1462 = vmatprep.subr.mxu0 0.0
    %1463 = vmatpush1.msra.mxu0 0.0
    %1464 = vmatprep.subr.mxu0 0.0
    %1465 = vmatpush1.msra.mxu0 0.0
    %1466 = vmatprep.subr.mxu0 0.0
    %1467 = vmatpush1.msra.mxu0 0.0
    %1468 = vmatprep.subr.mxu0 0.0
    %1469 = vmatpush1.msra.mxu0 0.0
    %1470 = vmatprep.subr.mxu0 0.0
    %1471 = vmatpush1.msra.mxu0 0.0
    %1472 = vmatprep.subr.mxu0 0.0
    %1473 = vmatpush1.msra.mxu0 0.0
    %1474 = vmatprep.subr.mxu0 0.0
    %1475 = vmatpush1.msra.mxu0 0.0
    %1476 = vmatprep.subr.mxu0 0.0
    %1477 = vmatpush1.msra.mxu0 0.0
    %1478 = vmatprep.subr.mxu0 0.0
    %1479 = vmatpush1.msra.mxu0 0.0
    %1480 = vmatprep.subr.mxu0 0.0
    %1481 = vmatpush1.msra.mxu0 0.0
    %1482 = vmatprep.subr.mxu0 0.0
    %1483 = vmatpush1.msra.mxu0 0.0
    %1484 = vmatprep.subr.mxu0 0.0
    %1485 = vmatpush1.msra.mxu0 0.0
    %1486 = vmatprep.subr.mxu0 0.0
    %1487 = vmatpush1.msra.mxu0 0.0
    %1488 = vmatprep.subr.mxu0 0.0
    %1489 = vmatpush1.msra.mxu0 0.0
    %1490 = vmatprep.subr.mxu0 0.0
    %1491 = vmatpush1.msra.mxu0 0.0
    %1492 = vmatprep.subr.mxu0 0.0
    %1493 = vmatpush1.msra.mxu0 0.0
    %1494 = vmatprep.subr.mxu0 0.0
    %1495 = vmatpush1.msra.mxu0 0.0
    %1496 = vmatprep.subr.mxu0 0.0
    %1497 = vmatpush1.msra.mxu0 0.0
    %1498 = vmatprep.subr.mxu0 0.0
    %1499 = vmatpush1.msra.mxu0 0.0
    %1500 = vmatprep.subr.mxu0 0.0
    %1501 = vmatpush1.msra.mxu0 0.0
    %1502 = vmatprep.subr.mxu0 0.0
    %1503 = vmatpush1.msra.mxu0 0.0
    %1504 = vmatprep.subr.mxu0 0.0
    %1505 = vmatpush1.msra.mxu0 0.0
    %1506 = vmatprep.subr.mxu0 0.0
    %1507 = vmatpush1.msra.mxu0 0.0
    %1508 = vmatprep.subr.mxu0 0.0
    %1509 = vmatpush1.msra.mxu0 0.0
    %1510 = vmatprep.subr.mxu0 0.0
    %1511 = vmatpush1.msra.mxu0 0.0
    %1512 = vmatprep.subr.mxu0 0.0
    %1513 = vmatpush1.msra.mxu0 0.0
    %1514 = vmatprep.subr.mxu0 0.0
    %1515 = vmatpush1.msra.mxu0 0.0
    %1516 = vmatprep.mubr.f32.mxu0 0.0
    %1517 = vmatmul.mubr.f32.gmra.mrb[0].mxu0 %v1450
    %v1518 = vpop.f32.mrb[0].mxu0
    %v1519 = vadd.f32 0.0, %v1518
    %v1520 = vpop.f32.mrb[0].mxu0
    %1521 = vdwg.mxu0
    %1524 = vrot.lane.b32.xlu0 %v1139, 8
    %v1525 = vpop.permute.xlu0 %1524
    %1526 = vrot.lane.b32.xlu0 %v1215, 8
    %v1527 = vpop.permute.xlu0 %1526
    %1532 = vrot.lane.b32.xlu0 %v1291, 16
    %v1533 = vpop.permute.xlu0 %1532
    %1534 = vrot.lane.b32.xlu0 %v1367, 16
    %v1535 = vpop.permute.xlu0 %1534
    %1540 = vrot.lane.b32.xlu0 %v1443, 24
    %v1541 = vpop.permute.xlu0 %1540
    %1542 = vrot.lane.b32.xlu0 %v1519, 24
    %v1543 = vpop.permute.xlu0 %1542
    %v1546 = vsel %vm209, %v987, %v1525
    %v1547 = vsel %vm209, %v1063, %v1527
    %vm1548 = vcmask 130048
    %v1549 = vsel %vm1548, %v1546, %v1533
    %v1550 = vsel %vm1548, %v1547, %v1535
    %vm1551 = vcmask 195584
    %v1552 = vsel %vm1551, %v1549, %v1541
    %v1553 = vsel %vm1551, %v1550, %v1543
    %v1554 = vld [vmem:[%s6] sm:$0xff]
    %v1555 = vld [vmem:[%s6 + $0x8] sm:$0xff]
    %v1556 = vld [vmem:[%s6 + $0x10] sm:$0xff]
    %v1557 = vld [vmem:[%s6 + $0x18] sm:$0xff]
    %v1558 = vld [vmem:[%s7] sm:$0x1]
    %v1560 = vlaneseq
    %v1561 = vshrl.u32 %v1560, 7
    %v1562 = vsub.s32 0, %v1561
    %v1563 = vrot.slane %v1558, %v1562
    %v1566 = vsel %vm57, %v1552, 0
    %v1569 = vsel %vm57, %v1553, 0
    %1571 = vmatprep.subr.mxu0 0.0
    %1572 = vmatpush1.msra.mxu0 %v1554
    %1573 = vmatprep.subr.mxu0 0.0
    %1574 = vmatpush1.msra.mxu0 %v1555
    %1575 = vmatprep.subr.mxu0 0.0
    %1576 = vmatpush1.msra.mxu0 %v1556
    %1577 = vmatprep.subr.mxu0 0.0
    %1578 = vmatpush1.msra.mxu0 %v1557
    %1579 = vmatprep.subr.mxu0 0.0
    %1580 = vmatpush1.msra.mxu0 0.0
    %1581 = vmatprep.subr.mxu0 0.0
    %1582 = vmatpush1.msra.mxu0 0.0
    %1583 = vmatprep.subr.mxu0 0.0
    %1584 = vmatpush1.msra.mxu0 0.0
    %1585 = vmatprep.subr.mxu0 0.0
    %1586 = vmatpush1.msra.mxu0 0.0
    %1587 = vmatprep.subr.mxu0 0.0
    %1588 = vmatpush1.msra.mxu0 0.0
    %1589 = vmatprep.subr.mxu0 0.0
    %1590 = vmatpush1.msra.mxu0 0.0
    %1591 = vmatprep.subr.mxu0 0.0
    %1592 = vmatpush1.msra.mxu0 0.0
    %1593 = vmatprep.subr.mxu0 0.0
    %1594 = vmatpush1.msra.mxu0 0.0
    %1595 = vmatprep.subr.mxu0 0.0
    %1596 = vmatpush1.msra.mxu0 0.0
    %1597 = vmatprep.subr.mxu0 0.0
    %1598 = vmatpush1.msra.mxu0 0.0
    %1599 = vmatprep.subr.mxu0 0.0
    %1600 = vmatpush1.msra.mxu0 0.0
    %1601 = vmatprep.subr.mxu0 0.0
    %1602 = vmatpush1.msra.mxu0 0.0
    %1603 = vmatprep.subr.mxu0 0.0
    %1604 = vmatpush1.msra.mxu0 0.0
    %1605 = vmatprep.subr.mxu0 0.0
    %1606 = vmatpush1.msra.mxu0 0.0
    %1607 = vmatprep.subr.mxu0 0.0
    %1608 = vmatpush1.msra.mxu0 0.0
    %1609 = vmatprep.subr.mxu0 0.0
    %1610 = vmatpush1.msra.mxu0 0.0
    %1611 = vmatprep.subr.mxu0 0.0
    %1612 = vmatpush1.msra.mxu0 0.0
    %1613 = vmatprep.subr.mxu0 0.0
    %1614 = vmatpush1.msra.mxu0 0.0
    %1615 = vmatprep.subr.mxu0 0.0
    %1616 = vmatpush1.msra.mxu0 0.0
    %1617 = vmatprep.subr.mxu0 0.0
    %1618 = vmatpush1.msra.mxu0 0.0
    %1619 = vmatprep.subr.mxu0 0.0
    %1620 = vmatpush1.msra.mxu0 0.0
    %1621 = vmatprep.subr.mxu0 0.0
    %1622 = vmatpush1.msra.mxu0 0.0
    %1623 = vmatprep.subr.mxu0 0.0
    %1624 = vmatpush1.msra.mxu0 0.0
    %1625 = vmatprep.subr.mxu0 0.0
    %1626 = vmatpush1.msra.mxu0 0.0
    %1627 = vmatprep.subr.mxu0 0.0
    %1628 = vmatpush1.msra.mxu0 0.0
    %1629 = vmatprep.subr.mxu0 0.0
    %1630 = vmatpush1.msra.mxu0 0.0
    %1631 = vmatprep.subr.mxu0 0.0
    %1632 = vmatpush1.msra.mxu0 0.0
    %1633 = vmatprep.subr.mxu0 0.0
    %1634 = vmatpush1.msra.mxu0 0.0
    %1635 = vmatprep.mubr.f32.mxu0 0.0
    %1636 = vmatmul.mubr.f32.gmra.mrb[0].mxu0 %v1566
    %v1637 = vpop.f32.mrb[0].mxu0
    %v1638 = vadd.f32 %v1563, %v1637
    %v1639 = vpop.f32.mrb[0].mxu0
    %1640 = vmatprep.mubr.f32.mxu0 0.0
    %1641 = vmatmul.mubr.f32.gmra.mrb[0].mxu0 %v1569
    %v1642 = vpop.f32.mrb[0].mxu0
    %v1643 = vadd.f32 %v1563, %v1642
    %v1644 = vpop.f32.mrb[0].mxu0
    %1645 = vdwg.mxu0
    %v1646 = vadd.f32 %v48, %v1638
    %v1647 = vadd.f32 %v49, %v1643
    %v1648 = vld [vmem:[%s8] sm:$0x1]
    %v1649 = vld [vmem:[%s9] sm:$0x1]
    %v1650 = vsel %vm57, %v1646, 0.0
    %1651 = vadd.xlane.f32.xlu0 %v1650
    %v1652 = vpop.xlane.xlu0 %1651
    %v1653 = vsel %vm57, %v1647, 0.0
    %1654 = vadd.xlane.f32.xlu0 %v1653
    %v1655 = vpop.xlane.xlu0 %1654
    %v1656 = vmul.f32 %v1652, %v64
    %v1657 = vmul.f32 %v1655, %v64
    %v1658 = vsub.f32 %v1646, %v1656
    %v1659 = vsub.f32 %v1647, %v1657
    %v1660 = vmul.f32 %v1658, %v1658
    %v1661 = vmul.f32 %v1659, %v1659
    %v1662 = vsel %vm57, %v1660, 0.0
    %1663 = vadd.xlane.f32.xlu0 %v1662
    %v1664 = vpop.xlane.xlu0 %1663
    %v1665 = vsel %vm57, %v1661, 0.0
    %1666 = vadd.xlane.f32.xlu0 %v1665
    %v1667 = vpop.xlane.xlu0 %1666
    %v1668 = vmul.f32 %v1664, %v64
    %v1669 = vmul.f32 %v1667, %v64
    %v1670 = vadd.f32 %v1668, 1e-05
    %v1671 = vadd.f32 %v1669, 1e-05
    %v1672 = vrsqrt.pop %v1670
    %v1673 = vrsqrt.pop %v1671
    %v1674 = vmul.f32 %v1658, %v1672
    %v1675 = vmul.f32 %v1659, %v1673
    %v1677 = vlaneseq
    %v1678 = vshrl.u32 %v1677, 7
    %v1679 = vsub.s32 0, %v1678
    %v1680 = vrot.slane %v1648, %v1679
    %v1682 = vmul.f32 %v1674, %v1680
    %v1683 = vmul.f32 %v1675, %v1680
    %v1685 = vlaneseq
    %v1686 = vshrl.u32 %v1685, 7
    %v1687 = vsub.s32 0, %v1686
    %v1688 = vrot.slane %v1649, %v1687
    %v1690 = vadd.f32 %v1682, %v1688
    %v1691 = vadd.f32 %v1683, %v1688
    %v1692 = vadd.f32 %v1646, %v1690
    %v1693 = vadd.f32 %v1647, %v1691
    %s1694 = scalar_lea.vmem %s2, 1
    %v1695 = vld [vmem:[%s1694] sm:$0x1]
    %s1696 = scalar_lea.vmem %s3, 1
    %v1697 = vld [vmem:[%s1696] sm:$0x1]
    %v1698 = vsel %vm57, %v1692, 0.0
    %1699 = vadd.xlane.f32.xlu0 %v1698
    %v1700 = vpop.xlane.xlu0 %1699
    %v1701 = vsel %vm57, %v1693, 0.0
    %1702 = vadd.xlane.f32.xlu0 %v1701
    %v1703 = vpop.xlane.xlu0 %1702
    %v1704 = vmul.f32 %v1700, %v64
    %v1705 = vmul.f32 %v1703, %v64
    %v1706 = vsub.f32 %v1692, %v1704
    %v1707 = vsub.f32 %v1693, %v1705
    %v1708 = vmul.f32 %v1706, %v1706
    %v1709 = vmul.f32 %v1707, %v1707
    %v1710 = vsel %vm57, %v1708, 0.0
    %1711 = vadd.xlane.f32.xlu0 %v1710
    %v1712 = vpop.xlane.xlu0 %1711
    %v1713 = vsel %vm57, %v1709, 0.0
    %1714 = vadd.xlane.f32.xlu0 %v1713
    %v1715 = vpop.xlane.xlu0 %1714
    %v1716 = vmul.f32 %v1712, %v64
    %v1717 = vmul.f32 %v1715, %v64
    %v1718 = vadd.f32 %v1716, 1e-05
    %v1719 = vadd.f32 %v1717, 1e-05
    %v1720 = vrsqrt.pop %v1718
    %v1721 = vrsqrt.pop %v1719
    %v1722 = vmul.f32 %v1706, %v1720
    %v1723 = vmul.f32 %v1707, %v1721
    %v1725 = vlaneseq
    %v1726 = vshrl.u32 %v1725, 7
    %v1727 = vsub.s32 0, %v1726
    %v1728 = vrot.slane %v1695, %v1727
    %v1730 = vmul.f32 %v1722, %v1728
    %v1731 = vmul.f32 %v1723, %v1728
    %v1733 = vlaneseq
    %v1734 = vshrl.u32 %v1733, 7
    %v1735 = vsub.s32 0, %v1734
    %v1736 = vrot.slane %v1697, %v1735
    %v1738 = vadd.f32 %v1730, %v1736
    %v1739 = vadd.f32 %v1731, %v1736
    %s1740 = scalar_lea.vmem %s4, 32
    %v1741 = vld [vmem:[%s1740] sm:$0xff]
    %v1742 = vld [vmem:[%s1740 + $0x8] sm:$0xff]
    %v1743 = vld [vmem:[%s1740 + $0x10] sm:$0xff]
    %v1744 = vld [vmem:[%s1740 + $0x18] sm:$0xff]
    %s1745 = scalar_lea.vmem %s5, 1
    %v1746 = vld [vmem:[%s1745] sm:$0x1]
    %v1748 = vlaneseq
    %v1749 = vshrl.u32 %v1748, 7
    %v1750 = vsub.s32 0, %v1749
    %v1751 = vrot.slane %v1746, %v1750
    %v1754 = vsel %vm57, %v1738, 0
    %v1757 = vsel %vm57, %v1739, 0
    %1759 = vmatprep.subr.mxu0 0.0
    %1760 = vmatpush1.msra.mxu0 %v1741
    %1761 = vmatprep.subr.mxu0 0.0
    %1762 = vmatpush1.msra.mxu0 %v1742
    %1763 = vmatprep.subr.mxu0 0.0
    %1764 = vmatpush1.msra.mxu0 %v1743
    %1765 = vmatprep.subr.mxu0 0.0
    %1766 = vmatpush1.msra.mxu0 %v1744
    %1767 = vmatprep.subr.mxu0 0.0
    %1768 = vmatpush1.msra.mxu0 0.0
    %1769 = vmatprep.subr.mxu0 0.0
    %1770 = vmatpush1.msra.mxu0 0.0
    %1771 = vmatprep.subr.mxu0 0.0
    %1772 = vmatpush1.msra.mxu0 0.0
    %1773 = vmatprep.subr.mxu0 0.0
    %1774 = vmatpush1.msra.mxu0 0.0
    %1775 = vmatprep.subr.mxu0 0.0
    %1776 = vmatpush1.msra.mxu0 0.0
    %1777 = vmatprep.subr.mxu0 0.0
    %1778 = vmatpush1.msra.mxu0 0.0
    %1779 = vmatprep.subr.mxu0 0.0
    %1780 = vmatpush1.msra.mxu0 0.0
    %1781 = vmatprep.subr.mxu0 0.0
    %1782 = vmatpush1.msra.mxu0 0.0
    %1783 = vmatprep.subr.mxu0 0.0
    %1784 = vmatpush1.msra.mxu0 0.0
    %1785 = vmatprep.subr.mxu0 0.0
    %1786 = vmatpush1.msra.mxu0 0.0
    %1787 = vmatprep.subr.mxu0 0.0
    %1788 = vmatpush1.msra.mxu0 0.0
    %1789 = vmatprep.subr.mxu0 0.0
    %1790 = vmatpush1.msra.mxu0 0.0
    %1791 = vmatprep.subr.mxu0 0.0
    %1792 = vmatpush1.msra.mxu0 0.0
    %1793 = vmatprep.subr.mxu0 0.0
    %1794 = vmatpush1.msra.mxu0 0.0
    %1795 = vmatprep.subr.mxu0 0.0
    %1796 = vmatpush1.msra.mxu0 0.0
    %1797 = vmatprep.subr.mxu0 0.0
    %1798 = vmatpush1.msra.mxu0 0.0
    %1799 = vmatprep.subr.mxu0 0.0
    %1800 = vmatpush1.msra.mxu0 0.0
    %1801 = vmatprep.subr.mxu0 0.0
    %1802 = vmatpush1.msra.mxu0 0.0
    %1803 = vmatprep.subr.mxu0 0.0
    %1804 = vmatpush1.msra.mxu0 0.0
    %1805 = vmatprep.subr.mxu0 0.0
    %1806 = vmatpush1.msra.mxu0 0.0
    %1807 = vmatprep.subr.mxu0 0.0
    %1808 = vmatpush1.msra.mxu0 0.0
    %1809 = vmatprep.subr.mxu0 0.0
    %1810 = vmatpush1.msra.mxu0 0.0
    %1811 = vmatprep.subr.mxu0 0.0
    %1812 = vmatpush1.msra.mxu0 0.0
    %1813 = vmatprep.subr.mxu0 0.0
    %1814 = vmatpush1.msra.mxu0 0.0
    %1815 = vmatprep.subr.mxu0 0.0
    %1816 = vmatpush1.msra.mxu0 0.0
    %1817 = vmatprep.subr.mxu0 0.0
    %1818 = vmatpush1.msra.mxu0 0.0
    %1819 = vmatprep.subr.mxu0 0.0
    %1820 = vmatpush1.msra.mxu0 0.0
    %1821 = vmatprep.subr.mxu0 0.0
    %1822 = vmatpush1.msra.mxu0 0.0
    %1823 = vmatprep.mubr.f32.mxu0 0.0
    %1824 = vmatmul.mubr.f32.gmra.mrb[0].mxu0 %v1754
    %v1825 = vpop.f32.mrb[0].mxu0
    %v1826 = vadd.f32 %v1751, %v1825
    %v1827 = vpop.f32.mrb[0].mxu0
    %1828 = vmatprep.mubr.f32.mxu0 0.0
    %1829 = vmatmul.mubr.f32.gmra.mrb[0].mxu0 %v1757
    %v1830 = vpop.f32.mrb[0].mxu0
    %v1831 = vadd.f32 %v1751, %v1830
    %v1832 = vpop.f32.mrb[0].mxu0
    %1833 = vdwg.mxu0
    %1836 = vrot.lane.b32.xlu0 %v1826, 120
    %v1837 = vpop.permute.xlu0 %1836
    %1838 = vrot.lane.b32.xlu0 %v1831, 120
    %v1839 = vpop.permute.xlu0 %1838
    %1840 = vrot.lane.b32.xlu0 %v1826, 112
    %v1841 = vpop.permute.xlu0 %1840
    %1842 = vrot.lane.b32.xlu0 %v1831, 112
    %v1843 = vpop.permute.xlu0 %1842
    %1844 = vrot.lane.b32.xlu0 %v1826, 104
    %v1845 = vpop.permute.xlu0 %1844
    %1846 = vrot.lane.b32.xlu0 %v1831, 104
    %v1847 = vpop.permute.xlu0 %1846
    %1848 = vrot.lane.b32.xlu0 %v1826, 96
    %v1849 = vpop.permute.xlu0 %1848
    %v1850 = vsel %vm209, %v1826, 0
    %v1852 = vsel %vm209, %v1849, 0
    %1854 = vmatprep.subr.mxu0 0.0
    %1855 = vmatpush1.xpose.msra.mxu0 %v1852
    %1856 = vmatprep.subr.mxu0 0.0
    %1857 = vmatpush1.xpose.msra.mxu0 0.0
    %1858 = vmatprep.subr.mxu0 0.0
    %1859 = vmatpush1.xpose.msra.mxu0 0.0
    %1860 = vmatprep.subr.mxu0 0.0
    %1861 = vmatpush1.xpose.msra.mxu0 0.0
    %1862 = vmatprep.subr.mxu0 0.0
    %1863 = vmatpush1.xpose.msra.mxu0 0.0
    %1864 = vmatprep.subr.mxu0 0.0
    %1865 = vmatpush1.xpose.msra.mxu0 0.0
    %1866 = vmatprep.subr.mxu0 0.0
    %1867 = vmatpush1.xpose.msra.mxu0 0.0
    %1868 = vmatprep.subr.mxu0 0.0
    %1869 = vmatpush1.xpose.msra.mxu0 0.0
    %1870 = vmatprep.subr.mxu0 0.0
    %1871 = vmatpush1.xpose.msra.mxu0 0.0
    %1872 = vmatprep.subr.mxu0 0.0
    %1873 = vmatpush1.xpose.msra.mxu0 0.0
    %1874 = vmatprep.subr.mxu0 0.0
    %1875 = vmatpush1.xpose.msra.mxu0 0.0
    %1876 = vmatprep.subr.mxu0 0.0
    %1877 = vmatpush1.xpose.msra.mxu0 0.0
    %1878 = vmatprep.subr.mxu0 0.0
    %1879 = vmatpush1.xpose.msra.mxu0 0.0
    %1880 = vmatprep.subr.mxu0 0.0
    %1881 = vmatpush1.xpose.msra.mxu0 0.0
    %1882 = vmatprep.subr.mxu0 0.0
    %1883 = vmatpush1.xpose.msra.mxu0 0.0
    %1884 = vmatprep.subr.mxu0 0.0
    %1885 = vmatpush1.xpose.msra.mxu0 0.0
    %1886 = vmatprep.subr.mxu0 0.0
    %1887 = vmatpush1.xpose.msra.mxu0 0.0
    %1888 = vmatprep.subr.mxu0 0.0
    %1889 = vmatpush1.xpose.msra.mxu0 0.0
    %1890 = vmatprep.subr.mxu0 0.0
    %1891 = vmatpush1.xpose.msra.mxu0 0.0
    %1892 = vmatprep.subr.mxu0 0.0
    %1893 = vmatpush1.xpose.msra.mxu0 0.0
    %1894 = vmatprep.subr.mxu0 0.0
    %1895 = vmatpush1.xpose.msra.mxu0 0.0
    %1896 = vmatprep.subr.mxu0 0.0
    %1897 = vmatpush1.xpose.msra.mxu0 0.0
    %1898 = vmatprep.subr.mxu0 0.0
    %1899 = vmatpush1.xpose.msra.mxu0 0.0
    %1900 = vmatprep.subr.mxu0 0.0
    %1901 = vmatpush1.xpose.msra.mxu0 0.0
    %1902 = vmatprep.subr.mxu0 0.0
    %1903 = vmatpush1.xpose.msra.mxu0 0.0
    %1904 = vmatprep.subr.mxu0 0.0
    %1905 = vmatpush1.xpose.msra.mxu0 0.0
    %1906 = vmatprep.subr.mxu0 0.0
    %1907 = vmatpush1.xpose.msra.mxu0 0.0
    %1908 = vmatprep.subr.mxu0 0.0
    %1909 = vmatpush1.xpose.msra.mxu0 0.0
    %1910 = vmatprep.subr.mxu0 0.0
    %1911 = vmatpush1.xpose.msra.mxu0 0.0
    %1912 = vmatprep.subr.mxu0 0.0
    %1913 = vmatpush1.xpose.msra.mxu0 0.0
    %1914 = vmatprep.subr.mxu0 0.0
    %1915 = vmatpush1.xpose.msra.mxu0 0.0
    %1916 = vmatprep.subr.mxu0 0.0
    %1917 = vmatpush1.xpose.msra.mxu0 0.0
    %1918 = vmatprep.mubr.f32.mxu0 0.0
    %1919 = vmatmul.mubr.f32.gmra.mrb[0].mxu0 %v1850
    %v1920 = vpop.f32.mrb[0].mxu0
    %v1921 = vadd.f32 0.0, %v1920
    %v1922 = vpop.f32.mrb[0].mxu0
    %1923 = vdwg.mxu0
    %1924 = vrot.lane.b32.xlu0 %v1831, 96
    %v1925 = vpop.permute.xlu0 %1924
    %v1926 = vsel %vm209, %v1831, 0
    %v1928 = vsel %vm209, %v1925, 0
    %1930 = vmatprep.subr.mxu0 0.0
    %1931 = vmatpush1.xpose.msra.mxu0 %v1928
    %1932 = vmatprep.subr.mxu0 0.0
    %1933 = vmatpush1.xpose.msra.mxu0 0.0
    %1934 = vmatprep.subr.mxu0 0.0
    %1935 = vmatpush1.xpose.msra.mxu0 0.0
    %1936 = vmatprep.subr.mxu0 0.0
    %1937 = vmatpush1.xpose.msra.mxu0 0.0
    %1938 = vmatprep.subr.mxu0 0.0
    %1939 = vmatpush1.xpose.msra.mxu0 0.0
    %1940 = vmatprep.subr.mxu0 0.0
    %1941 = vmatpush1.xpose.msra.mxu0 0.0
    %1942 = vmatprep.subr.mxu0 0.0
    %1943 = vmatpush1.xpose.msra.mxu0 0.0
    %1944 = vmatprep.subr.mxu0 0.0
    %1945 = vmatpush1.xpose.msra.mxu0 0.0
    %1946 = vmatprep.subr.mxu0 0.0
    %1947 = vmatpush1.xpose.msra.mxu0 0.0
    %1948 = vmatprep.subr.mxu0 0.0
    %1949 = vmatpush1.xpose.msra.mxu0 0.0
    %1950 = vmatprep.subr.mxu0 0.0
    %1951 = vmatpush1.xpose.msra.mxu0 0.0
    %1952 = vmatprep.subr.mxu0 0.0
    %1953 = vmatpush1.xpose.msra.mxu0 0.0
    %1954 = vmatprep.subr.mxu0 0.0
    %1955 = vmatpush1.xpose.msra.mxu0 0.0
    %1956 = vmatprep.subr.mxu0 0.0
    %1957 = vmatpush1.xpose.msra.mxu0 0.0
    %1958 = vmatprep.subr.mxu0 0.0
    %1959 = vmatpush1.xpose.msra.mxu0 0.0
    %1960 = vmatprep.subr.mxu0 0.0
    %1961 = vmatpush1.xpose.msra.mxu0 0.0
    %1962 = vmatprep.subr.mxu0 0.0
    %1963 = vmatpush1.xpose.msra.mxu0 0.0
    %1964 = vmatprep.subr.mxu0 0.0
    %1965 = vmatpush1.xpose.msra.mxu0 0.0
    %1966 = vmatprep.subr.mxu0 0.0
    %1967 = vmatpush1.xpose.msra.mxu0 0.0
    %1968 = vmatprep.subr.mxu0 0.0
    %1969 = vmatpush1.xpose.msra.mxu0 0.0
    %1970 = vmatprep.subr.mxu0 0.0
    %1971 = vmatpush1.xpose.msra.mxu0 0.0
    %1972 = vmatprep.subr.mxu0 0.0
    %1973 = vmatpush1.xpose.msra.mxu0 0.0
    %1974 = vmatprep.subr.mxu0 0.0
    %1975 = vmatpush1.xpose.msra.mxu0 0.0
    %1976 = vmatprep.subr.mxu0 0.0
    %1977 = vmatpush1.xpose.msra.mxu0 0.0
    %1978 = vmatprep.subr.mxu0 0.0
    %1979 = vmatpush1.xpose.msra.mxu0 0.0
    %1980 = vmatprep.subr.mxu0 0.0
    %1981 = vmatpush1.xpose.msra.mxu0 0.0
    %1982 = vmatprep.subr.mxu0 0.0
    %1983 = vmatpush1.xpose.msra.mxu0 0.0
    %1984 = vmatprep.subr.mxu0 0.0
    %1985 = vmatpush1.xpose.msra.mxu0 0.0
    %1986 = vmatprep.subr.mxu0 0.0
    %1987 = vmatpush1.xpose.msra.mxu0 0.0
    %1988 = vmatprep.subr.mxu0 0.0
    %1989 = vmatpush1.xpose.msra.mxu0 0.0
    %1990 = vmatprep.subr.mxu0 0.0
    %1991 = vmatpush1.xpose.msra.mxu0 0.0
    %1992 = vmatprep.subr.mxu0 0.0
    %1993 = vmatpush1.xpose.msra.mxu0 0.0
    %1994 = vmatprep.mubr.f32.mxu0 0.0
    %1995 = vmatmul.mubr.f32.gmra.mrb[0].mxu0 %v1926
    %v1996 = vpop.f32.mrb[0].mxu0
    %v1997 = vadd.f32 0.0, %v1996
    %v1998 = vpop.f32.mrb[0].mxu0
    %1999 = vdwg.mxu0
    %2000 = vrot.lane.b32.xlu0 %v1837, 96
    %v2001 = vpop.permute.xlu0 %2000
    %v2002 = vsel %vm209, %v1837, 0
    %v2004 = vsel %vm209, %v2001, 0
    %2006 = vmatprep.subr.mxu0 0.0
    %2007 = vmatpush1.xpose.msra.mxu0 %v2004
    %2008 = vmatprep.subr.mxu0 0.0
    %2009 = vmatpush1.xpose.msra.mxu0 0.0
    %2010 = vmatprep.subr.mxu0 0.0
    %2011 = vmatpush1.xpose.msra.mxu0 0.0
    %2012 = vmatprep.subr.mxu0 0.0
    %2013 = vmatpush1.xpose.msra.mxu0 0.0
    %2014 = vmatprep.subr.mxu0 0.0
    %2015 = vmatpush1.xpose.msra.mxu0 0.0
    %2016 = vmatprep.subr.mxu0 0.0
    %2017 = vmatpush1.xpose.msra.mxu0 0.0
    %2018 = vmatprep.subr.mxu0 0.0
    %2019 = vmatpush1.xpose.msra.mxu0 0.0
    %2020 = vmatprep.subr.mxu0 0.0
    %2021 = vmatpush1.xpose.msra.mxu0 0.0
    %2022 = vmatprep.subr.mxu0 0.0
    %2023 = vmatpush1.xpose.msra.mxu0 0.0
    %2024 = vmatprep.subr.mxu0 0.0
    %2025 = vmatpush1.xpose.msra.mxu0 0.0
    %2026 = vmatprep.subr.mxu0 0.0
    %2027 = vmatpush1.xpose.msra.mxu0 0.0
    %2028 = vmatprep.subr.mxu0 0.0
    %2029 = vmatpush1.xpose.msra.mxu0 0.0
    %2030 = vmatprep.subr.mxu0 0.0
    %2031 = vmatpush1.xpose.msra.mxu0 0.0
    %2032 = vmatprep.subr.mxu0 0.0
    %2033 = vmatpush1.xpose.msra.mxu0 0.0
    %2034 = vmatprep.subr.mxu0 0.0
    %2035 = vmatpush1.xpose.msra.mxu0 0.0
    %2036 = vmatprep.subr.mxu0 0.0
    %2037 = vmatpush1.xpose.msra.mxu0 0.0
    %2038 = vmatprep.subr.mxu0 0.0
    %2039 = vmatpush1.xpose.msra.mxu0 0.0
    %2040 = vmatprep.subr.mxu0 0.0
    %2041 = vmatpush1.xpose.msra.mxu0 0.0
    %2042 = vmatprep.subr.mxu0 0.0
    %2043 = vmatpush1.xpose.msra.mxu0 0.0
    %2044 = vmatprep.subr.mxu0 0.0
    %2045 = vmatpush1.xpose.msra.mxu0 0.0
    %2046 = vmatprep.subr.mxu0 0.0
    %2047 = vmatpush1.xpose.msra.mxu0 0.0
    %2048 = vmatprep.subr.mxu0 0.0
    %2049 = vmatpush1.xpose.msra.mxu0 0.0
    %2050 = vmatprep.subr.mxu0 0.0
    %2051 = vmatpush1.xpose.msra.mxu0 0.0
    %2052 = vmatprep.subr.mxu0 0.0
    %2053 = vmatpush1.xpose.msra.mxu0 0.0
    %2054 = vmatprep.subr.mxu0 0.0
    %2055 = vmatpush1.xpose.msra.mxu0 0.0
    %2056 = vmatprep.subr.mxu0 0.0
    %2057 = vmatpush1.xpose.msra.mxu0 0.0
    %2058 = vmatprep.subr.mxu0 0.0
    %2059 = vmatpush1.xpose.msra.mxu0 0.0
    %2060 = vmatprep.subr.mxu0 0.0
    %2061 = vmatpush1.xpose.msra.mxu0 0.0
    %2062 = vmatprep.subr.mxu0 0.0
    %2063 = vmatpush1.xpose.msra.mxu0 0.0
    %2064 = vmatprep.subr.mxu0 0.0
    %2065 = vmatpush1.xpose.msra.mxu0 0.0
    %2066 = vmatprep.subr.mxu0 0.0
    %2067 = vmatpush1.xpose.msra.mxu0 0.0
    %2068 = vmatprep.subr.mxu0 0.0
    %2069 = vmatpush1.xpose.msra.mxu0 0.0
    %2070 = vmatprep.mubr.f32.mxu0 0.0
    %2071 = vmatmul.mubr.f32.gmra.mrb[0].mxu0 %v2002
    %v2072 = vpop.f32.mrb[0].mxu0
    %v2073 = vadd.f32 0.0, %v2072
    %v2074 = vpop.f32.mrb[0].mxu0
    %2075 = vdwg.mxu0
    %2076 = vrot.lane.b32.xlu0 %v1839, 96
    %v2077 = vpop.permute.xlu0 %2076
    %v2078 = vsel %vm209, %v1839, 0
    %v2080 = vsel %vm209, %v2077, 0
    %2082 = vmatprep.subr.mxu0 0.0
    %2083 = vmatpush1.xpose.msra.mxu0 %v2080
    %2084 = vmatprep.subr.mxu0 0.0
    %2085 = vmatpush1.xpose.msra.mxu0 0.0
    %2086 = vmatprep.subr.mxu0 0.0
    %2087 = vmatpush1.xpose.msra.mxu0 0.0
    %2088 = vmatprep.subr.mxu0 0.0
    %2089 = vmatpush1.xpose.msra.mxu0 0.0
    %2090 = vmatprep.subr.mxu0 0.0
    %2091 = vmatpush1.xpose.msra.mxu0 0.0
    %2092 = vmatprep.subr.mxu0 0.0
    %2093 = vmatpush1.xpose.msra.mxu0 0.0
    %2094 = vmatprep.subr.mxu0 0.0
    %2095 = vmatpush1.xpose.msra.mxu0 0.0
    %2096 = vmatprep.subr.mxu0 0.0
    %2097 = vmatpush1.xpose.msra.mxu0 0.0
    %2098 = vmatprep.subr.mxu0 0.0
    %2099 = vmatpush1.xpose.msra.mxu0 0.0
    %2100 = vmatprep.subr.mxu0 0.0
    %2101 = vmatpush1.xpose.msra.mxu0 0.0
    %2102 = vmatprep.subr.mxu0 0.0
    %2103 = vmatpush1.xpose.msra.mxu0 0.0
    %2104 = vmatprep.subr.mxu0 0.0
    %2105 = vmatpush1.xpose.msra.mxu0 0.0
    %2106 = vmatprep.subr.mxu0 0.0
    %2107 = vmatpush1.xpose.msra.mxu0 0.0
    %2108 = vmatprep.subr.mxu0 0.0
    %2109 = vmatpush1.xpose.msra.mxu0 0.0
    %2110 = vmatprep.subr.mxu0 0.0
    %2111 = vmatpush1.xpose.msra.mxu0 0.0
    %2112 = vmatprep.subr.mxu0 0.0
    %2113 = vmatpush1.xpose.msra.mxu0 0.0
    %2114 = vmatprep.subr.mxu0 0.0
    %2115 = vmatpush1.xpose.msra.mxu0 0.0
    %2116 = vmatprep.subr.mxu0 0.0
    %2117 = vmatpush1.xpose.msra.mxu0 0.0
    %2118 = vmatprep.subr.mxu0 0.0
    %2119 = vmatpush1.xpose.msra.mxu0 0.0
    %2120 = vmatprep.subr.mxu0 0.0
    %2121 = vmatpush1.xpose.msra.mxu0 0.0
    %2122 = vmatprep.subr.mxu0 0.0
    %2123 = vmatpush1.xpose.msra.mxu0 0.0
    %2124 = vmatprep.subr.mxu0 0.0
    %2125 = vmatpush1.xpose.msra.mxu0 0.0
    %2126 = vmatprep.subr.mxu0 0.0
    %2127 = vmatpush1.xpose.msra.mxu0 0.0
    %2128 = vmatprep.subr.mxu0 0.0
    %2129 = vmatpush1.xpose.msra.mxu0 0.0
    %2130 = vmatprep.subr.mxu0 0.0
    %2131 = vmatpush1.xpose.msra.mxu0 0.0
    %2132 = vmatprep.subr.mxu0 0.0
    %2133 = vmatpush1.xpose.msra.mxu0 0.0
    %2134 = vmatprep.subr.mxu0 0.0
    %2135 = vmatpush1.xpose.msra.mxu0 0.0
    %2136 = vmatprep.subr.mxu0 0.0
    %2137 = vmatpush1.xpose.msra.mxu0 0.0
    %2138 = vmatprep.subr.mxu0 0.0
    %2139 = vmatpush1.xpose.msra.mxu0 0.0
    %2140 = vmatprep.subr.mxu0 0.0
    %2141 = vmatpush1.xpose.msra.mxu0 0.0
    %2142 = vmatprep.subr.mxu0 0.0
    %2143 = vmatpush1.xpose.msra.mxu0 0.0
    %2144 = vmatprep.subr.mxu0 0.0
    %2145 = vmatpush1.xpose.msra.mxu0 0.0
    %2146 = vmatprep.mubr.f32.mxu0 0.0
    %2147 = vmatmul.mubr.f32.gmra.mrb[0].mxu0 %v2078
    %v2148 = vpop.f32.mrb[0].mxu0
    %v2149 = vadd.f32 0.0, %v2148
    %v2150 = vpop.f32.mrb[0].mxu0
    %2151 = vdwg.mxu0
    %2152 = vrot.lane.b32.xlu0 %v1841, 96
    %v2153 = vpop.permute.xlu0 %2152
    %v2154 = vsel %vm209, %v1841, 0
    %v2156 = vsel %vm209, %v2153, 0
    %2158 = vmatprep.subr.mxu0 0.0
    %2159 = vmatpush1.xpose.msra.mxu0 %v2156
    %2160 = vmatprep.subr.mxu0 0.0
    %2161 = vmatpush1.xpose.msra.mxu0 0.0
    %2162 = vmatprep.subr.mxu0 0.0
    %2163 = vmatpush1.xpose.msra.mxu0 0.0
    %2164 = vmatprep.subr.mxu0 0.0
    %2165 = vmatpush1.xpose.msra.mxu0 0.0
    %2166 = vmatprep.subr.mxu0 0.0
    %2167 = vmatpush1.xpose.msra.mxu0 0.0
    %2168 = vmatprep.subr.mxu0 0.0
    %2169 = vmatpush1.xpose.msra.mxu0 0.0
    %2170 = vmatprep.subr.mxu0 0.0
    %2171 = vmatpush1.xpose.msra.mxu0 0.0
    %2172 = vmatprep.subr.mxu0 0.0
    %2173 = vmatpush1.xpose.msra.mxu0 0.0
    %2174 = vmatprep.subr.mxu0 0.0
    %2175 = vmatpush1.xpose.msra.mxu0 0.0
    %2176 = vmatprep.subr.mxu0 0.0
    %2177 = vmatpush1.xpose.msra.mxu0 0.0
    %2178 = vmatprep.subr.mxu0 0.0
    %2179 = vmatpush1.xpose.msra.mxu0 0.0
    %2180 = vmatprep.subr.mxu0 0.0
    %2181 = vmatpush1.xpose.msra.mxu0 0.0
    %2182 = vmatprep.subr.mxu0 0.0
    %2183 = vmatpush1.xpose.msra.mxu0 0.0
    %2184 = vmatprep.subr.mxu0 0.0
    %2185 = vmatpush1.xpose.msra.mxu0 0.0
    %2186 = vmatprep.subr.mxu0 0.0
    %2187 = vmatpush1.xpose.msra.mxu0 0.0
    %2188 = vmatprep.subr.mxu0 0.0
    %2189 = vmatpush1.xpose.msra.mxu0 0.0
    %2190 = vmatprep.subr.mxu0 0.0
    %2191 = vmatpush1.xpose.msra.mxu0 0.0
    %2192 = vmatprep.subr.mxu0 0.0
    %2193 = vmatpush1.xpose.msra.mxu0 0.0
    %2194 = vmatprep.subr.mxu0 0.0
    %2195 = vmatpush1.xpose.msra.mxu0 0.0
    %2196 = vmatprep.subr.mxu0 0.0
    %2197 = vmatpush1.xpose.msra.mxu0 0.0
    %2198 = vmatprep.subr.mxu0 0.0
    %2199 = vmatpush1.xpose.msra.mxu0 0.0
    %2200 = vmatprep.subr.mxu0 0.0
    %2201 = vmatpush1.xpose.msra.mxu0 0.0
    %2202 = vmatprep.subr.mxu0 0.0
    %2203 = vmatpush1.xpose.msra.mxu0 0.0
    %2204 = vmatprep.subr.mxu0 0.0
    %2205 = vmatpush1.xpose.msra.mxu0 0.0
    %2206 = vmatprep.subr.mxu0 0.0
    %2207 = vmatpush1.xpose.msra.mxu0 0.0
    %2208 = vmatprep.subr.mxu0 0.0
    %2209 = vmatpush1.xpose.msra.mxu0 0.0
    %2210 = vmatprep.subr.mxu0 0.0
    %2211 = vmatpush1.xpose.msra.mxu0 0.0
    %2212 = vmatprep.subr.mxu0 0.0
    %2213 = vmatpush1.xpose.msra.mxu0 0.0
    %2214 = vmatprep.subr.mxu0 0.0
    %2215 = vmatpush1.xpose.msra.mxu0 0.0
    %2216 = vmatprep.subr.mxu0 0.0
    %2217 = vmatpush1.xpose.msra.mxu0 0.0
    %2218 = vmatprep.subr.mxu0 0.0
    %2219 = vmatpush1.xpose.msra.mxu0 0.0
    %2220 = vmatprep.subr.mxu0 0.0
    %2221 = vmatpush1.xpose.msra.mxu0 0.0
    %2222 = vmatprep.mubr.f32.mxu0 0.0
    %2223 = vmatmul.mubr.f32.gmra.mrb[0].mxu0 %v2154
    %v2224 = vpop.f32.mrb[0].mxu0
    %v2225 = vadd.f32 0.0, %v2224
    %v2226 = vpop.f32.mrb[0].mxu0
    %2227 = vdwg.mxu0
    %2228 = vrot.lane.b32.xlu0 %v1843, 96
    %v2229 = vpop.permute.xlu0 %2228
    %v2230 = vsel %vm209, %v1843, 0
    %v2232 = vsel %vm209, %v2229, 0
    %2234 = vmatprep.subr.mxu0 0.0
    %2235 = vmatpush1.xpose.msra.mxu0 %v2232
    %2236 = vmatprep.subr.mxu0 0.0
    %2237 = vmatpush1.xpose.msra.mxu0 0.0
    %2238 = vmatprep.subr.mxu0 0.0
    %2239 = vmatpush1.xpose.msra.mxu0 0.0
    %2240 = vmatprep.subr.mxu0 0.0
    %2241 = vmatpush1.xpose.msra.mxu0 0.0
    %2242 = vmatprep.subr.mxu0 0.0
    %2243 = vmatpush1.xpose.msra.mxu0 0.0
    %2244 = vmatprep.subr.mxu0 0.0
    %2245 = vmatpush1.xpose.msra.mxu0 0.0
    %2246 = vmatprep.subr.mxu0 0.0
    %2247 = vmatpush1.xpose.msra.mxu0 0.0
    %2248 = vmatprep.subr.mxu0 0.0
    %2249 = vmatpush1.xpose.msra.mxu0 0.0
    %2250 = vmatprep.subr.mxu0 0.0
    %2251 = vmatpush1.xpose.msra.mxu0 0.0
    %2252 = vmatprep.subr.mxu0 0.0
    %2253 = vmatpush1.xpose.msra.mxu0 0.0
    %2254 = vmatprep.subr.mxu0 0.0
    %2255 = vmatpush1.xpose.msra.mxu0 0.0
    %2256 = vmatprep.subr.mxu0 0.0
    %2257 = vmatpush1.xpose.msra.mxu0 0.0
    %2258 = vmatprep.subr.mxu0 0.0
    %2259 = vmatpush1.xpose.msra.mxu0 0.0
    %2260 = vmatprep.subr.mxu0 0.0
    %2261 = vmatpush1.xpose.msra.mxu0 0.0
    %2262 = vmatprep.subr.mxu0 0.0
    %2263 = vmatpush1.xpose.msra.mxu0 0.0
    %2264 = vmatprep.subr.mxu0 0.0
    %2265 = vmatpush1.xpose.msra.mxu0 0.0
    %2266 = vmatprep.subr.mxu0 0.0
    %2267 = vmatpush1.xpose.msra.mxu0 0.0
    %2268 = vmatprep.subr.mxu0 0.0
    %2269 = vmatpush1.xpose.msra.mxu0 0.0
    %2270 = vmatprep.subr.mxu0 0.0
    %2271 = vmatpush1.xpose.msra.mxu0 0.0
    %2272 = vmatprep.subr.mxu0 0.0
    %2273 = vmatpush1.xpose.msra.mxu0 0.0
    %2274 = vmatprep.subr.mxu0 0.0
    %2275 = vmatpush1.xpose.msra.mxu0 0.0
    %2276 = vmatprep.subr.mxu0 0.0
    %2277 = vmatpush1.xpose.msra.mxu0 0.0
    %2278 = vmatprep.subr.mxu0 0.0
    %2279 = vmatpush1.xpose.msra.mxu0 0.0
    %2280 = vmatprep.subr.mxu0 0.0
    %2281 = vmatpush1.xpose.msra.mxu0 0.0
    %2282 = vmatprep.subr.mxu0 0.0
    %2283 = vmatpush1.xpose.msra.mxu0 0.0
    %2284 = vmatprep.subr.mxu0 0.0
    %2285 = vmatpush1.xpose.msra.mxu0 0.0
    %2286 = vmatprep.subr.mxu0 0.0
    %2287 = vmatpush1.xpose.msra.mxu0 0.0
    %2288 = vmatprep.subr.mxu0 0.0
    %2289 = vmatpush1.xpose.msra.mxu0 0.0
    %2290 = vmatprep.subr.mxu0 0.0
    %2291 = vmatpush1.xpose.msra.mxu0 0.0
    %2292 = vmatprep.subr.mxu0 0.0
    %2293 = vmatpush1.xpose.msra.mxu0 0.0
    %2294 = vmatprep.subr.mxu0 0.0
    %2295 = vmatpush1.xpose.msra.mxu0 0.0
    %2296 = vmatprep.subr.mxu0 0.0
    %2297 = vmatpush1.xpose.msra.mxu0 0.0
    %2298 = vmatprep.mubr.f32.mxu0 0.0
    %2299 = vmatmul.mubr.f32.gmra.mrb[0].mxu0 %v2230
    %v2300 = vpop.f32.mrb[0].mxu0
    %v2301 = vadd.f32 0.0, %v2300
    %v2302 = vpop.f32.mrb[0].mxu0
    %2303 = vdwg.mxu0
    %2304 = vrot.lane.b32.xlu0 %v1845, 96
    %v2305 = vpop.permute.xlu0 %2304
    %v2306 = vsel %vm209, %v1845, 0
    %v2308 = vsel %vm209, %v2305, 0
    %2310 = vmatprep.subr.mxu0 0.0
    %2311 = vmatpush1.xpose.msra.mxu0 %v2308
    %2312 = vmatprep.subr.mxu0 0.0
    %2313 = vmatpush1.xpose.msra.mxu0 0.0
    %2314 = vmatprep.subr.mxu0 0.0
    %2315 = vmatpush1.xpose.msra.mxu0 0.0
    %2316 = vmatprep.subr.mxu0 0.0
    %2317 = vmatpush1.xpose.msra.mxu0 0.0
    %2318 = vmatprep.subr.mxu0 0.0
    %2319 = vmatpush1.xpose.msra.mxu0 0.0
    %2320 = vmatprep.subr.mxu0 0.0
    %2321 = vmatpush1.xpose.msra.mxu0 0.0
    %2322 = vmatprep.subr.mxu0 0.0
    %2323 = vmatpush1.xpose.msra.mxu0 0.0
    %2324 = vmatprep.subr.mxu0 0.0
    %2325 = vmatpush1.xpose.msra.mxu0 0.0
    %2326 = vmatprep.subr.mxu0 0.0
    %2327 = vmatpush1.xpose.msra.mxu0 0.0
    %2328 = vmatprep.subr.mxu0 0.0
    %2329 = vmatpush1.xpose.msra.mxu0 0.0
    %2330 = vmatprep.subr.mxu0 0.0
    %2331 = vmatpush1.xpose.msra.mxu0 0.0
    %2332 = vmatprep.subr.mxu0 0.0
    %2333 = vmatpush1.xpose.msra.mxu0 0.0
    %2334 = vmatprep.subr.mxu0 0.0
    %2335 = vmatpush1.xpose.msra.mxu0 0.0
    %2336 = vmatprep.subr.mxu0 0.0
    %2337 = vmatpush1.xpose.msra.mxu0 0.0
    %2338 = vmatprep.subr.mxu0 0.0
    %2339 = vmatpush1.xpose.msra.mxu0 0.0
    %2340 = vmatprep.subr.mxu0 0.0
    %2341 = vmatpush1.xpose.msra.mxu0 0.0
    %2342 = vmatprep.subr.mxu0 0.0
    %2343 = vmatpush1.xpose.msra.mxu0 0.0
    %2344 = vmatprep.subr.mxu0 0.0
    %2345 = vmatpush1.xpose.msra.mxu0 0.0
    %2346 = vmatprep.subr.mxu0 0.0
    %2347 = vmatpush1.xpose.msra.mxu0 0.0
    %2348 = vmatprep.subr.mxu0 0.0
    %2349 = vmatpush1.xpose.msra.mxu0 0.0
    %2350 = vmatprep.subr.mxu0 0.0
    %2351 = vmatpush1.xpose.msra.mxu0 0.0
    %2352 = vmatprep.subr.mxu0 0.0
    %2353 = vmatpush1.xpose.msra.mxu0 0.0
    %2354 = vmatprep.subr.mxu0 0.0
    %2355 = vmatpush1.xpose.msra.mxu0 0.0
    %2356 = vmatprep.subr.mxu0 0.0
    %2357 = vmatpush1.xpose.msra.mxu0 0.0
    %2358 = vmatprep.subr.mxu0 0.0
    %2359 = vmatpush1.xpose.msra.mxu0 0.0
    %2360 = vmatprep.subr.mxu0 0.0
    %2361 = vmatpush1.xpose.msra.mxu0 0.0
    %2362 = vmatprep.subr.mxu0 0.0
    %2363 = vmatpush1.xpose.msra.mxu0 0.0
    %2364 = vmatprep.subr.mxu0 0.0
    %2365 = vmatpush1.xpose.msra.mxu0 0.0
    %2366 = vmatprep.subr.mxu0 0.0
    %2367 = vmatpush1.xpose.msra.mxu0 0.0
    %2368 = vmatprep.subr.mxu0 0.0
    %2369 = vmatpush1.xpose.msra.mxu0 0.0
    %2370 = vmatprep.subr.mxu0 0.0
    %2371 = vmatpush1.xpose.msra.mxu0 0.0
    %2372 = vmatprep.subr.mxu0 0.0
    %2373 = vmatpush1.xpose.msra.mxu0 0.0
    %2374 = vmatprep.mubr.f32.mxu0 0.0
    %2375 = vmatmul.mubr.f32.gmra.mrb[0].mxu0 %v2306
    %v2376 = vpop.f32.mrb[0].mxu0
    %v2377 = vadd.f32 0.0, %v2376
    %v2378 = vpop.f32.mrb[0].mxu0
    %2379 = vdwg.mxu0
    %2380 = vrot.lane.b32.xlu0 %v1847, 96
    %v2381 = vpop.permute.xlu0 %2380
    %v2382 = vsel %vm209, %v1847, 0
    %v2384 = vsel %vm209, %v2381, 0
    %2386 = vmatprep.subr.mxu0 0.0
    %2387 = vmatpush1.xpose.msra.mxu0 %v2384
    %2388 = vmatprep.subr.mxu0 0.0
    %2389 = vmatpush1.xpose.msra.mxu0 0.0
    %2390 = vmatprep.subr.mxu0 0.0
    %2391 = vmatpush1.xpose.msra.mxu0 0.0
    %2392 = vmatprep.subr.mxu0 0.0
    %2393 = vmatpush1.xpose.msra.mxu0 0.0
    %2394 = vmatprep.subr.mxu0 0.0
    %2395 = vmatpush1.xpose.msra.mxu0 0.0
    %2396 = vmatprep.subr.mxu0 0.0
    %2397 = vmatpush1.xpose.msra.mxu0 0.0
    %2398 = vmatprep.subr.mxu0 0.0
    %2399 = vmatpush1.xpose.msra.mxu0 0.0
    %2400 = vmatprep.subr.mxu0 0.0
    %2401 = vmatpush1.xpose.msra.mxu0 0.0
    %2402 = vmatprep.subr.mxu0 0.0
    %2403 = vmatpush1.xpose.msra.mxu0 0.0
    %2404 = vmatprep.subr.mxu0 0.0
    %2405 = vmatpush1.xpose.msra.mxu0 0.0
    %2406 = vmatprep.subr.mxu0 0.0
    %2407 = vmatpush1.xpose.msra.mxu0 0.0
    %2408 = vmatprep.subr.mxu0 0.0
    %2409 = vmatpush1.xpose.msra.mxu0 0.0
    %2410 = vmatprep.subr.mxu0 0.0
    %2411 = vmatpush1.xpose.msra.mxu0 0.0
    %2412 = vmatprep.subr.mxu0 0.0
    %2413 = vmatpush1.xpose.msra.mxu0 0.0
    %2414 = vmatprep.subr.mxu0 0.0
    %2415 = vmatpush1.xpose.msra.mxu0 0.0
    %2416 = vmatprep.subr.mxu0 0.0
    %2417 = vmatpush1.xpose.msra.mxu0 0.0
    %2418 = vmatprep.subr.mxu0 0.0
    %2419 = vmatpush1.xpose.msra.mxu0 0.0
    %2420 = vmatprep.subr.mxu0 0.0
    %2421 = vmatpush1.xpose.msra.mxu0 0.0
    %2422 = vmatprep.subr.mxu0 0.0
    %2423 = vmatpush1.xpose.msra.mxu0 0.0
    %2424 = vmatprep.subr.mxu0 0.0
    %2425 = vmatpush1.xpose.msra.mxu0 0.0
    %2426 = vmatprep.subr.mxu0 0.0
    %2427 = vmatpush1.xpose.msra.mxu0 0.0
    %2428 = vmatprep.subr.mxu0 0.0
    %2429 = vmatpush1.xpose.msra.mxu0 0.0
    %2430 = vmatprep.subr.mxu0 0.0
    %2431 = vmatpush1.xpose.msra.mxu0 0.0
    %2432 = vmatprep.subr.mxu0 0.0
    %2433 = vmatpush1.xpose.msra.mxu0 0.0
    %2434 = vmatprep.subr.mxu0 0.0
    %2435 = vmatpush1.xpose.msra.mxu0 0.0
    %2436 = vmatprep.subr.mxu0 0.0
    %2437 = vmatpush1.xpose.msra.mxu0 0.0
    %2438 = vmatprep.subr.mxu0 0.0
    %2439 = vmatpush1.xpose.msra.mxu0 0.0
    %2440 = vmatprep.subr.mxu0 0.0
    %2441 = vmatpush1.xpose.msra.mxu0 0.0
    %2442 = vmatprep.subr.mxu0 0.0
    %2443 = vmatpush1.xpose.msra.mxu0 0.0
    %2444 = vmatprep.subr.mxu0 0.0
    %2445 = vmatpush1.xpose.msra.mxu0 0.0
    %2446 = vmatprep.subr.mxu0 0.0
    %2447 = vmatpush1.xpose.msra.mxu0 0.0
    %2448 = vmatprep.subr.mxu0 0.0
    %2449 = vmatpush1.xpose.msra.mxu0 0.0
    %2450 = vmatprep.mubr.f32.mxu0 0.0
    %2451 = vmatmul.mubr.f32.gmra.mrb[0].mxu0 %v2382
    %v2452 = vpop.f32.mrb[0].mxu0
    %v2453 = vadd.f32 0.0, %v2452
    %v2454 = vpop.f32.mrb[0].mxu0
    %2455 = vdwg.mxu0
    %v2456 = vsel %vm817, %v1921, -inf
    %v2457 = vsel %vm817, %v1997, -inf
    %v2458 = vsel %vm817, %v2073, -inf
    %v2459 = vsel %vm817, %v2149, -inf
    %v2460 = vsel %vm817, %v2225, -inf
    %v2461 = vsel %vm817, %v2301, -inf
    %v2462 = vsel %vm817, %v2377, -inf
    %v2463 = vsel %vm817, %v2453, -inf
    %v2464 = vsel %vm209, %v2456, -inf
    %2465 = vmax.xlane.f32.xlu0 %v2464
    %v2466 = vpop.xlane.xlu0 %2465
    %v2467 = vsel %vm209, %v2457, -inf
    %2468 = vmax.xlane.f32.xlu0 %v2467
    %v2469 = vpop.xlane.xlu0 %2468
    %v2470 = vsel %vm209, %v2458, -inf
    %2471 = vmax.xlane.f32.xlu0 %v2470
    %v2472 = vpop.xlane.xlu0 %2471
    %v2473 = vsel %vm209, %v2459, -inf
    %2474 = vmax.xlane.f32.xlu0 %v2473
    %v2475 = vpop.xlane.xlu0 %2474
    %v2476 = vsel %vm209, %v2460, -inf
    %2477 = vmax.xlane.f32.xlu0 %v2476
    %v2478 = vpop.xlane.xlu0 %2477
    %v2479 = vsel %vm209, %v2461, -inf
    %2480 = vmax.xlane.f32.xlu0 %v2479
    %v2481 = vpop.xlane.xlu0 %2480
    %v2482 = vsel %vm209, %v2462, -inf
    %2483 = vmax.xlane.f32.xlu0 %v2482
    %v2484 = vpop.xlane.xlu0 %2483
    %v2485 = vsel %vm209, %v2463, -inf
    %2486 = vmax.xlane.f32.xlu0 %v2485
    %v2487 = vpop.xlane.xlu0 %2486
    %v2488 = vsub.f32 %v2456, %v2466
    %v2489 = vsub.f32 %v2457, %v2469
    %v2490 = vsub.f32 %v2458, %v2472
    %v2491 = vsub.f32 %v2459, %v2475
    %v2492 = vsub.f32 %v2460, %v2478
    %v2493 = vsub.f32 %v2461, %v2481
    %v2494 = vsub.f32 %v2462, %v2484
    %v2495 = vsub.f32 %v2463, %v2487
    %v2496 = vmul.f32 %v2488, 1.442695
    %v2497 = vpow.pop %v2496
    %v2498 = vmul.f32 %v2489, 1.442695
    %v2499 = vpow.pop %v2498
    %v2500 = vmul.f32 %v2490, 1.442695
    %v2501 = vpow.pop %v2500
    %v2502 = vmul.f32 %v2491, 1.442695
    %v2503 = vpow.pop %v2502
    %v2504 = vmul.f32 %v2492, 1.442695
    %v2505 = vpow.pop %v2504
    %v2506 = vmul.f32 %v2493, 1.442695
    %v2507 = vpow.pop %v2506
    %v2508 = vmul.f32 %v2494, 1.442695
    %v2509 = vpow.pop %v2508
    %v2510 = vmul.f32 %v2495, 1.442695
    %v2511 = vpow.pop %v2510
    %v2512 = vsel %vm209, %v2497, 0.0
    %2513 = vadd.xlane.f32.xlu0 %v2512
    %v2514 = vpop.xlane.xlu0 %2513
    %v2515 = vsel %vm209, %v2499, 0.0
    %2516 = vadd.xlane.f32.xlu0 %v2515
    %v2517 = vpop.xlane.xlu0 %2516
    %v2518 = vsel %vm209, %v2501, 0.0
    %2519 = vadd.xlane.f32.xlu0 %v2518
    %v2520 = vpop.xlane.xlu0 %2519
    %v2521 = vsel %vm209, %v2503, 0.0
    %2522 = vadd.xlane.f32.xlu0 %v2521
    %v2523 = vpop.xlane.xlu0 %2522
    %v2524 = vsel %vm209, %v2505, 0.0
    %2525 = vadd.xlane.f32.xlu0 %v2524
    %v2526 = vpop.xlane.xlu0 %2525
    %v2527 = vsel %vm209, %v2507, 0.0
    %2528 = vadd.xlane.f32.xlu0 %v2527
    %v2529 = vpop.xlane.xlu0 %2528
    %v2530 = vsel %vm209, %v2509, 0.0
    %2531 = vadd.xlane.f32.xlu0 %v2530
    %v2532 = vpop.xlane.xlu0 %2531
    %v2533 = vsel %vm209, %v2511, 0.0
    %2534 = vadd.xlane.f32.xlu0 %v2533
    %v2535 = vpop.xlane.xlu0 %2534
    %v2536 = vrcp.pop %v2514
    %v2537 = vrcp.pop %v2517
    %v2538 = vrcp.pop %v2520
    %v2539 = vrcp.pop %v2523
    %v2540 = vrcp.pop %v2526
    %v2541 = vrcp.pop %v2529
    %v2542 = vrcp.pop %v2532
    %v2543 = vrcp.pop %v2535
    %v2544 = vmul.f32 %v2497, %v2536
    %v2545 = vmul.f32 %v2499, %v2537
    %v2546 = vmul.f32 %v2501, %v2538
    %v2547 = vmul.f32 %v2503, %v2539
    %v2548 = vmul.f32 %v2505, %v2540
    %v2549 = vmul.f32 %v2507, %v2541
    %v2550 = vmul.f32 %v2509, %v2542
    %v2551 = vmul.f32 %v2511, %v2543
    %2552 = vrot.lane.b32.xlu0 %v1826, 64
    %v2553 = vpop.permute.xlu0 %2552
    %v2556 = vsel %vm209, %v2544, 0
    %2558 = vmatprep.subr.mxu0 0.0
    %2559 = vmatpush1.msra.mxu0 %v2553
    %2560 = vmatprep.subr.mxu0 0.0
    %2561 = vmatpush1.msra.mxu0 0.0
    %2562 = vmatprep.subr.mxu0 0.0
    %2563 = vmatpush1.msra.mxu0 0.0
    %2564 = vmatprep.subr.mxu0 0.0
    %2565 = vmatpush1.msra.mxu0 0.0
    %2566 = vmatprep.subr.mxu0 0.0
    %2567 = vmatpush1.msra.mxu0 0.0
    %2568 = vmatprep.subr.mxu0 0.0
    %2569 = vmatpush1.msra.mxu0 0.0
    %2570 = vmatprep.subr.mxu0 0.0
    %2571 = vmatpush1.msra.mxu0 0.0
    %2572 = vmatprep.subr.mxu0 0.0
    %2573 = vmatpush1.msra.mxu0 0.0
    %2574 = vmatprep.subr.mxu0 0.0
    %2575 = vmatpush1.msra.mxu0 0.0
    %2576 = vmatprep.subr.mxu0 0.0
    %2577 = vmatpush1.msra.mxu0 0.0
    %2578 = vmatprep.subr.mxu0 0.0
    %2579 = vmatpush1.msra.mxu0 0.0
    %2580 = vmatprep.subr.mxu0 0.0
    %2581 = vmatpush1.msra.mxu0 0.0
    %2582 = vmatprep.subr.mxu0 0.0
    %2583 = vmatpush1.msra.mxu0 0.0
    %2584 = vmatprep.subr.mxu0 0.0
    %2585 = vmatpush1.msra.mxu0 0.0
    %2586 = vmatprep.subr.mxu0 0.0
    %2587 = vmatpush1.msra.mxu0 0.0
    %2588 = vmatprep.subr.mxu0 0.0
    %2589 = vmatpush1.msra.mxu0 0.0
    %2590 = vmatprep.subr.mxu0 0.0
    %2591 = vmatpush1.msra.mxu0 0.0
    %2592 = vmatprep.subr.mxu0 0.0
    %2593 = vmatpush1.msra.mxu0 0.0
    %2594 = vmatprep.subr.mxu0 0.0
    %2595 = vmatpush1.msra.mxu0 0.0
    %2596 = vmatprep.subr.mxu0 0.0
    %2597 = vmatpush1.msra.mxu0 0.0
    %2598 = vmatprep.subr.mxu0 0.0
    %2599 = vmatpush1.msra.mxu0 0.0
    %2600 = vmatprep.subr.mxu0 0.0
    %2601 = vmatpush1.msra.mxu0 0.0
    %2602 = vmatprep.subr.mxu0 0.0
    %2603 = vmatpush1.msra.mxu0 0.0
    %2604 = vmatprep.subr.mxu0 0.0
    %2605 = vmatpush1.msra.mxu0 0.0
    %2606 = vmatprep.subr.mxu0 0.0
    %2607 = vmatpush1.msra.mxu0 0.0
    %2608 = vmatprep.subr.mxu0 0.0
    %2609 = vmatpush1.msra.mxu0 0.0
    %2610 = vmatprep.subr.mxu0 0.0
    %2611 = vmatpush1.msra.mxu0 0.0
    %2612 = vmatprep.subr.mxu0 0.0
    %2613 = vmatpush1.msra.mxu0 0.0
    %2614 = vmatprep.subr.mxu0 0.0
    %2615 = vmatpush1.msra.mxu0 0.0
    %2616 = vmatprep.subr.mxu0 0.0
    %2617 = vmatpush1.msra.mxu0 0.0
    %2618 = vmatprep.subr.mxu0 0.0
    %2619 = vmatpush1.msra.mxu0 0.0
    %2620 = vmatprep.subr.mxu0 0.0
    %2621 = vmatpush1.msra.mxu0 0.0
    %2622 = vmatprep.mubr.f32.mxu0 0.0
    %2623 = vmatmul.mubr.f32.gmra.mrb[0].mxu0 %v2556
    %v2624 = vpop.f32.mrb[0].mxu0
    %v2625 = vadd.f32 0.0, %v2624
    %v2626 = vpop.f32.mrb[0].mxu0
    %2627 = vdwg.mxu0
    %2628 = vrot.lane.b32.xlu0 %v1831, 64
    %v2629 = vpop.permute.xlu0 %2628
    %v2632 = vsel %vm209, %v2545, 0
    %2634 = vmatprep.subr.mxu0 0.0
    %2635 = vmatpush1.msra.mxu0 %v2629
    %2636 = vmatprep.subr.mxu0 0.0
    %2637 = vmatpush1.msra.mxu0 0.0
    %2638 = vmatprep.subr.mxu0 0.0
    %2639 = vmatpush1.msra.mxu0 0.0
    %2640 = vmatprep.subr.mxu0 0.0
    %2641 = vmatpush1.msra.mxu0 0.0
    %2642 = vmatprep.subr.mxu0 0.0
    %2643 = vmatpush1.msra.mxu0 0.0
    %2644 = vmatprep.subr.mxu0 0.0
    %2645 = vmatpush1.msra.mxu0 0.0
    %2646 = vmatprep.subr.mxu0 0.0
    %2647 = vmatpush1.msra.mxu0 0.0
    %2648 = vmatprep.subr.mxu0 0.0
    %2649 = vmatpush1.msra.mxu0 0.0
    %2650 = vmatprep.subr.mxu0 0.0
    %2651 = vmatpush1.msra.mxu0 0.0
    %2652 = vmatprep.subr.mxu0 0.0
    %2653 = vmatpush1.msra.mxu0 0.0
    %2654 = vmatprep.subr.mxu0 0.0
    %2655 = vmatpush1.msra.mxu0 0.0
    %2656 = vmatprep.subr.mxu0 0.0
    %2657 = vmatpush1.msra.mxu0 0.0
    %2658 = vmatprep.subr.mxu0 0.0
    %2659 = vmatpush1.msra.mxu0 0.0
    %2660 = vmatprep.subr.mxu0 0.0
    %2661 = vmatpush1.msra.mxu0 0.0
    %2662 = vmatprep.subr.mxu0 0.0
    %2663 = vmatpush1.msra.mxu0 0.0
    %2664 = vmatprep.subr.mxu0 0.0
    %2665 = vmatpush1.msra.mxu0 0.0
    %2666 = vmatprep.subr.mxu0 0.0
    %2667 = vmatpush1.msra.mxu0 0.0
    %2668 = vmatprep.subr.mxu0 0.0
    %2669 = vmatpush1.msra.mxu0 0.0
    %2670 = vmatprep.subr.mxu0 0.0
    %2671 = vmatpush1.msra.mxu0 0.0
    %2672 = vmatprep.subr.mxu0 0.0
    %2673 = vmatpush1.msra.mxu0 0.0
    %2674 = vmatprep.subr.mxu0 0.0
    %2675 = vmatpush1.msra.mxu0 0.0
    %2676 = vmatprep.subr.mxu0 0.0
    %2677 = vmatpush1.msra.mxu0 0.0
    %2678 = vmatprep.subr.mxu0 0.0
    %2679 = vmatpush1.msra.mxu0 0.0
    %2680 = vmatprep.subr.mxu0 0.0
    %2681 = vmatpush1.msra.mxu0 0.0
    %2682 = vmatprep.subr.mxu0 0.0
    %2683 = vmatpush1.msra.mxu0 0.0
    %2684 = vmatprep.subr.mxu0 0.0
    %2685 = vmatpush1.msra.mxu0 0.0
    %2686 = vmatprep.subr.mxu0 0.0
    %2687 = vmatpush1.msra.mxu0 0.0
    %2688 = vmatprep.subr.mxu0 0.0
    %2689 = vmatpush1.msra.mxu0 0.0
    %2690 = vmatprep.subr.mxu0 0.0
    %2691 = vmatpush1.msra.mxu0 0.0
    %2692 = vmatprep.subr.mxu0 0.0
    %2693 = vmatpush1.msra.mxu0 0.0
    %2694 = vmatprep.subr.mxu0 0.0
    %2695 = vmatpush1.msra.mxu0 0.0
    %2696 = vmatprep.subr.mxu0 0.0
    %2697 = vmatpush1.msra.mxu0 0.0
    %2698 = vmatprep.mubr.f32.mxu0 0.0
    %2699 = vmatmul.mubr.f32.gmra.mrb[0].mxu0 %v2632
    %v2700 = vpop.f32.mrb[0].mxu0
    %v2701 = vadd.f32 0.0, %v2700
    %v2702 = vpop.f32.mrb[0].mxu0
    %2703 = vdwg.mxu0
    %2704 = vrot.lane.b32.xlu0 %v1837, 64
    %v2705 = vpop.permute.xlu0 %2704
    %v2708 = vsel %vm209, %v2546, 0
    %2710 = vmatprep.subr.mxu0 0.0
    %2711 = vmatpush1.msra.mxu0 %v2705
    %2712 = vmatprep.subr.mxu0 0.0
    %2713 = vmatpush1.msra.mxu0 0.0
    %2714 = vmatprep.subr.mxu0 0.0
    %2715 = vmatpush1.msra.mxu0 0.0
    %2716 = vmatprep.subr.mxu0 0.0
    %2717 = vmatpush1.msra.mxu0 0.0
    %2718 = vmatprep.subr.mxu0 0.0
    %2719 = vmatpush1.msra.mxu0 0.0
    %2720 = vmatprep.subr.mxu0 0.0
    %2721 = vmatpush1.msra.mxu0 0.0
    %2722 = vmatprep.subr.mxu0 0.0
    %2723 = vmatpush1.msra.mxu0 0.0
    %2724 = vmatprep.subr.mxu0 0.0
    %2725 = vmatpush1.msra.mxu0 0.0
    %2726 = vmatprep.subr.mxu0 0.0
    %2727 = vmatpush1.msra.mxu0 0.0
    %2728 = vmatprep.subr.mxu0 0.0
    %2729 = vmatpush1.msra.mxu0 0.0
    %2730 = vmatprep.subr.mxu0 0.0
    %2731 = vmatpush1.msra.mxu0 0.0
    %2732 = vmatprep.subr.mxu0 0.0
    %2733 = vmatpush1.msra.mxu0 0.0
    %2734 = vmatprep.subr.mxu0 0.0
    %2735 = vmatpush1.msra.mxu0 0.0
    %2736 = vmatprep.subr.mxu0 0.0
    %2737 = vmatpush1.msra.mxu0 0.0
    %2738 = vmatprep.subr.mxu0 0.0
    %2739 = vmatpush1.msra.mxu0 0.0
    %2740 = vmatprep.subr.mxu0 0.0
    %2741 = vmatpush1.msra.mxu0 0.0
    %2742 = vmatprep.subr.mxu0 0.0
    %2743 = vmatpush1.msra.mxu0 0.0
    %2744 = vmatprep.subr.mxu0 0.0
    %2745 = vmatpush1.msra.mxu0 0.0
    %2746 = vmatprep.subr.mxu0 0.0
    %2747 = vmatpush1.msra.mxu0 0.0
    %2748 = vmatprep.subr.mxu0 0.0
    %2749 = vmatpush1.msra.mxu0 0.0
    %2750 = vmatprep.subr.mxu0 0.0
    %2751 = vmatpush1.msra.mxu0 0.0
    %2752 = vmatprep.subr.mxu0 0.0
    %2753 = vmatpush1.msra.mxu0 0.0
    %2754 = vmatprep.subr.mxu0 0.0
    %2755 = vmatpush1.msra.mxu0 0.0
    %2756 = vmatprep.subr.mxu0 0.0
    %2757 = vmatpush1.msra.mxu0 0.0
    %2758 = vmatprep.subr.mxu0 0.0
    %2759 = vmatpush1.msra.mxu0 0.0
    %2760 = vmatprep.subr.mxu0 0.0
    %2761 = vmatpush1.msra.mxu0 0.0
    %2762 = vmatprep.subr.mxu0 0.0
    %2763 = vmatpush1.msra.mxu0 0.0
    %2764 = vmatprep.subr.mxu0 0.0
    %2765 = vmatpush1.msra.mxu0 0.0
    %2766 = vmatprep.subr.mxu0 0.0
    %2767 = vmatpush1.msra.mxu0 0.0
    %2768 = vmatprep.subr.mxu0 0.0
    %2769 = vmatpush1.msra.mxu0 0.0
    %2770 = vmatprep.subr.mxu0 0.0
    %2771 = vmatpush1.msra.mxu0 0.0
    %2772 = vmatprep.subr.mxu0 0.0
    %2773 = vmatpush1.msra.mxu0 0.0
    %2774 = vmatprep.mubr.f32.mxu0 0.0
    %2775 = vmatmul.mubr.f32.gmra.mrb[0].mxu0 %v2708
    %v2776 = vpop.f32.mrb[0].mxu0
    %v2777 = vadd.f32 0.0, %v2776
    %v2778 = vpop.f32.mrb[0].mxu0
    %2779 = vdwg.mxu0
    %2780 = vrot.lane.b32.xlu0 %v1839, 64
    %v2781 = vpop.permute.xlu0 %2780
    %v2784 = vsel %vm209, %v2547, 0
    %2786 = vmatprep.subr.mxu0 0.0
    %2787 = vmatpush1.msra.mxu0 %v2781
    %2788 = vmatprep.subr.mxu0 0.0
    %2789 = vmatpush1.msra.mxu0 0.0
    %2790 = vmatprep.subr.mxu0 0.0
    %2791 = vmatpush1.msra.mxu0 0.0
    %2792 = vmatprep.subr.mxu0 0.0
    %2793 = vmatpush1.msra.mxu0 0.0
    %2794 = vmatprep.subr.mxu0 0.0
    %2795 = vmatpush1.msra.mxu0 0.0
    %2796 = vmatprep.subr.mxu0 0.0
    %2797 = vmatpush1.msra.mxu0 0.0
    %2798 = vmatprep.subr.mxu0 0.0
    %2799 = vmatpush1.msra.mxu0 0.0
    %2800 = vmatprep.subr.mxu0 0.0
    %2801 = vmatpush1.msra.mxu0 0.0
    %2802 = vmatprep.subr.mxu0 0.0
    %2803 = vmatpush1.msra.mxu0 0.0
    %2804 = vmatprep.subr.mxu0 0.0
    %2805 = vmatpush1.msra.mxu0 0.0
    %2806 = vmatprep.subr.mxu0 0.0
    %2807 = vmatpush1.msra.mxu0 0.0
    %2808 = vmatprep.subr.mxu0 0.0
    %2809 = vmatpush1.msra.mxu0 0.0
    %2810 = vmatprep.subr.mxu0 0.0
    %2811 = vmatpush1.msra.mxu0 0.0
    %2812 = vmatprep.subr.mxu0 0.0
    %2813 = vmatpush1.msra.mxu0 0.0
    %2814 = vmatprep.subr.mxu0 0.0
    %2815 = vmatpush1.msra.mxu0 0.0
    %2816 = vmatprep.subr.mxu0 0.0
    %2817 = vmatpush1.msra.mxu0 0.0
    %2818 = vmatprep.subr.mxu0 0.0
    %2819 = vmatpush1.msra.mxu0 0.0
    %2820 = vmatprep.subr.mxu0 0.0
    %2821 = vmatpush1.msra.mxu0 0.0
    %2822 = vmatprep.subr.mxu0 0.0
    %2823 = vmatpush1.msra.mxu0 0.0
    %2824 = vmatprep.subr.mxu0 0.0
    %2825 = vmatpush1.msra.mxu0 0.0
    %2826 = vmatprep.subr.mxu0 0.0
    %2827 = vmatpush1.msra.mxu0 0.0
    %2828 = vmatprep.subr.mxu0 0.0
    %2829 = vmatpush1.msra.mxu0 0.0
    %2830 = vmatprep.subr.mxu0 0.0
    %2831 = vmatpush1.msra.mxu0 0.0
    %2832 = vmatprep.subr.mxu0 0.0
    %2833 = vmatpush1.msra.mxu0 0.0
    %2834 = vmatprep.subr.mxu0 0.0
    %2835 = vmatpush1.msra.mxu0 0.0
    %2836 = vmatprep.subr.mxu0 0.0
    %2837 = vmatpush1.msra.mxu0 0.0
    %2838 = vmatprep.subr.mxu0 0.0
    %2839 = vmatpush1.msra.mxu0 0.0
    %2840 = vmatprep.subr.mxu0 0.0
    %2841 = vmatpush1.msra.mxu0 0.0
    %2842 = vmatprep.subr.mxu0 0.0
    %2843 = vmatpush1.msra.mxu0 0.0
    %2844 = vmatprep.subr.mxu0 0.0
    %2845 = vmatpush1.msra.mxu0 0.0
    %2846 = vmatprep.subr.mxu0 0.0
    %2847 = vmatpush1.msra.mxu0 0.0
    %2848 = vmatprep.subr.mxu0 0.0
    %2849 = vmatpush1.msra.mxu0 0.0
    %2850 = vmatprep.mubr.f32.mxu0 0.0
    %2851 = vmatmul.mubr.f32.gmra.mrb[0].mxu0 %v2784
    %v2852 = vpop.f32.mrb[0].mxu0
    %v2853 = vadd.f32 0.0, %v2852
    %v2854 = vpop.f32.mrb[0].mxu0
    %2855 = vdwg.mxu0
    %2856 = vrot.lane.b32.xlu0 %v1841, 64
    %v2857 = vpop.permute.xlu0 %2856
    %v2860 = vsel %vm209, %v2548, 0
    %2862 = vmatprep.subr.mxu0 0.0
    %2863 = vmatpush1.msra.mxu0 %v2857
    %2864 = vmatprep.subr.mxu0 0.0
    %2865 = vmatpush1.msra.mxu0 0.0
    %2866 = vmatprep.subr.mxu0 0.0
    %2867 = vmatpush1.msra.mxu0 0.0
    %2868 = vmatprep.subr.mxu0 0.0
    %2869 = vmatpush1.msra.mxu0 0.0
    %2870 = vmatprep.subr.mxu0 0.0
    %2871 = vmatpush1.msra.mxu0 0.0
    %2872 = vmatprep.subr.mxu0 0.0
    %2873 = vmatpush1.msra.mxu0 0.0
    %2874 = vmatprep.subr.mxu0 0.0
    %2875 = vmatpush1.msra.mxu0 0.0
    %2876 = vmatprep.subr.mxu0 0.0
    %2877 = vmatpush1.msra.mxu0 0.0
    %2878 = vmatprep.subr.mxu0 0.0
    %2879 = vmatpush1.msra.mxu0 0.0
    %2880 = vmatprep.subr.mxu0 0.0
    %2881 = vmatpush1.msra.mxu0 0.0
    %2882 = vmatprep.subr.mxu0 0.0
    %2883 = vmatpush1.msra.mxu0 0.0
    %2884 = vmatprep.subr.mxu0 0.0
    %2885 = vmatpush1.msra.mxu0 0.0
    %2886 = vmatprep.subr.mxu0 0.0
    %2887 = vmatpush1.msra.mxu0 0.0
    %2888 = vmatprep.subr.mxu0 0.0
    %2889 = vmatpush1.msra.mxu0 0.0
    %2890 = vmatprep.subr.mxu0 0.0
    %2891 = vmatpush1.msra.mxu0 0.0
    %2892 = vmatprep.subr.mxu0 0.0
    %2893 = vmatpush1.msra.mxu0 0.0
    %2894 = vmatprep.subr.mxu0 0.0
    %2895 = vmatpush1.msra.mxu0 0.0
    %2896 = vmatprep.subr.mxu0 0.0
    %2897 = vmatpush1.msra.mxu0 0.0
    %2898 = vmatprep.subr.mxu0 0.0
    %2899 = vmatpush1.msra.mxu0 0.0
    %2900 = vmatprep.subr.mxu0 0.0
    %2901 = vmatpush1.msra.mxu0 0.0
    %2902 = vmatprep.subr.mxu0 0.0
    %2903 = vmatpush1.msra.mxu0 0.0
    %2904 = vmatprep.subr.mxu0 0.0
    %2905 = vmatpush1.msra.mxu0 0.0
    %2906 = vmatprep.subr.mxu0 0.0
    %2907 = vmatpush1.msra.mxu0 0.0
    %2908 = vmatprep.subr.mxu0 0.0
    %2909 = vmatpush1.msra.mxu0 0.0
    %2910 = vmatprep.subr.mxu0 0.0
    %2911 = vmatpush1.msra.mxu0 0.0
    %2912 = vmatprep.subr.mxu0 0.0
    %2913 = vmatpush1.msra.mxu0 0.0
    %2914 = vmatprep.subr.mxu0 0.0
    %2915 = vmatpush1.msra.mxu0 0.0
    %2916 = vmatprep.subr.mxu0 0.0
    %2917 = vmatpush1.msra.mxu0 0.0
    %2918 = vmatprep.subr.mxu0 0.0
    %2919 = vmatpush1.msra.mxu0 0.0
    %2920 = vmatprep.subr.mxu0 0.0
    %2921 = vmatpush1.msra.mxu0 0.0
    %2922 = vmatprep.subr.mxu0 0.0
    %2923 = vmatpush1.msra.mxu0 0.0
    %2924 = vmatprep.subr.mxu0 0.0
    %2925 = vmatpush1.msra.mxu0 0.0
    %2926 = vmatprep.mubr.f32.mxu0 0.0
    %2927 = vmatmul.mubr.f32.gmra.mrb[0].mxu0 %v2860
    %v2928 = vpop.f32.mrb[0].mxu0
    %v2929 = vadd.f32 0.0, %v2928
    %v2930 = vpop.f32.mrb[0].mxu0
    %2931 = vdwg.mxu0
    %2932 = vrot.lane.b32.xlu0 %v1843, 64
    %v2933 = vpop.permute.xlu0 %2932
    %v2936 = vsel %vm209, %v2549, 0
    %2938 = vmatprep.subr.mxu0 0.0
    %2939 = vmatpush1.msra.mxu0 %v2933
    %2940 = vmatprep.subr.mxu0 0.0
    %2941 = vmatpush1.msra.mxu0 0.0
    %2942 = vmatprep.subr.mxu0 0.0
    %2943 = vmatpush1.msra.mxu0 0.0
    %2944 = vmatprep.subr.mxu0 0.0
    %2945 = vmatpush1.msra.mxu0 0.0
    %2946 = vmatprep.subr.mxu0 0.0
    %2947 = vmatpush1.msra.mxu0 0.0
    %2948 = vmatprep.subr.mxu0 0.0
    %2949 = vmatpush1.msra.mxu0 0.0
    %2950 = vmatprep.subr.mxu0 0.0
    %2951 = vmatpush1.msra.mxu0 0.0
    %2952 = vmatprep.subr.mxu0 0.0
    %2953 = vmatpush1.msra.mxu0 0.0
    %2954 = vmatprep.subr.mxu0 0.0
    %2955 = vmatpush1.msra.mxu0 0.0
    %2956 = vmatprep.subr.mxu0 0.0
    %2957 = vmatpush1.msra.mxu0 0.0
    %2958 = vmatprep.subr.mxu0 0.0
    %2959 = vmatpush1.msra.mxu0 0.0
    %2960 = vmatprep.subr.mxu0 0.0
    %2961 = vmatpush1.msra.mxu0 0.0
    %2962 = vmatprep.subr.mxu0 0.0
    %2963 = vmatpush1.msra.mxu0 0.0
    %2964 = vmatprep.subr.mxu0 0.0
    %2965 = vmatpush1.msra.mxu0 0.0
    %2966 = vmatprep.subr.mxu0 0.0
    %2967 = vmatpush1.msra.mxu0 0.0
    %2968 = vmatprep.subr.mxu0 0.0
    %2969 = vmatpush1.msra.mxu0 0.0
    %2970 = vmatprep.subr.mxu0 0.0
    %2971 = vmatpush1.msra.mxu0 0.0
    %2972 = vmatprep.subr.mxu0 0.0
    %2973 = vmatpush1.msra.mxu0 0.0
    %2974 = vmatprep.subr.mxu0 0.0
    %2975 = vmatpush1.msra.mxu0 0.0
    %2976 = vmatprep.subr.mxu0 0.0
    %2977 = vmatpush1.msra.mxu0 0.0
    %2978 = vmatprep.subr.mxu0 0.0
    %2979 = vmatpush1.msra.mxu0 0.0
    %2980 = vmatprep.subr.mxu0 0.0
    %2981 = vmatpush1.msra.mxu0 0.0
    %2982 = vmatprep.subr.mxu0 0.0
    %2983 = vmatpush1.msra.mxu0 0.0
    %2984 = vmatprep.subr.mxu0 0.0
    %2985 = vmatpush1.msra.mxu0 0.0
    %2986 = vmatprep.subr.mxu0 0.0
    %2987 = vmatpush1.msra.mxu0 0.0
    %2988 = vmatprep.subr.mxu0 0.0
    %2989 = vmatpush1.msra.mxu0 0.0
    %2990 = vmatprep.subr.mxu0 0.0
    %2991 = vmatpush1.msra.mxu0 0.0
    %2992 = vmatprep.subr.mxu0 0.0
    %2993 = vmatpush1.msra.mxu0 0.0
    %2994 = vmatprep.subr.mxu0 0.0
    %2995 = vmatpush1.msra.mxu0 0.0
    %2996 = vmatprep.subr.mxu0 0.0
    %2997 = vmatpush1.msra.mxu0 0.0
    %2998 = vmatprep.subr.mxu0 0.0
    %2999 = vmatpush1.msra.mxu0 0.0
    %3000 = vmatprep.subr.mxu0 0.0
    %3001 = vmatpush1.msra.mxu0 0.0
    %3002 = vmatprep.mubr.f32.mxu0 0.0
    %3003 = vmatmul.mubr.f32.gmra.mrb[0].mxu0 %v2936
    %v3004 = vpop.f32.mrb[0].mxu0
    %v3005 = vadd.f32 0.0, %v3004
    %v3006 = vpop.f32.mrb[0].mxu0
    %3007 = vdwg.mxu0
    %3008 = vrot.lane.b32.xlu0 %v1845, 64
    %v3009 = vpop.permute.xlu0 %3008
    %v3012 = vsel %vm209, %v2550, 0
    %3014 = vmatprep.subr.mxu0 0.0
    %3015 = vmatpush1.msra.mxu0 %v3009
    %3016 = vmatprep.subr.mxu0 0.0
    %3017 = vmatpush1.msra.mxu0 0.0
    %3018 = vmatprep.subr.mxu0 0.0
    %3019 = vmatpush1.msra.mxu0 0.0
    %3020 = vmatprep.subr.mxu0 0.0
    %3021 = vmatpush1.msra.mxu0 0.0
    %3022 = vmatprep.subr.mxu0 0.0
    %3023 = vmatpush1.msra.mxu0 0.0
    %3024 = vmatprep.subr.mxu0 0.0
    %3025 = vmatpush1.msra.mxu0 0.0
    %3026 = vmatprep.subr.mxu0 0.0
    %3027 = vmatpush1.msra.mxu0 0.0
    %3028 = vmatprep.subr.mxu0 0.0
    %3029 = vmatpush1.msra.mxu0 0.0
    %3030 = vmatprep.subr.mxu0 0.0
    %3031 = vmatpush1.msra.mxu0 0.0
    %3032 = vmatprep.subr.mxu0 0.0
    %3033 = vmatpush1.msra.mxu0 0.0
    %3034 = vmatprep.subr.mxu0 0.0
    %3035 = vmatpush1.msra.mxu0 0.0
    %3036 = vmatprep.subr.mxu0 0.0
    %3037 = vmatpush1.msra.mxu0 0.0
    %3038 = vmatprep.subr.mxu0 0.0
    %3039 = vmatpush1.msra.mxu0 0.0
    %3040 = vmatprep.subr.mxu0 0.0
    %3041 = vmatpush1.msra.mxu0 0.0
    %3042 = vmatprep.subr.mxu0 0.0
    %3043 = vmatpush1.msra.mxu0 0.0
    %3044 = vmatprep.subr.mxu0 0.0
    %3045 = vmatpush1.msra.mxu0 0.0
    %3046 = vmatprep.subr.mxu0 0.0
    %3047 = vmatpush1.msra.mxu0 0.0
    %3048 = vmatprep.subr.mxu0 0.0
    %3049 = vmatpush1.msra.mxu0 0.0
    %3050 = vmatprep.subr.mxu0 0.0
    %3051 = vmatpush1.msra.mxu0 0.0
    %3052 = vmatprep.subr.mxu0 0.0
    %3053 = vmatpush1.msra.mxu0 0.0
    %3054 = vmatprep.subr.mxu0 0.0
    %3055 = vmatpush1.msra.mxu0 0.0
    %3056 = vmatprep.subr.mxu0 0.0
    %3057 = vmatpush1.msra.mxu0 0.0
    %3058 = vmatprep.subr.mxu0 0.0
    %3059 = vmatpush1.msra.mxu0 0.0
    %3060 = vmatprep.subr.mxu0 0.0
    %3061 = vmatpush1.msra.mxu0 0.0
    %3062 = vmatprep.subr.mxu0 0.0
    %3063 = vmatpush1.msra.mxu0 0.0
    %3064 = vmatprep.subr.mxu0 0.0
    %3065 = vmatpush1.msra.mxu0 0.0
    %3066 = vmatprep.subr.mxu0 0.0
    %3067 = vmatpush1.msra.mxu0 0.0
    %3068 = vmatprep.subr.mxu0 0.0
    %3069 = vmatpush1.msra.mxu0 0.0
    %3070 = vmatprep.subr.mxu0 0.0
    %3071 = vmatpush1.msra.mxu0 0.0
    %3072 = vmatprep.subr.mxu0 0.0
    %3073 = vmatpush1.msra.mxu0 0.0
    %3074 = vmatprep.subr.mxu0 0.0
    %3075 = vmatpush1.msra.mxu0 0.0
    %3076 = vmatprep.subr.mxu0 0.0
    %3077 = vmatpush1.msra.mxu0 0.0
    %3078 = vmatprep.mubr.f32.mxu0 0.0
    %3079 = vmatmul.mubr.f32.gmra.mrb[0].mxu0 %v3012
    %v3080 = vpop.f32.mrb[0].mxu0
    %v3081 = vadd.f32 0.0, %v3080
    %v3082 = vpop.f32.mrb[0].mxu0
    %3083 = vdwg.mxu0
    %3084 = vrot.lane.b32.xlu0 %v1847, 64
    %v3085 = vpop.permute.xlu0 %3084
    %v3088 = vsel %vm209, %v2551, 0
    %3090 = vmatprep.subr.mxu0 0.0
    %3091 = vmatpush1.msra.mxu0 %v3085
    %3092 = vmatprep.subr.mxu0 0.0
    %3093 = vmatpush1.msra.mxu0 0.0
    %3094 = vmatprep.subr.mxu0 0.0
    %3095 = vmatpush1.msra.mxu0 0.0
    %3096 = vmatprep.subr.mxu0 0.0
    %3097 = vmatpush1.msra.mxu0 0.0
    %3098 = vmatprep.subr.mxu0 0.0
    %3099 = vmatpush1.msra.mxu0 0.0
    %3100 = vmatprep.subr.mxu0 0.0
    %3101 = vmatpush1.msra.mxu0 0.0
    %3102 = vmatprep.subr.mxu0 0.0
    %3103 = vmatpush1.msra.mxu0 0.0
    %3104 = vmatprep.subr.mxu0 0.0
    %3105 = vmatpush1.msra.mxu0 0.0
    %3106 = vmatprep.subr.mxu0 0.0
    %3107 = vmatpush1.msra.mxu0 0.0
    %3108 = vmatprep.subr.mxu0 0.0
    %3109 = vmatpush1.msra.mxu0 0.0
    %3110 = vmatprep.subr.mxu0 0.0
    %3111 = vmatpush1.msra.mxu0 0.0
    %3112 = vmatprep.subr.mxu0 0.0
    %3113 = vmatpush1.msra.mxu0 0.0
    %3114 = vmatprep.subr.mxu0 0.0
    %3115 = vmatpush1.msra.mxu0 0.0
    %3116 = vmatprep.subr.mxu0 0.0
    %3117 = vmatpush1.msra.mxu0 0.0
    %3118 = vmatprep.subr.mxu0 0.0
    %3119 = vmatpush1.msra.mxu0 0.0
    %3120 = vmatprep.subr.mxu0 0.0
    %3121 = vmatpush1.msra.mxu0 0.0
    %3122 = vmatprep.subr.mxu0 0.0
    %3123 = vmatpush1.msra.mxu0 0.0
    %3124 = vmatprep.subr.mxu0 0.0
    %3125 = vmatpush1.msra.mxu0 0.0
    %3126 = vmatprep.subr.mxu0 0.0
    %3127 = vmatpush1.msra.mxu0 0.0
    %3128 = vmatprep.subr.mxu0 0.0
    %3129 = vmatpush1.msra.mxu0 0.0
    %3130 = vmatprep.subr.mxu0 0.0
    %3131 = vmatpush1.msra.mxu0 0.0
    %3132 = vmatprep.subr.mxu0 0.0
    %3133 = vmatpush1.msra.mxu0 0.0
    %3134 = vmatprep.subr.mxu0 0.0
    %3135 = vmatpush1.msra.mxu0 0.0
    %3136 = vmatprep.subr.mxu0 0.0
    %3137 = vmatpush1.msra.mxu0 0.0
    %3138 = vmatprep.subr.mxu0 0.0
    %3139 = vmatpush1.msra.mxu0 0.0
    %3140 = vmatprep.subr.mxu0 0.0
    %3141 = vmatpush1.msra.mxu0 0.0
    %3142 = vmatprep.subr.mxu0 0.0
    %3143 = vmatpush1.msra.mxu0 0.0
    %3144 = vmatprep.subr.mxu0 0.0
    %3145 = vmatpush1.msra.mxu0 0.0
    %3146 = vmatprep.subr.mxu0 0.0
    %3147 = vmatpush1.msra.mxu0 0.0
    %3148 = vmatprep.subr.mxu0 0.0
    %3149 = vmatpush1.msra.mxu0 0.0
    %3150 = vmatprep.subr.mxu0 0.0
    %3151 = vmatpush1.msra.mxu0 0.0
    %3152 = vmatprep.subr.mxu0 0.0
    %3153 = vmatpush1.msra.mxu0 0.0
    %3154 = vmatprep.mubr.f32.mxu0 0.0
    %3155 = vmatmul.mubr.f32.gmra.mrb[0].mxu0 %v3088
    %v3156 = vpop.f32.mrb[0].mxu0
    %v3157 = vadd.f32 0.0, %v3156
    %v3158 = vpop.f32.mrb[0].mxu0
    %3159 = vdwg.mxu0
    %3162 = vrot.lane.b32.xlu0 %v2777, 8
    %v3163 = vpop.permute.xlu0 %3162
    %3164 = vrot.lane.b32.xlu0 %v2853, 8
    %v3165 = vpop.permute.xlu0 %3164
    %3170 = vrot.lane.b32.xlu0 %v2929, 16
    %v3171 = vpop.permute.xlu0 %3170
    %3172 = vrot.lane.b32.xlu0 %v3005, 16
    %v3173 = vpop.permute.xlu0 %3172
    %3178 = vrot.lane.b32.xlu0 %v3081, 24
    %v3179 = vpop.permute.xlu0 %3178
    %3180 = vrot.lane.b32.xlu0 %v3157, 24
    %v3181 = vpop.permute.xlu0 %3180
    %v3184 = vsel %vm209, %v2625, %v3163
    %v3185 = vsel %vm209, %v2701, %v3165
    %v3186 = vsel %vm1548, %v3184, %v3171
    %v3187 = vsel %vm1548, %v3185, %v3173
    %v3188 = vsel %vm1551, %v3186, %v3179
    %v3189 = vsel %vm1551, %v3187, %v3181
    %s3190 = scalar_lea.vmem %s6, 32
    %v3191 = vld [vmem:[%s3190] sm:$0xff]
    %v3192 = vld [vmem:[%s3190 + $0x8] sm:$0xff]
    %v3193 = vld [vmem:[%s3190 + $0x10] sm:$0xff]
    %v3194 = vld [vmem:[%s3190 + $0x18] sm:$0xff]
    %s3195 = scalar_lea.vmem %s7, 1
    %v3196 = vld [vmem:[%s3195] sm:$0x1]
    %v3198 = vlaneseq
    %v3199 = vshrl.u32 %v3198, 7
    %v3200 = vsub.s32 0, %v3199
    %v3201 = vrot.slane %v3196, %v3200
    %v3204 = vsel %vm57, %v3188, 0
    %v3207 = vsel %vm57, %v3189, 0
    %3209 = vmatprep.subr.mxu0 0.0
    %3210 = vmatpush1.msra.mxu0 %v3191
    %3211 = vmatprep.subr.mxu0 0.0
    %3212 = vmatpush1.msra.mxu0 %v3192
    %3213 = vmatprep.subr.mxu0 0.0
    %3214 = vmatpush1.msra.mxu0 %v3193
    %3215 = vmatprep.subr.mxu0 0.0
    %3216 = vmatpush1.msra.mxu0 %v3194
    %3217 = vmatprep.subr.mxu0 0.0
    %3218 = vmatpush1.msra.mxu0 0.0
    %3219 = vmatprep.subr.mxu0 0.0
    %3220 = vmatpush1.msra.mxu0 0.0
    %3221 = vmatprep.subr.mxu0 0.0
    %3222 = vmatpush1.msra.mxu0 0.0
    %3223 = vmatprep.subr.mxu0 0.0
    %3224 = vmatpush1.msra.mxu0 0.0
    %3225 = vmatprep.subr.mxu0 0.0
    %3226 = vmatpush1.msra.mxu0 0.0
    %3227 = vmatprep.subr.mxu0 0.0
    %3228 = vmatpush1.msra.mxu0 0.0
    %3229 = vmatprep.subr.mxu0 0.0
    %3230 = vmatpush1.msra.mxu0 0.0
    %3231 = vmatprep.subr.mxu0 0.0
    %3232 = vmatpush1.msra.mxu0 0.0
    %3233 = vmatprep.subr.mxu0 0.0
    %3234 = vmatpush1.msra.mxu0 0.0
    %3235 = vmatprep.subr.mxu0 0.0
    %3236 = vmatpush1.msra.mxu0 0.0
    %3237 = vmatprep.subr.mxu0 0.0
    %3238 = vmatpush1.msra.mxu0 0.0
    %3239 = vmatprep.subr.mxu0 0.0
    %3240 = vmatpush1.msra.mxu0 0.0
    %3241 = vmatprep.subr.mxu0 0.0
    %3242 = vmatpush1.msra.mxu0 0.0
    %3243 = vmatprep.subr.mxu0 0.0
    %3244 = vmatpush1.msra.mxu0 0.0
    %3245 = vmatprep.subr.mxu0 0.0
    %3246 = vmatpush1.msra.mxu0 0.0
    %3247 = vmatprep.subr.mxu0 0.0
    %3248 = vmatpush1.msra.mxu0 0.0
    %3249 = vmatprep.subr.mxu0 0.0
    %3250 = vmatpush1.msra.mxu0 0.0
    %3251 = vmatprep.subr.mxu0 0.0
    %3252 = vmatpush1.msra.mxu0 0.0
    %3253 = vmatprep.subr.mxu0 0.0
    %3254 = vmatpush1.msra.mxu0 0.0
    %3255 = vmatprep.subr.mxu0 0.0
    %3256 = vmatpush1.msra.mxu0 0.0
    %3257 = vmatprep.subr.mxu0 0.0
    %3258 = vmatpush1.msra.mxu0 0.0
    %3259 = vmatprep.subr.mxu0 0.0
    %3260 = vmatpush1.msra.mxu0 0.0
    %3261 = vmatprep.subr.mxu0 0.0
    %3262 = vmatpush1.msra.mxu0 0.0
    %3263 = vmatprep.subr.mxu0 0.0
    %3264 = vmatpush1.msra.mxu0 0.0
    %3265 = vmatprep.subr.mxu0 0.0
    %3266 = vmatpush1.msra.mxu0 0.0
    %3267 = vmatprep.subr.mxu0 0.0
    %3268 = vmatpush1.msra.mxu0 0.0
    %3269 = vmatprep.subr.mxu0 0.0
    %3270 = vmatpush1.msra.mxu0 0.0
    %3271 = vmatprep.subr.mxu0 0.0
    %3272 = vmatpush1.msra.mxu0 0.0
    %3273 = vmatprep.mubr.f32.mxu0 0.0
    %3274 = vmatmul.mubr.f32.gmra.mrb[0].mxu0 %v3204
    %v3275 = vpop.f32.mrb[0].mxu0
    %v3276 = vadd.f32 %v3201, %v3275
    %v3277 = vpop.f32.mrb[0].mxu0
    %3278 = vmatprep.mubr.f32.mxu0 0.0
    %3279 = vmatmul.mubr.f32.gmra.mrb[0].mxu0 %v3207
    %v3280 = vpop.f32.mrb[0].mxu0
    %v3281 = vadd.f32 %v3201, %v3280
    %v3282 = vpop.f32.mrb[0].mxu0
    %3283 = vdwg.mxu0
    %v3284 = vadd.f32 %v1692, %v3276
    %v3285 = vadd.f32 %v1693, %v3281
    %s3286 = scalar_lea.vmem %s8, 1
    %v3287 = vld [vmem:[%s3286] sm:$0x1]
    %s3288 = scalar_lea.vmem %s9, 1
    %v3289 = vld [vmem:[%s3288] sm:$0x1]
    %v3290 = vsel %vm57, %v3284, 0.0
    %3291 = vadd.xlane.f32.xlu0 %v3290
    %v3292 = vpop.xlane.xlu0 %3291
    %v3293 = vsel %vm57, %v3285, 0.0
    %3294 = vadd.xlane.f32.xlu0 %v3293
    %v3295 = vpop.xlane.xlu0 %3294
    %v3296 = vmul.f32 %v3292, %v64
    %v3297 = vmul.f32 %v3295, %v64
    %v3298 = vsub.f32 %v3284, %v3296
    %v3299 = vsub.f32 %v3285, %v3297
    %v3300 = vmul.f32 %v3298, %v3298
    %v3301 = vmul.f32 %v3299, %v3299
    %v3302 = vsel %vm57, %v3300, 0.0
    %3303 = vadd.xlane.f32.xlu0 %v3302
    %v3304 = vpop.xlane.xlu0 %3303
    %v3305 = vsel %vm57, %v3301, 0.0
    %3306 = vadd.xlane.f32.xlu0 %v3305
    %v3307 = vpop.xlane.xlu0 %3306
    %v3308 = vmul.f32 %v3304, %v64
    %v3309 = vmul.f32 %v3307, %v64
    %v3310 = vadd.f32 %v3308, 1e-05
    %v3311 = vadd.f32 %v3309, 1e-05
    %v3312 = vrsqrt.pop %v3310
    %v3313 = vrsqrt.pop %v3311
    %v3314 = vmul.f32 %v3298, %v3312
    %v3315 = vmul.f32 %v3299, %v3313
    %v3317 = vlaneseq
    %v3318 = vshrl.u32 %v3317, 7
    %v3319 = vsub.s32 0, %v3318
    %v3320 = vrot.slane %v3287, %v3319
    %v3322 = vmul.f32 %v3314, %v3320
    %v3323 = vmul.f32 %v3315, %v3320
    %v3325 = vlaneseq
    %v3326 = vshrl.u32 %v3325, 7
    %v3327 = vsub.s32 0, %v3326
    %v3328 = vrot.slane %v3289, %v3327
    %v3330 = vadd.f32 %v3322, %v3328
    %v3331 = vadd.f32 %v3323, %v3328
    %v3332 = vadd.f32 %v3284, %v3330
    %v3333 = vadd.f32 %v3285, %v3331
    %v3334 = vld [vmem:[%s10] sm:$0x1]
    %v3335 = vld [vmem:[%s11] sm:$0x1]
    %v3336 = vsel %vm57, %v3332, 0.0
    %3337 = vadd.xlane.f32.xlu0 %v3336
    %v3338 = vpop.xlane.xlu0 %3337
    %v3339 = vsel %vm57, %v3333, 0.0
    %3340 = vadd.xlane.f32.xlu0 %v3339
    %v3341 = vpop.xlane.xlu0 %3340
    %v3342 = vmul.f32 %v3338, %v64
    %v3343 = vmul.f32 %v3341, %v64
    %v3344 = vsub.f32 %v3332, %v3342
    %v3345 = vsub.f32 %v3333, %v3343
    %v3346 = vmul.f32 %v3344, %v3344
    %v3347 = vmul.f32 %v3345, %v3345
    %v3348 = vsel %vm57, %v3346, 0.0
    %3349 = vadd.xlane.f32.xlu0 %v3348
    %v3350 = vpop.xlane.xlu0 %3349
    %v3351 = vsel %vm57, %v3347, 0.0
    %3352 = vadd.xlane.f32.xlu0 %v3351
    %v3353 = vpop.xlane.xlu0 %3352
    %v3354 = vmul.f32 %v3350, %v64
    %v3355 = vmul.f32 %v3353, %v64
    %v3356 = vadd.f32 %v3354, 1e-05
    %v3357 = vadd.f32 %v3355, 1e-05
    %v3358 = vrsqrt.pop %v3356
    %v3359 = vrsqrt.pop %v3357
    %v3360 = vmul.f32 %v3344, %v3358
    %v3361 = vmul.f32 %v3345, %v3359
    %v3363 = vlaneseq
    %v3364 = vshrl.u32 %v3363, 7
    %v3365 = vsub.s32 0, %v3364
    %v3366 = vrot.slane %v3334, %v3365
    %v3368 = vmul.f32 %v3360, %v3366
    %v3369 = vmul.f32 %v3361, %v3366
    %v3371 = vlaneseq
    %v3372 = vshrl.u32 %v3371, 7
    %v3373 = vsub.s32 0, %v3372
    %v3374 = vrot.slane %v3335, %v3373
    %v3376 = vadd.f32 %v3368, %v3374
    %v3377 = vadd.f32 %v3369, %v3374
    %v3378 = vld [vmem:[%s12] sm:$0xff]
    %v3379 = vld [vmem:[%s12 + $0x8] sm:$0xff]
    %v3380 = vld [vmem:[%s12 + $0x10] sm:$0xff]
    %v3381 = vld [vmem:[%s12 + $0x18] sm:$0xff]
    %v3383 = vsel %vm57, %v3376, 0
    %v3386 = vsel %vm57, %v3377, 0
    %3388 = vmatprep.subr.mxu0 0.0
    %3389 = vmatpush1.msra.mxu0 %v3378
    %3390 = vmatprep.subr.mxu0 0.0
    %3391 = vmatpush1.msra.mxu0 %v3379
    %3392 = vmatprep.subr.mxu0 0.0
    %3393 = vmatpush1.msra.mxu0 %v3380
    %3394 = vmatprep.subr.mxu0 0.0
    %3395 = vmatpush1.msra.mxu0 %v3381
    %3396 = vmatprep.subr.mxu0 0.0
    %3397 = vmatpush1.msra.mxu0 0.0
    %3398 = vmatprep.subr.mxu0 0.0
    %3399 = vmatpush1.msra.mxu0 0.0
    %3400 = vmatprep.subr.mxu0 0.0
    %3401 = vmatpush1.msra.mxu0 0.0
    %3402 = vmatprep.subr.mxu0 0.0
    %3403 = vmatpush1.msra.mxu0 0.0
    %3404 = vmatprep.subr.mxu0 0.0
    %3405 = vmatpush1.msra.mxu0 0.0
    %3406 = vmatprep.subr.mxu0 0.0
    %3407 = vmatpush1.msra.mxu0 0.0
    %3408 = vmatprep.subr.mxu0 0.0
    %3409 = vmatpush1.msra.mxu0 0.0
    %3410 = vmatprep.subr.mxu0 0.0
    %3411 = vmatpush1.msra.mxu0 0.0
    %3412 = vmatprep.subr.mxu0 0.0
    %3413 = vmatpush1.msra.mxu0 0.0
    %3414 = vmatprep.subr.mxu0 0.0
    %3415 = vmatpush1.msra.mxu0 0.0
    %3416 = vmatprep.subr.mxu0 0.0
    %3417 = vmatpush1.msra.mxu0 0.0
    %3418 = vmatprep.subr.mxu0 0.0
    %3419 = vmatpush1.msra.mxu0 0.0
    %3420 = vmatprep.subr.mxu0 0.0
    %3421 = vmatpush1.msra.mxu0 0.0
    %3422 = vmatprep.subr.mxu0 0.0
    %3423 = vmatpush1.msra.mxu0 0.0
    %3424 = vmatprep.subr.mxu0 0.0
    %3425 = vmatpush1.msra.mxu0 0.0
    %3426 = vmatprep.subr.mxu0 0.0
    %3427 = vmatpush1.msra.mxu0 0.0
    %3428 = vmatprep.subr.mxu0 0.0
    %3429 = vmatpush1.msra.mxu0 0.0
    %3430 = vmatprep.subr.mxu0 0.0
    %3431 = vmatpush1.msra.mxu0 0.0
    %3432 = vmatprep.subr.mxu0 0.0
    %3433 = vmatpush1.msra.mxu0 0.0
    %3434 = vmatprep.subr.mxu0 0.0
    %3435 = vmatpush1.msra.mxu0 0.0
    %3436 = vmatprep.subr.mxu0 0.0
    %3437 = vmatpush1.msra.mxu0 0.0
    %3438 = vmatprep.subr.mxu0 0.0
    %3439 = vmatpush1.msra.mxu0 0.0
    %3440 = vmatprep.subr.mxu0 0.0
    %3441 = vmatpush1.msra.mxu0 0.0
    %3442 = vmatprep.subr.mxu0 0.0
    %3443 = vmatpush1.msra.mxu0 0.0
    %3444 = vmatprep.subr.mxu0 0.0
    %3445 = vmatpush1.msra.mxu0 0.0
    %3446 = vmatprep.subr.mxu0 0.0
    %3447 = vmatpush1.msra.mxu0 0.0
    %3448 = vmatprep.subr.mxu0 0.0
    %3449 = vmatpush1.msra.mxu0 0.0
    %3450 = vmatprep.subr.mxu0 0.0
    %3451 = vmatpush1.msra.mxu0 0.0
    %3452 = vmatprep.mubr.f32.mxu0 0.0
    %3453 = vmatmul.mubr.f32.gmra.mrb[0].mxu0 %v3383
    %v3454 = vpop.f32.mrb[0].mxu0
    %v3455 = vadd.f32 0.0, %v3454
    %v3456 = vpop.f32.mrb[0].mxu0
    %3457 = vmatprep.mubr.f32.mxu0 0.0
    %3458 = vmatmul.mubr.f32.gmra.mrb[0].mxu0 %v3386
    %v3459 = vpop.f32.mrb[0].mxu0
    %v3460 = vadd.f32 0.0, %v3459
    %v3461 = vpop.f32.mrb[0].mxu0
    %3462 = vdwg.mxu0
    %3463 = vst [vmem:[#allocation2] sm:$0xff] %v3455
    %3464 = vst [vmem:[#allocation2 + $0x8] sm:$0xff] %v3460
    // Predicated region
    $region54: #{_gpt_logits.1} parent=1 // pred_check
      _
    $region55: #{_gpt_logits.1} parent=1 // pred_check_branch
      %3466 = sbr.rel (0) target = $region57
    $region56: #{_gpt_logits.1} parent=1 // pred_region
      %s3468 = ssub.s32 256, 256
      %3469 = vsyncadd [#allocation3], %s3468
      %s3470 = sshll.u32 [#allocation2], 4
      %s3471 = int_to_ptr.vmem [resolvable:$true] %s3470
      %3476 = dma.vmem_to_hbm [thread:$0]  %s3471, 256, %s13, [#allocation3], 128, 128, 8
    $region57: #{_gpt_logits.1} parent=1 // pred_fallthru
      _
    // Predicated region
    $region58: #{_gpt_logits.1} parent=1 // pred_check
      _
    $region59: #{_gpt_logits.1} parent=1 // pred_check_branch
      %3478 = sbr.rel (0) target = $region61
    $region60: #{_gpt_logits.1} parent=1 // pred_region
      %3479 = dma.done [#allocation3], 256
    $region61: #{_gpt_logits.1} parent=1 // pred_fallthru
      _
    %3480 = vsyncpa [#allocation3], 1

</llo_original>
